<compile_context>
chip_gen: v7x
topology: tpu7x:2x2x1
jax: 0.10.0
libtpu: 0.0.40
codegen_flags: <defaults>
</compile_context>

<pallas_src>
import functools

import jax
import jax.numpy as jnp
import numpy as np
from jax.experimental import pallas as pl
from jax.experimental.pallas import tpu as pltpu


def _layer_norm(x, gamma, beta, eps):
    """LayerNorm over the last axis; gamma/beta broadcast-compatible (e.g. (1, D))."""
    mean = jnp.mean(x, axis=-1, keepdims=True)
    xc = x - mean
    var = jnp.mean(xc * xc, axis=-1, keepdims=True)
    return xc * jax.lax.rsqrt(var + eps) * gamma + beta


def _is_single_tensorcore_chip() -> bool:
    """True for TPU generations with a single TensorCore per chip (v5e / v6e)."""
    try:
        kind = jax.devices()[0].device_kind.lower()
    except Exception:
        return False
    return any(tag in kind for tag in ("v5 lite", "v5e", "v5litepod", "v6 lite", "v6e"))


def transformer_block_kernel(x_ref, hmask_ref, wqkv_ref, bqkv_ref, wo_ref, bo_ref,
                             ln1_g_ref, ln1_b_ref,
                             w1_ref, b1_ref, w2_ref, b2_ref,
                             ln2_g_ref, ln2_b_ref,
                             o_ref, *, num_heads, eps, matmul_dtype):
    """Full post-LN transformer encoder layer for `bb` batch elements.

    x_ref:   (bb, S, D) token activations (f32)
    hmask:   (nh, 1, D) per-head lane mask (1.0 on that head's channels)
    wqkv:    (D, 3D)    packed Q/K/V projection, [in, out], Q columns pre-scaled
    wo:      (D, D)     attention output projection, [in, out]
    w1/w2:   (D, F)/(F, D) feed-forward weights, [in, out]
    biases / LN params: (1, n) rows (f32) for lane broadcasting
    o_ref:   (bb, S, D) output tokens
    """
    f32 = jnp.float32
    bb, S, D = x_ref.shape
    nh = num_heads
    G = bb * nh                                     # batched (batch, head) axis

    x = x_ref[...].reshape(bb * S, D)               # (bb*S, D) f32 — big-M matmuls
    xm = x.astype(matmul_dtype)

    # ---- fused QKV projection (Q scale already folded into wqkv / bqkv) ----
    qkv = jnp.dot(xm, wqkv_ref[...],
                  preferred_element_type=f32) + bqkv_ref[...]          # (bb*S, 3D)

    # Leading-dim reshapes only (sublane splits at multiples of 8 — layout safe).
    q = qkv[:, 0:D].reshape(bb, 1, S, D)
    k = qkv[:, D:2 * D].reshape(bb, 1, S, D)
    v = qkv[:, 2 * D:3 * D].reshape(bb, 1, S, D)

    # Head split via exact 0/1 lane masks (no 8-lane slices, no transposes):
    #   scores_g = (q ⊙ mask_h) · k   contracts over full D but only head-h terms
    #   survive, so it equals the per-head score exactly.
    hmask = hmask_ref[...][None]                                        # (1, nh, 1, D)
    qg = (q * hmask).reshape(G, S, D).astype(matmul_dtype)              # (G, S, D)
    kg = jnp.broadcast_to(k, (bb, nh, S, D)).reshape(G, S, D).astype(matmul_dtype)
    vg = (v * hmask).reshape(G, S, D).astype(matmul_dtype)              # (G, S, D)

    # ---- batched attention: 3 batched matmuls + ONE vectorized softmax ----
    s = jnp.einsum('gqd,gkd->gqk', qg, kg, preferred_element_type=f32)  # (G, S, S)
    s = s - jnp.max(s, axis=-1, keepdims=True)
    p = jnp.exp(s)
    denom = jnp.sum(p, axis=-1, keepdims=True)
    p = p * pl.reciprocal(denom, approx=True)       # EUP slot, frees the VALU

    ctx = jnp.einsum('gqk,gkd->gqd', p.astype(matmul_dtype), vg,
                     preferred_element_type=f32)                        # (G, S, D)
    # Each ctx[g] is zero outside its head's channels, so summing over heads
    # reconstructs the concatenated-head context exactly (nh-1 full-width adds,
    # no relayout), and a single fused (bb*S, D) x (D, D) out-projection follows.
    ctx4 = ctx.reshape(bb, nh, S, D)
    ctx_sum = ctx4[:, 0]
    for h in range(1, nh):
        ctx_sum = ctx_sum + ctx4[:, h]
    ctx_sum = ctx_sum.reshape(bb * S, D)

    attn = jnp.dot(ctx_sum.astype(matmul_dtype), wo_ref[...],
                   preferred_element_type=f32) + bo_ref[...]            # (bb*S, D)

    y = _layer_norm(x + attn, ln1_g_ref[...], ln1_b_ref[...], eps)      # f32

    # ---- feed-forward (lane-dense: F = 2048), bf16 operands / f32 accum ----
    h1 = jnp.dot(y.astype(matmul_dtype), w1_ref[...],
                 preferred_element_type=f32) + b1_ref[...]
    h1 = jnp.maximum(h1, 0.0)
    ffn = jnp.dot(h1.astype(matmul_dtype), w2_ref[...],
                  preferred_element_type=f32) + b2_ref[...]

    z = _layer_norm(y + ffn, ln2_g_ref[...], ln2_b_ref[...], eps)
    o_ref[...] = z.reshape(bb, S, D).astype(o_ref.dtype)


def transformer_block_forward(x_nchw, p, *, num_heads=4, eps=1e-5,
                              matmul_dtype=jnp.bfloat16, fold_batch=None):
    """Runs TransformerBlock.forward on an NCHW input using the fused Pallas kernel."""
    B, C, H, W = x_nchw.shape
    S, D = H * W, C
    F = p['linear1_weight'].shape[0]
    assert D % num_heads == 0
    hd = D // num_heads

    # Batch tiling: fold the whole batch into one grid step on single-TC chips
    # (v5e/v6e); keep grid=(B,) "parallel" otherwise (v7x: 2 TCs split the batch).
    if fold_batch is None:
        fold_batch = _is_single_tensorcore_chip()
    bb = B if fold_batch else 1
    grid = (B // bb,)

    # (B, C, H, W) -> (B, S, D): tokens along S, d_model (=C) along lanes.
    x_seq = jnp.transpose(x_nchw.reshape(B, C, S), (0, 2, 1)).astype(jnp.float32)

    # Fold 1/sqrt(head_dim) into the Q rows of in_proj (weight AND bias) — free
    # on the host, removes all scale multiplies from the kernel.
    scale = 1.0 / float(np.sqrt(hd))
    in_w = p['in_proj_weight'].astype(jnp.float32).at[:D, :].multiply(scale)
    in_b = p['in_proj_bias'].astype(jnp.float32).at[:D].multiply(scale)

    # Pre-transpose weights to [in, out]; MXU operands in matmul_dtype, biases/LN in f32.
    wqkv = jnp.transpose(in_w).astype(matmul_dtype)                      # (D, 3D)
    bqkv = in_b.reshape(1, 3 * D)                                        # f32
    wo = jnp.transpose(p['out_proj_weight']).astype(matmul_dtype)        # (D, D)
    bo = p['out_proj_bias'].reshape(1, D).astype(jnp.float32)
    w1 = jnp.transpose(p['linear1_weight']).astype(matmul_dtype)         # (D, F)
    b1 = p['linear1_bias'].reshape(1, F).astype(jnp.float32)
    w2 = jnp.transpose(p['linear2_weight']).astype(matmul_dtype)         # (F, D)
    b2 = p['linear2_bias'].reshape(1, D).astype(jnp.float32)
    ln1_g = p['ln1_weight'].reshape(1, D).astype(jnp.float32)
    ln1_b = p['ln1_bias'].reshape(1, D).astype(jnp.float32)
    ln2_g = p['ln2_weight'].reshape(1, D).astype(jnp.float32)
    ln2_b = p['ln2_bias'].reshape(1, D).astype(jnp.float32)

    # Per-head 0/1 lane mask: head_mask[h, 0, d] = 1 iff channel d belongs to head h.
    head_ids = jnp.arange(num_heads, dtype=jnp.int32)[:, None]
    chan_heads = (jnp.arange(D, dtype=jnp.int32) // hd)[None, :]
    head_mask = (chan_heads == head_ids).astype(jnp.float32).reshape(num_heads, 1, D)

    kernel = functools.partial(transformer_block_kernel, num_heads=num_heads,
                               eps=eps, matmul_dtype=matmul_dtype)

    out_seq = pl.pallas_call(
        kernel,
        out_shape=jax.ShapeDtypeStruct((B, S, D), jnp.float32),
        grid_spec=pltpu.PrefetchScalarGridSpec(
            num_scalar_prefetch=0,
            grid=grid,
            in_specs=[
                pl.BlockSpec((bb, S, D), lambda i: (i, 0, 0)),      # x tokens
                pl.BlockSpec((num_heads, 1, D), lambda i: (0, 0, 0)),  # head mask
                pl.BlockSpec((D, 3 * D), lambda i: (0, 0)),         # wqkv
                pl.BlockSpec((1, 3 * D), lambda i: (0, 0)),         # bqkv
                pl.BlockSpec((D, D), lambda i: (0, 0)),             # wo
                pl.BlockSpec((1, D), lambda i: (0, 0)),             # bo
                pl.BlockSpec((1, D), lambda i: (0, 0)),             # ln1 gamma
                pl.BlockSpec((1, D), lambda i: (0, 0)),             # ln1 beta
                pl.BlockSpec((D, F), lambda i: (0, 0)),             # w1
                pl.BlockSpec((1, F), lambda i: (0, 0)),             # b1
                pl.BlockSpec((F, D), lambda i: (0, 0)),             # w2
                pl.BlockSpec((1, D), lambda i: (0, 0)),             # b2
                pl.BlockSpec((1, D), lambda i: (0, 0)),             # ln2 gamma
                pl.BlockSpec((1, D), lambda i: (0, 0)),             # ln2 beta
            ],
            out_specs=pl.BlockSpec((bb, S, D), lambda i: (i, 0, 0)),
        ),
        compiler_params=pltpu.CompilerParams(
            dimension_semantics=("parallel",),
            vmem_limit_bytes=16 * 1024 * 1024),
    )(x_seq, head_mask, wqkv, bqkv, wo, bo, ln1_g, ln1_b, w1, b1, w2, b2, ln2_g, ln2_b)

    # (B, S, D) -> (B, C, H, W)
    return jnp.transpose(out_seq, (0, 2, 1)).reshape(B, C, H, W)


def reference_forward(x_nchw, p, *, num_heads=4, eps=1e-5):
    """Pure-JAX f32 reference of the same (inference-mode) encoder layer."""
    B, C, H, W = x_nchw.shape
    S, D = H * W, C
    hd = D // num_heads
    x = jnp.transpose(x_nchw.reshape(B, C, S), (0, 2, 1)).astype(jnp.float32)  # (B,S,D)

    qkv = jnp.einsum('bsd,ed->bse', x, p['in_proj_weight']) + p['in_proj_bias']
    q, k, v = qkv[..., :D], qkv[..., D:2 * D], qkv[..., 2 * D:]

    def split_heads(t):
        return t.reshape(B, S, num_heads, hd).transpose(0, 2, 1, 3)    # (B,H,S,hd)

    q, k, v = split_heads(q), split_heads(k), split_heads(v)
    scores = jnp.einsum('bhqd,bhkd->bhqk', q, k) * (1.0 / float(np.sqrt(hd)))
    probs = jax.nn.softmax(scores, axis=-1)
    ctx = jnp.einsum('bhqk,bhkd->bhqd', probs, v)
    ctx = ctx.transpose(0, 2, 1, 3).reshape(B, S, D)
    attn = jnp.einsum('bsd,ed->bse', ctx, p['out_proj_weight']) + p['out_proj_bias']

    y = _layer_norm(x + attn, p['ln1_weight'], p['ln1_bias'], eps)

    h1 = jnp.maximum(
        jnp.einsum('bsd,fd->bsf', y, p['linear1_weight']) + p['linear1_bias'], 0.0)
    ffn = jnp.einsum('bsf,df->bsd', h1, p['linear2_weight']) + p['linear2_bias']
    z = _layer_norm(y + ffn, p['ln2_weight'], p['ln2_bias'], eps)

    return jnp.transpose(z, (0, 2, 1)).reshape(B, C, H, W)


if __name__ == "__main__":
    # TransformerBlock(dim=32, num_heads=4) on a (2, 32, 8, 8) map -> seq len 64.
    B, C, H, W = 2, 32, 8, 8
    NUM_HEADS = 4
    FFN = 2048   # nn.TransformerEncoderLayer default dim_feedforward

    key = jax.random.PRNGKey(0)
    keys = jax.random.split(key, 8)

    def uinit(k, shape, fan_in):
        b = 1.0 / float(np.sqrt(fan_in))
        return jax.random.uniform(k, shape, minval=-b, maxval=b, dtype=jnp.float32)

    x = jax.random.normal(keys[0], (B, C, H, W), dtype=jnp.float32)

    params = {
        'in_proj_weight': uinit(keys[1], (3 * C, C), C),
        'in_proj_bias':   uinit(keys[2], (3 * C,), C),
        'out_proj_weight': uinit(keys[3], (C, C), C),
        'out_proj_bias':  jnp.zeros((C,), jnp.float32),
        'linear1_weight': uinit(keys[4], (FFN, C), C),
        'linear1_bias':   uinit(keys[5], (FFN,), C),
        'linear2_weight': uinit(keys[6], (C, FFN), FFN),
        'linear2_bias':   uinit(keys[7], (C,), FFN),
        'ln1_weight': jnp.ones((C,), jnp.float32),
        'ln1_bias':   jnp.zeros((C,), jnp.float32),
        'ln2_weight': jnp.ones((C,), jnp.float32),
        'ln2_bias':   jnp.zeros((C,), jnp.float32),
    }

    ref = jax.block_until_ready(reference_forward(x, params, num_heads=NUM_HEADS))

    # 1) Exact-semantics validation: f32 MXU operands, tight tolerance.
    out_f32 = jax.block_until_ready(
        transformer_block_forward(x, params, num_heads=NUM_HEADS,
                                  matmul_dtype=jnp.float32))
    assert out_f32.shape == (B, C, H, W), out_f32.shape
    np.testing.assert_allclose(np.asarray(out_f32), np.asarray(ref),
                               rtol=2e-3, atol=2e-3)

    # 2) Performance default (bf16 MXU operands, f32 accumulation), exercising
    #    both batch layouts (folded single-step and grid=(B,) parallel).
    out_fold = jax.block_until_ready(
        transformer_block_forward(x, params, num_heads=NUM_HEADS,
                                  matmul_dtype=jnp.bfloat16, fold_batch=True))
    out_par = jax.block_until_ready(
        transformer_block_forward(x, params, num_heads=NUM_HEADS,
                                  matmul_dtype=jnp.bfloat16, fold_batch=False))
    np.testing.assert_allclose(np.asarray(out_fold), np.asarray(ref),
                               rtol=5e-2, atol=5e-2)
    np.testing.assert_allclose(np.asarray(out_par), np.asarray(ref),
                               rtol=5e-2, atol=5e-2)

    print("KERNEL_OK")
</pallas_src>

<mosaic_0001>
module attributes {stable_mosaic.version = 11 : i64} {
  func.func @transformer_block_kernel(%arg0: i32, %arg1: memref<1x64x32xf32, #tpu.memory_space<vmem>>, %arg2: memref<4x1x32xf32, #tpu.memory_space<vmem>>, %arg3: memref<32x96xf32, #tpu.memory_space<vmem>>, %arg4: memref<1x96xf32, #tpu.memory_space<vmem>>, %arg5: memref<32x32xf32, #tpu.memory_space<vmem>>, %arg6: memref<1x32xf32, #tpu.memory_space<vmem>>, %arg7: memref<1x32xf32, #tpu.memory_space<vmem>>, %arg8: memref<1x32xf32, #tpu.memory_space<vmem>>, %arg9: memref<32x2048xf32, #tpu.memory_space<vmem>>, %arg10: memref<1x2048xf32, #tpu.memory_space<vmem>>, %arg11: memref<2048x32xf32, #tpu.memory_space<vmem>>, %arg12: memref<1x32xf32, #tpu.memory_space<vmem>>, %arg13: memref<1x32xf32, #tpu.memory_space<vmem>>, %arg14: memref<1x32xf32, #tpu.memory_space<vmem>>, %arg15: memref<1x64x32xf32, #tpu.memory_space<vmem>>) attributes {dimension_semantics = [#tpu.dimension_semantics<parallel>], iteration_bounds = array<i64: 2>, scalar_prefetch = 0 : i64, scratch_operands = 0 : i64, tpu.core_type = #tpu.core_type<tc>, window_params = [{transform_indices = @transform_0, window_bounds = array<i64: 1, 64, 32>}, {pipeline_mode = #tpu.pipeline_mode<synchronous>, transform_indices = @transform_1, window_bounds = array<i64: 4, 1, 32>}, {pipeline_mode = #tpu.pipeline_mode<synchronous>, transform_indices = @transform_2, window_bounds = array<i64: 32, 96>}, {pipeline_mode = #tpu.pipeline_mode<synchronous>, transform_indices = @transform_3, window_bounds = array<i64: 1, 96>}, {pipeline_mode = #tpu.pipeline_mode<synchronous>, transform_indices = @transform_4, window_bounds = array<i64: 32, 32>}, {pipeline_mode = #tpu.pipeline_mode<synchronous>, transform_indices = @transform_5, window_bounds = array<i64: 1, 32>}, {pipeline_mode = #tpu.pipeline_mode<synchronous>, transform_indices = @transform_6, window_bounds = array<i64: 1, 32>}, {pipeline_mode = #tpu.pipeline_mode<synchronous>, transform_indices = @transform_7, window_bounds = array<i64: 1, 32>}, {pipeline_mode = #tpu.pipeline_mode<synchronous>, transform_indices = @transform_8, window_bounds = array<i64: 32, 2048>}, {pipeline_mode = #tpu.pipeline_mode<synchronous>, transform_indices = @transform_9, window_bounds = array<i64: 1, 2048>}, {pipeline_mode = #tpu.pipeline_mode<synchronous>, transform_indices = @transform_10, window_bounds = array<i64: 2048, 32>}, {pipeline_mode = #tpu.pipeline_mode<synchronous>, transform_indices = @transform_11, window_bounds = array<i64: 1, 32>}, {pipeline_mode = #tpu.pipeline_mode<synchronous>, transform_indices = @transform_12, window_bounds = array<i64: 1, 32>}, {pipeline_mode = #tpu.pipeline_mode<synchronous>, transform_indices = @transform_13, window_bounds = array<i64: 1, 32>}, {transform_indices = @transform_14, window_bounds = array<i64: 1, 64, 32>}]} {
    %c0 = arith.constant 0 : index
    %c0_0 = arith.constant 0 : index
    %c0_1 = arith.constant 0 : index
    %0 = vector.load %arg1[%c0, %c0_0, %c0_1] : memref<1x64x32xf32, #tpu.memory_space<vmem>>, vector<1x64x32xf32>
    %1 = vector.shape_cast %0 : vector<1x64x32xf32> to vector<64x32xf32>
    %c0_2 = arith.constant 0 : index
    %c0_3 = arith.constant 0 : index
    %2 = vector.load %arg3[%c0_2, %c0_3] : memref<32x96xf32, #tpu.memory_space<vmem>>, vector<32x96xf32>
    %cst = arith.constant dense<0.000000e+00> : vector<64x96xf32>
    %3 = tpu.matmul %1, %2, %cst {dimension_numbers = #tpu.dot_dimension_numbers<[1], [0], [0], [1], [0, 0, 1, 1], [], []>} : vector<64x32xf32>, vector<32x96xf32>, vector<64x96xf32> -> vector<64x96xf32>
    %c0_4 = arith.constant 0 : index
    %c0_5 = arith.constant 0 : index
    %4 = vector.load %arg4[%c0_4, %c0_5] : memref<1x96xf32, #tpu.memory_space<vmem>>, vector<1x96xf32>
    %5 = vector.broadcast %4 : vector<1x96xf32> to vector<64x96xf32>
    %6 = arith.addf %3, %5 : vector<64x96xf32>
    %7 = vector.extract_strided_slice %6 {offsets = [0, 0], sizes = [64, 32], strides = [1, 1]} : vector<64x96xf32> to vector<64x32xf32>
    %8 = vector.shape_cast %7 : vector<64x32xf32> to vector<1x1x64x32xf32>
    %9 = vector.extract_strided_slice %6 {offsets = [0, 32], sizes = [64, 32], strides = [1, 1]} : vector<64x96xf32> to vector<64x32xf32>
    %10 = vector.shape_cast %9 : vector<64x32xf32> to vector<1x1x64x32xf32>
    %11 = vector.extract_strided_slice %6 {offsets = [0, 64], sizes = [64, 32], strides = [1, 1]} : vector<64x96xf32> to vector<64x32xf32>
    %12 = vector.shape_cast %11 : vector<64x32xf32> to vector<1x1x64x32xf32>
    %c0_6 = arith.constant 0 : index
    %c0_7 = arith.constant 0 : index
    %c0_8 = arith.constant 0 : index
    %13 = vector.load %arg2[%c0_6, %c0_7, %c0_8] : memref<4x1x32xf32, #tpu.memory_space<vmem>>, vector<4x1x32xf32>
    %14 = vector.shape_cast %13 : vector<4x1x32xf32> to vector<1x4x1x32xf32>
    %15 = vector.broadcast %8 : vector<1x1x64x32xf32> to vector<1x4x64x32xf32>
    %16 = vector.broadcast %14 : vector<1x4x1x32xf32> to vector<1x4x64x32xf32>
    %17 = arith.mulf %15, %16 : vector<1x4x64x32xf32>
    %18 = vector.shape_cast %17 : vector<1x4x64x32xf32> to vector<4x64x32xf32>
    %19 = vector.shape_cast %10 : vector<1x1x64x32xf32> to vector<1x1x64x32xf32>
    %20 = vector.broadcast %19 : vector<1x1x64x32xf32> to vector<1x4x64x32xf32>
    %21 = vector.shape_cast %20 : vector<1x4x64x32xf32> to vector<4x64x32xf32>
    %22 = vector.broadcast %12 : vector<1x1x64x32xf32> to vector<1x4x64x32xf32>
    %23 = vector.broadcast %14 : vector<1x4x1x32xf32> to vector<1x4x64x32xf32>
    %24 = arith.mulf %22, %23 : vector<1x4x64x32xf32>
    %25 = vector.shape_cast %24 : vector<1x4x64x32xf32> to vector<4x64x32xf32>
    "tpu.trace_start"() <{level = 10 : i32, message = "gqd,gkd->gqk"}> : () -> ()
    %cst_9 = arith.constant dense<0.000000e+00> : vector<4x64x64xf32>
    %26 = tpu.matmul %18, %21, %cst_9 {dimension_numbers = #tpu.dot_dimension_numbers<[2], [2], [1], [1], [0, 0, 0, 1, 1, 1], [0], [0]>} : vector<4x64x32xf32>, vector<4x64x32xf32>, vector<4x64x64xf32> -> vector<4x64x64xf32>
    "tpu.trace_stop"() : () -> ()
    %cst_10 = arith.constant dense<0xFF800000> : vector<4x64xf32>
    %27 = vector.multi_reduction <maximumf>, %26, %cst_10 [2] : vector<4x64x64xf32> to vector<4x64xf32>
    %28 = vector.shape_cast %27 : vector<4x64xf32> to vector<4x64x1xf32>
    %29 = vector.broadcast %28 : vector<4x64x1xf32> to vector<4x64x64xf32>
    %30 = arith.subf %26, %29 : vector<4x64x64xf32>
    %31 = math.exp %30 : vector<4x64x64xf32>
    %cst_11 = arith.constant dense<0.000000e+00> : vector<4x64xf32>
    %32 = vector.multi_reduction <add>, %31, %cst_11 [2] : vector<4x64x64xf32> to vector<4x64xf32>
    %33 = vector.shape_cast %32 : vector<4x64xf32> to vector<4x64x1xf32>
    %34 = tpu.reciprocal %33 {approx = true} : vector<4x64x1xf32> -> vector<4x64x1xf32>
    %35 = vector.broadcast %34 : vector<4x64x1xf32> to vector<4x64x64xf32>
    %36 = arith.mulf %31, %35 : vector<4x64x64xf32>
    "tpu.trace_start"() <{level = 10 : i32, message = "gqk,gkd->gqd"}> : () -> ()
    %cst_12 = arith.constant dense<0.000000e+00> : vector<4x64x32xf32>
    %37 = tpu.matmul %36, %25, %cst_12 {dimension_numbers = #tpu.dot_dimension_numbers<[2], [1], [1], [2], [0, 0, 0, 1, 1, 2], [0], [0]>} : vector<4x64x64xf32>, vector<4x64x32xf32>, vector<4x64x32xf32> -> vector<4x64x32xf32>
    "tpu.trace_stop"() : () -> ()
    %38 = vector.shape_cast %37 : vector<4x64x32xf32> to vector<1x4x64x32xf32>
    %39 = vector.extract_strided_slice %38 {offsets = [0, 0, 0, 0], sizes = [1, 1, 64, 32], strides = [1, 1, 1, 1]} : vector<1x4x64x32xf32> to vector<1x1x64x32xf32>
    %40 = vector.shape_cast %39 : vector<1x1x64x32xf32> to vector<1x64x32xf32>
    %41 = vector.extract_strided_slice %38 {offsets = [0, 1, 0, 0], sizes = [1, 1, 64, 32], strides = [1, 1, 1, 1]} : vector<1x4x64x32xf32> to vector<1x1x64x32xf32>
    %42 = vector.shape_cast %41 : vector<1x1x64x32xf32> to vector<1x64x32xf32>
    %43 = arith.addf %40, %42 : vector<1x64x32xf32>
    %44 = vector.extract_strided_slice %38 {offsets = [0, 2, 0, 0], sizes = [1, 1, 64, 32], strides = [1, 1, 1, 1]} : vector<1x4x64x32xf32> to vector<1x1x64x32xf32>
    %45 = vector.shape_cast %44 : vector<1x1x64x32xf32> to vector<1x64x32xf32>
    %46 = arith.addf %43, %45 : vector<1x64x32xf32>
    %47 = vector.extract_strided_slice %38 {offsets = [0, 3, 0, 0], sizes = [1, 1, 64, 32], strides = [1, 1, 1, 1]} : vector<1x4x64x32xf32> to vector<1x1x64x32xf32>
    %48 = vector.shape_cast %47 : vector<1x1x64x32xf32> to vector<1x64x32xf32>
    %49 = arith.addf %46, %48 : vector<1x64x32xf32>
    %50 = vector.shape_cast %49 : vector<1x64x32xf32> to vector<64x32xf32>
    %c0_13 = arith.constant 0 : index
    %c0_14 = arith.constant 0 : index
    %51 = vector.load %arg5[%c0_13, %c0_14] : memref<32x32xf32, #tpu.memory_space<vmem>>, vector<32x32xf32>
    %cst_15 = arith.constant dense<0.000000e+00> : vector<64x32xf32>
    %52 = tpu.matmul %50, %51, %cst_15 {dimension_numbers = #tpu.dot_dimension_numbers<[1], [0], [0], [1], [0, 0, 1, 1], [], []>} : vector<64x32xf32>, vector<32x32xf32>, vector<64x32xf32> -> vector<64x32xf32>
    %c0_16 = arith.constant 0 : index
    %c0_17 = arith.constant 0 : index
    %53 = vector.load %arg6[%c0_16, %c0_17] : memref<1x32xf32, #tpu.memory_space<vmem>>, vector<1x32xf32>
    %54 = vector.broadcast %53 : vector<1x32xf32> to vector<64x32xf32>
    %55 = arith.addf %52, %54 : vector<64x32xf32>
    %56 = arith.addf %1, %55 : vector<64x32xf32>
    %c0_18 = arith.constant 0 : index
    %c0_19 = arith.constant 0 : index
    %57 = vector.load %arg7[%c0_18, %c0_19] : memref<1x32xf32, #tpu.memory_space<vmem>>, vector<1x32xf32>
    %c0_20 = arith.constant 0 : index
    %c0_21 = arith.constant 0 : index
    %58 = vector.load %arg8[%c0_20, %c0_21] : memref<1x32xf32, #tpu.memory_space<vmem>>, vector<1x32xf32>
    %cst_22 = arith.constant dense<0.000000e+00> : vector<64xf32>
    %59 = vector.multi_reduction <add>, %56, %cst_22 [1] : vector<64x32xf32> to vector<64xf32>
    %60 = vector.shape_cast %59 : vector<64xf32> to vector<64x1xf32>
    %cst_23 = arith.constant 3.200000e+01 : f32
    %61 = vector.broadcast %cst_23 : f32 to vector<64x1xf32>
    %62 = arith.divf %60, %61 : vector<64x1xf32>
    %63 = vector.broadcast %62 : vector<64x1xf32> to vector<64x32xf32>
    %64 = arith.subf %56, %63 : vector<64x32xf32>
    %65 = arith.mulf %64, %64 : vector<64x32xf32>
    %cst_24 = arith.constant dense<0.000000e+00> : vector<64xf32>
    %66 = vector.multi_reduction <add>, %65, %cst_24 [1] : vector<64x32xf32> to vector<64xf32>
    %67 = vector.shape_cast %66 : vector<64xf32> to vector<64x1xf32>
    %cst_25 = arith.constant 3.200000e+01 : f32
    %68 = vector.broadcast %cst_25 : f32 to vector<64x1xf32>
    %69 = arith.divf %67, %68 : vector<64x1xf32>
    %cst_26 = arith.constant 9.99999974E-6 : f32
    %70 = vector.broadcast %cst_26 : f32 to vector<64x1xf32>
    %71 = arith.addf %69, %70 : vector<64x1xf32>
    %72 = math.rsqrt %71 : vector<64x1xf32>
    %73 = vector.broadcast %72 : vector<64x1xf32> to vector<64x32xf32>
    %74 = arith.mulf %64, %73 : vector<64x32xf32>
    %75 = vector.broadcast %57 : vector<1x32xf32> to vector<64x32xf32>
    %76 = arith.mulf %74, %75 : vector<64x32xf32>
    %77 = vector.broadcast %58 : vector<1x32xf32> to vector<64x32xf32>
    %78 = arith.addf %76, %77 : vector<64x32xf32>
    %c0_27 = arith.constant 0 : index
    %c0_28 = arith.constant 0 : index
    %79 = vector.load %arg9[%c0_27, %c0_28] : memref<32x2048xf32, #tpu.memory_space<vmem>>, vector<32x2048xf32>
    %cst_29 = arith.constant dense<0.000000e+00> : vector<64x2048xf32>
    %80 = tpu.matmul %78, %79, %cst_29 {dimension_numbers = #tpu.dot_dimension_numbers<[1], [0], [0], [1], [0, 0, 1, 1], [], []>} : vector<64x32xf32>, vector<32x2048xf32>, vector<64x2048xf32> -> vector<64x2048xf32>
    %c0_30 = arith.constant 0 : index
    %c0_31 = arith.constant 0 : index
    %81 = vector.load %arg10[%c0_30, %c0_31] : memref<1x2048xf32, #tpu.memory_space<vmem>>, vector<1x2048xf32>
    %82 = vector.broadcast %81 : vector<1x2048xf32> to vector<64x2048xf32>
    %83 = arith.addf %80, %82 : vector<64x2048xf32>
    %cst_32 = arith.constant 0.000000e+00 : f32
    %84 = vector.broadcast %cst_32 : f32 to vector<64x2048xf32>
    %85 = arith.maximumf %83, %84 : vector<64x2048xf32>
    %c0_33 = arith.constant 0 : index
    %c0_34 = arith.constant 0 : index
    %86 = vector.load %arg11[%c0_33, %c0_34] : memref<2048x32xf32, #tpu.memory_space<vmem>>, vector<2048x32xf32>
    %cst_35 = arith.constant dense<0.000000e+00> : vector<64x32xf32>
    %87 = tpu.matmul %85, %86, %cst_35 {dimension_numbers = #tpu.dot_dimension_numbers<[1], [0], [0], [1], [0, 0, 1, 1], [], []>} : vector<64x2048xf32>, vector<2048x32xf32>, vector<64x32xf32> -> vector<64x32xf32>
    %c0_36 = arith.constant 0 : index
    %c0_37 = arith.constant 0 : index
    %88 = vector.load %arg12[%c0_36, %c0_37] : memref<1x32xf32, #tpu.memory_space<vmem>>, vector<1x32xf32>
    %89 = vector.broadcast %88 : vector<1x32xf32> to vector<64x32xf32>
    %90 = arith.addf %87, %89 : vector<64x32xf32>
    %91 = arith.addf %78, %90 : vector<64x32xf32>
    %c0_38 = arith.constant 0 : index
    %c0_39 = arith.constant 0 : index
    %92 = vector.load %arg13[%c0_38, %c0_39] : memref<1x32xf32, #tpu.memory_space<vmem>>, vector<1x32xf32>
    %c0_40 = arith.constant 0 : index
    %c0_41 = arith.constant 0 : index
    %93 = vector.load %arg14[%c0_40, %c0_41] : memref<1x32xf32, #tpu.memory_space<vmem>>, vector<1x32xf32>
    %cst_42 = arith.constant dense<0.000000e+00> : vector<64xf32>
    %94 = vector.multi_reduction <add>, %91, %cst_42 [1] : vector<64x32xf32> to vector<64xf32>
    %95 = vector.shape_cast %94 : vector<64xf32> to vector<64x1xf32>
    %cst_43 = arith.constant 3.200000e+01 : f32
    %96 = vector.broadcast %cst_43 : f32 to vector<64x1xf32>
    %97 = arith.divf %95, %96 : vector<64x1xf32>
    %98 = vector.broadcast %97 : vector<64x1xf32> to vector<64x32xf32>
    %99 = arith.subf %91, %98 : vector<64x32xf32>
    %100 = arith.mulf %99, %99 : vector<64x32xf32>
    %cst_44 = arith.constant dense<0.000000e+00> : vector<64xf32>
    %101 = vector.multi_reduction <add>, %100, %cst_44 [1] : vector<64x32xf32> to vector<64xf32>
    %102 = vector.shape_cast %101 : vector<64xf32> to vector<64x1xf32>
    %cst_45 = arith.constant 3.200000e+01 : f32
    %103 = vector.broadcast %cst_45 : f32 to vector<64x1xf32>
    %104 = arith.divf %102, %103 : vector<64x1xf32>
    %cst_46 = arith.constant 9.99999974E-6 : f32
    %105 = vector.broadcast %cst_46 : f32 to vector<64x1xf32>
    %106 = arith.addf %104, %105 : vector<64x1xf32>
    %107 = math.rsqrt %106 : vector<64x1xf32>
    %108 = vector.broadcast %107 : vector<64x1xf32> to vector<64x32xf32>
    %109 = arith.mulf %99, %108 : vector<64x32xf32>
    %110 = vector.broadcast %92 : vector<1x32xf32> to vector<64x32xf32>
    %111 = arith.mulf %109, %110 : vector<64x32xf32>
    %112 = vector.broadcast %93 : vector<1x32xf32> to vector<64x32xf32>
    %113 = arith.addf %111, %112 : vector<64x32xf32>
    %114 = vector.shape_cast %113 : vector<64x32xf32> to vector<1x64x32xf32>
    %c0_47 = arith.constant 0 : index
    %c0_48 = arith.constant 0 : index
    %c0_49 = arith.constant 0 : index
    %115 = vector.load %arg15[%c0_47, %c0_48, %c0_49] : memref<1x64x32xf32, #tpu.memory_space<vmem>>, vector<1x64x32xf32>
    tpu.vector_store %arg15[%c0_47, %c0_48, %c0_49], %114 {strides = array<i32>} : memref<1x64x32xf32, #tpu.memory_space<vmem>>, vector<1x64x32xf32>,
    return
  }
  func.func @transform_0(%arg0: i32) -> (i32, i32, i32) {
    %c0_i32 = arith.constant 0 : i32
    %c0_i32_0 = arith.constant 0 : i32
    %c0_i32_1 = arith.constant 0 : i32
    return %arg0, %c0_i32, %c0_i32_0 : i32, i32, i32
  }
  func.func @transform_1(%arg0: i32) -> (i32, i32, i32) {
    %c0_i32 = arith.constant 0 : i32
    %c0_i32_0 = arith.constant 0 : i32
    %c0_i32_1 = arith.constant 0 : i32
    %c0_i32_2 = arith.constant 0 : i32
    return %c0_i32, %c0_i32_0, %c0_i32_1 : i32, i32, i32
  }
  func.func @transform_2(%arg0: i32) -> (i32, i32) {
    %c0_i32 = arith.constant 0 : i32
    %c0_i32_0 = arith.constant 0 : i32
    %c0_i32_1 = arith.constant 0 : i32
    return %c0_i32, %c0_i32_0 : i32, i32
  }
  func.func @transform_3(%arg0: i32) -> (i32, i32) {
    %c0_i32 = arith.constant 0 : i32
    %c0_i32_0 = arith.constant 0 : i32
    %c0_i32_1 = arith.constant 0 : i32
    return %c0_i32, %c0_i32_0 : i32, i32
  }
  func.func @transform_4(%arg0: i32) -> (i32, i32) {
    %c0_i32 = arith.constant 0 : i32
    %c0_i32_0 = arith.constant 0 : i32
    %c0_i32_1 = arith.constant 0 : i32
    return %c0_i32, %c0_i32_0 : i32, i32
  }
  func.func @transform_5(%arg0: i32) -> (i32, i32) {
    %c0_i32 = arith.constant 0 : i32
    %c0_i32_0 = arith.constant 0 : i32
    %c0_i32_1 = arith.constant 0 : i32
    return %c0_i32, %c0_i32_0 : i32, i32
  }
  func.func @transform_6(%arg0: i32) -> (i32, i32) {
    %c0_i32 = arith.constant 0 : i32
    %c0_i32_0 = arith.constant 0 : i32
    %c0_i32_1 = arith.constant 0 : i32
    return %c0_i32, %c0_i32_0 : i32, i32
  }
  func.func @transform_7(%arg0: i32) -> (i32, i32) {
    %c0_i32 = arith.constant 0 : i32
    %c0_i32_0 = arith.constant 0 : i32
    %c0_i32_1 = arith.constant 0 : i32
    return %c0_i32, %c0_i32_0 : i32, i32
  }
  func.func @transform_8(%arg0: i32) -> (i32, i32) {
    %c0_i32 = arith.constant 0 : i32
    %c0_i32_0 = arith.constant 0 : i32
    %c0_i32_1 = arith.constant 0 : i32
    return %c0_i32, %c0_i32_0 : i32, i32
  }
  func.func @transform_9(%arg0: i32) -> (i32, i32) {
    %c0_i32 = arith.constant 0 : i32
    %c0_i32_0 = arith.constant 0 : i32
    %c0_i32_1 = arith.constant 0 : i32
    return %c0_i32, %c0_i32_0 : i32, i32
  }
  func.func @transform_10(%arg0: i32) -> (i32, i32) {
    %c0_i32 = arith.constant 0 : i32
    %c0_i32_0 = arith.constant 0 : i32
    %c0_i32_1 = arith.constant 0 : i32
    return %c0_i32, %c0_i32_0 : i32, i32
  }
  func.func @transform_11(%arg0: i32) -> (i32, i32) {
    %c0_i32 = arith.constant 0 : i32
    %c0_i32_0 = arith.constant 0 : i32
    %c0_i32_1 = arith.constant 0 : i32
    return %c0_i32, %c0_i32_0 : i32, i32
  }
  func.func @transform_12(%arg0: i32) -> (i32, i32) {
    %c0_i32 = arith.constant 0 : i32
    %c0_i32_0 = arith.constant 0 : i32
    %c0_i32_1 = arith.constant 0 : i32
    return %c0_i32, %c0_i32_0 : i32, i32
  }
  func.func @transform_13(%arg0: i32) -> (i32, i32) {
    %c0_i32 = arith.constant 0 : i32
    %c0_i32_0 = arith.constant 0 : i32
    %c0_i32_1 = arith.constant 0 : i32
    return %c0_i32, %c0_i32_0 : i32, i32
  }
  func.func @transform_14(%arg0: i32) -> (i32, i32, i32) {
    %c0_i32 = arith.constant 0 : i32
    %c0_i32_0 = arith.constant 0 : i32
    %c0_i32_1 = arith.constant 0 : i32
    return %arg0, %c0_i32, %c0_i32_0 : i32, i32, i32
  }
}

</mosaic_0001>

<llo_original>
// kernel: tpu_custom_call.1
$region0: #{tpu_custom_call.1}
  #allocation0 [shape = 'u32[]', space=smem, size = 0x4, offset = 0x4, fixed_abs, tag = 'smem constant byte address 0x4 - core index']
  #allocation1 [shape = 'u32[144,128]{1,0:T(1,128)}', space=vmem, size = 0x12000, scoped, tag = 'internal scratch']
  %s0 = inlined_call_operand.vmem [shape: f32[2,64,32], index: 0, kind: input, shape index: {}]
  %s1 = inlined_call_operand.vmem [shape: f32[4,1,32], index: 1, kind: input, shape index: {}]
  %s2 = inlined_call_operand.vmem [shape: f32[32,96], index: 2, kind: input, shape index: {}]
  %s3 = inlined_call_operand.vmem [shape: f32[1,96], index: 3, kind: input, shape index: {}]
  %s4 = inlined_call_operand.vmem [shape: f32[32,32], index: 4, kind: input, shape index: {}]
  %s5 = inlined_call_operand.vmem [shape: f32[1,32], index: 5, kind: input, shape index: {}]
  %s6 = inlined_call_operand.vmem [shape: f32[1,32], index: 6, kind: input, shape index: {}]
  %s7 = inlined_call_operand.vmem [shape: f32[1,32], index: 7, kind: input, shape index: {}]
  %s8 = inlined_call_operand.vmem [shape: f32[32,2048], index: 8, kind: input, shape index: {}]
  %s9 = inlined_call_operand.vmem [shape: f32[1,2048], index: 9, kind: input, shape index: {}]
  %s10 = inlined_call_operand.vmem [shape: f32[2048,32], index: 10, kind: input, shape index: {}]
  %s11 = inlined_call_operand.vmem [shape: f32[1,32], index: 11, kind: input, shape index: {}]
  %s12 = inlined_call_operand.vmem [shape: f32[1,32], index: 12, kind: input, shape index: {}]
  %s13 = inlined_call_operand.vmem [shape: f32[1,32], index: 13, kind: input, shape index: {}]
  %s14 = inlined_call_operand.vmem [shape: f32[2,64,32], index: 14, kind: output, shape index: {}]
  %s15 = sld [smem:[#allocation0]]
  $region89: #{tpu_custom_call.1} parent=0
    _
  %s17 = ssub.s32 1, %s15
  %s18 = scalar_select 0, %s17, %s15
  loop: start=0, step=1, limit=4
  $region2: #{tpu_custom_call.1} parent=0 // loop_pre_header
    _
  $region3: #{tpu_custom_call.1} parent=0 // loop_header
    %s20 = sphi 0, %s24
    %p21 = scmp.ge.s32.totalorder %s20, 4
    %s30 = sphi 0, %s32
    %s33 = sphi 0, %s30
    %s34 = sphi 0, %s33
    %s50 = sphi 0, %s34
    %s54 = sphi 0, %s54
    %s56 = sphi 0, %s54
    %s57 = sphi 0, %s56
    %s71 = sphi 0, %s57
    %s75 = sphi 0, %s75
    %s77 = sphi 0, %s75
    %s78 = sphi 0, %s77
    %s92 = sphi 0, %s78
    %s96 = sphi 0, %s96
    %s98 = sphi 0, %s96
    %s99 = sphi 0, %s98
    %s113 = sphi 0, %s99
    %s117 = sphi 0, %s117
    %s119 = sphi 0, %s117
    %s120 = sphi 0, %s119
    %s134 = sphi 0, %s120
    %s138 = sphi 0, %s138
    %s140 = sphi 0, %s138
    %s141 = sphi 0, %s140
    %s155 = sphi 0, %s141
    %s159 = sphi 0, %s159
    %s161 = sphi 0, %s159
    %s162 = sphi 0, %s161
    %s176 = sphi 0, %s162
    %s180 = sphi 0, %s180
    %s182 = sphi 0, %s180
    %s183 = sphi 0, %s182
    %s197 = sphi 0, %s183
    %s201 = sphi 0, %s201
    %s203 = sphi 0, %s201
    %s204 = sphi 0, %s203
    %s218 = sphi 0, %s204
    %s222 = sphi 0, %s222
    %s224 = sphi 0, %s222
    %s225 = sphi 0, %s224
    %s239 = sphi 0, %s225
    %s243 = sphi 0, %s243
    %s245 = sphi 0, %s243
    %s246 = sphi 0, %s245
    %s260 = sphi 0, %s246
    %s264 = sphi 0, %s264
    %s266 = sphi 0, %s264
    %s267 = sphi 0, %s266
    %s281 = sphi 0, %s267
    %s285 = sphi 0, %s285
    %s287 = sphi 0, %s285
    %s288 = sphi 0, %s287
    %s302 = sphi 0, %s288
    %s306 = sphi 0, %s306
    %s308 = sphi 0, %s306
    %s309 = sphi 0, %s308
    %s323 = sphi 0, %s309
    %s329 = sphi 0, %s331
    %s332 = sphi 0, %s329
    %s333 = sphi 0, %s332
    %s349 = sphi 0, %s333
  $region4: #{tpu_custom_call.1} parent=0 // loop_header_branch
    %23 = sbr.rel (%p21) target = $region8
  $region5: #{tpu_custom_call.1} parent=0 // loop_body
    %s25 = ssub.s32 %s20, 1
    %s26 = ssub.s32 %s20, 2
    %s27 = sadd.s32 %s20, 1
    %s28 = ssub.s32 %s20, %s27
    %p29 = scmp.eq.s32.totalorder %s28, 0
    %s31 = sadd.s32 %s30, 1
    %s32 = scalar_select %p29, %s30, %s31
    %p35 = pneg %p29
    %p36 = scmp.eq.s32.totalorder %s20, 1
    %p37 = por %p35, %p36
    %p38 = scmp.ne.s32.totalorder %s30, %s33
    %p39 = scmp.eq.s32.totalorder %s20, 0
    %p40 = por %p38, %p39
    %p41 = scmp.ne.s32.totalorder %s30, %s33
    %p42 = scmp.eq.s32.totalorder %s25, 1
    %p43 = por %p41, %p42
    %p44 = scmp.ne.s32.totalorder %s33, %s34
    %p45 = scmp.eq.s32.totalorder %s25, 0
    %p46 = por %p44, %p45
    %p47 = scmp.ne.s32.totalorder %s33, %s34
    %p48 = scmp.eq.s32.totalorder %s26, 1
    %p49 = por %p47, %p48
    %p51 = scmp.ne.s32.totalorder %s34, %s50
    %p52 = scmp.eq.s32.totalorder %s26, 0
    %p53 = por %p51, %p52
    %s55 = sadd.s32 %s54, 1
    %p58 = scmp.eq.s32.totalorder %s20, 1
    %p59 = scmp.ne.s32.totalorder %s54, %s56
    %p60 = scmp.eq.s32.totalorder %s20, 0
    %p61 = por %p59, %p60
    %p62 = scmp.ne.s32.totalorder %s54, %s56
    %p63 = scmp.eq.s32.totalorder %s25, 1
    %p64 = por %p62, %p63
    %p65 = scmp.ne.s32.totalorder %s56, %s57
    %p66 = scmp.eq.s32.totalorder %s25, 0
    %p67 = por %p65, %p66
    %p68 = scmp.ne.s32.totalorder %s56, %s57
    %p69 = scmp.eq.s32.totalorder %s26, 1
    %p70 = por %p68, %p69
    %p72 = scmp.ne.s32.totalorder %s57, %s71
    %p73 = scmp.eq.s32.totalorder %s26, 0
    %p74 = por %p72, %p73
    %s76 = sadd.s32 %s75, 1
    %p79 = scmp.eq.s32.totalorder %s20, 1
    %p80 = scmp.ne.s32.totalorder %s75, %s77
    %p81 = scmp.eq.s32.totalorder %s20, 0
    %p82 = por %p80, %p81
    %p83 = scmp.ne.s32.totalorder %s75, %s77
    %p84 = scmp.eq.s32.totalorder %s25, 1
    %p85 = por %p83, %p84
    %p86 = scmp.ne.s32.totalorder %s77, %s78
    %p87 = scmp.eq.s32.totalorder %s25, 0
    %p88 = por %p86, %p87
    %p89 = scmp.ne.s32.totalorder %s77, %s78
    %p90 = scmp.eq.s32.totalorder %s26, 1
    %p91 = por %p89, %p90
    %p93 = scmp.ne.s32.totalorder %s78, %s92
    %p94 = scmp.eq.s32.totalorder %s26, 0
    %p95 = por %p93, %p94
    %s97 = sadd.s32 %s96, 1
    %p100 = scmp.eq.s32.totalorder %s20, 1
    %p101 = scmp.ne.s32.totalorder %s96, %s98
    %p102 = scmp.eq.s32.totalorder %s20, 0
    %p103 = por %p101, %p102
    %p104 = scmp.ne.s32.totalorder %s96, %s98
    %p105 = scmp.eq.s32.totalorder %s25, 1
    %p106 = por %p104, %p105
    %p107 = scmp.ne.s32.totalorder %s98, %s99
    %p108 = scmp.eq.s32.totalorder %s25, 0
    %p109 = por %p107, %p108
    %p110 = scmp.ne.s32.totalorder %s98, %s99
    %p111 = scmp.eq.s32.totalorder %s26, 1
    %p112 = por %p110, %p111
    %p114 = scmp.ne.s32.totalorder %s99, %s113
    %p115 = scmp.eq.s32.totalorder %s26, 0
    %p116 = por %p114, %p115
    %s118 = sadd.s32 %s117, 1
    %p121 = scmp.eq.s32.totalorder %s20, 1
    %p122 = scmp.ne.s32.totalorder %s117, %s119
    %p123 = scmp.eq.s32.totalorder %s20, 0
    %p124 = por %p122, %p123
    %p125 = scmp.ne.s32.totalorder %s117, %s119
    %p126 = scmp.eq.s32.totalorder %s25, 1
    %p127 = por %p125, %p126
    %p128 = scmp.ne.s32.totalorder %s119, %s120
    %p129 = scmp.eq.s32.totalorder %s25, 0
    %p130 = por %p128, %p129
    %p131 = scmp.ne.s32.totalorder %s119, %s120
    %p132 = scmp.eq.s32.totalorder %s26, 1
    %p133 = por %p131, %p132
    %p135 = scmp.ne.s32.totalorder %s120, %s134
    %p136 = scmp.eq.s32.totalorder %s26, 0
    %p137 = por %p135, %p136
    %s139 = sadd.s32 %s138, 1
    %p142 = scmp.eq.s32.totalorder %s20, 1
    %p143 = scmp.ne.s32.totalorder %s138, %s140
    %p144 = scmp.eq.s32.totalorder %s20, 0
    %p145 = por %p143, %p144
    %p146 = scmp.ne.s32.totalorder %s138, %s140
    %p147 = scmp.eq.s32.totalorder %s25, 1
    %p148 = por %p146, %p147
    %p149 = scmp.ne.s32.totalorder %s140, %s141
    %p150 = scmp.eq.s32.totalorder %s25, 0
    %p151 = por %p149, %p150
    %p152 = scmp.ne.s32.totalorder %s140, %s141
    %p153 = scmp.eq.s32.totalorder %s26, 1
    %p154 = por %p152, %p153
    %p156 = scmp.ne.s32.totalorder %s141, %s155
    %p157 = scmp.eq.s32.totalorder %s26, 0
    %p158 = por %p156, %p157
    %s160 = sadd.s32 %s159, 1
    %p163 = scmp.eq.s32.totalorder %s20, 1
    %p164 = scmp.ne.s32.totalorder %s159, %s161
    %p165 = scmp.eq.s32.totalorder %s20, 0
    %p166 = por %p164, %p165
    %p167 = scmp.ne.s32.totalorder %s159, %s161
    %p168 = scmp.eq.s32.totalorder %s25, 1
    %p169 = por %p167, %p168
    %p170 = scmp.ne.s32.totalorder %s161, %s162
    %p171 = scmp.eq.s32.totalorder %s25, 0
    %p172 = por %p170, %p171
    %p173 = scmp.ne.s32.totalorder %s161, %s162
    %p174 = scmp.eq.s32.totalorder %s26, 1
    %p175 = por %p173, %p174
    %p177 = scmp.ne.s32.totalorder %s162, %s176
    %p178 = scmp.eq.s32.totalorder %s26, 0
    %p179 = por %p177, %p178
    %s181 = sadd.s32 %s180, 1
    %p184 = scmp.eq.s32.totalorder %s20, 1
    %p185 = scmp.ne.s32.totalorder %s180, %s182
    %p186 = scmp.eq.s32.totalorder %s20, 0
    %p187 = por %p185, %p186
    %p188 = scmp.ne.s32.totalorder %s180, %s182
    %p189 = scmp.eq.s32.totalorder %s25, 1
    %p190 = por %p188, %p189
    %p191 = scmp.ne.s32.totalorder %s182, %s183
    %p192 = scmp.eq.s32.totalorder %s25, 0
    %p193 = por %p191, %p192
    %p194 = scmp.ne.s32.totalorder %s182, %s183
    %p195 = scmp.eq.s32.totalorder %s26, 1
    %p196 = por %p194, %p195
    %p198 = scmp.ne.s32.totalorder %s183, %s197
    %p199 = scmp.eq.s32.totalorder %s26, 0
    %p200 = por %p198, %p199
    %s202 = sadd.s32 %s201, 1
    %p205 = scmp.eq.s32.totalorder %s20, 1
    %p206 = scmp.ne.s32.totalorder %s201, %s203
    %p207 = scmp.eq.s32.totalorder %s20, 0
    %p208 = por %p206, %p207
    %p209 = scmp.ne.s32.totalorder %s201, %s203
    %p210 = scmp.eq.s32.totalorder %s25, 1
    %p211 = por %p209, %p210
    %p212 = scmp.ne.s32.totalorder %s203, %s204
    %p213 = scmp.eq.s32.totalorder %s25, 0
    %p214 = por %p212, %p213
    %p215 = scmp.ne.s32.totalorder %s203, %s204
    %p216 = scmp.eq.s32.totalorder %s26, 1
    %p217 = por %p215, %p216
    %p219 = scmp.ne.s32.totalorder %s204, %s218
    %p220 = scmp.eq.s32.totalorder %s26, 0
    %p221 = por %p219, %p220
    %s223 = sadd.s32 %s222, 1
    %p226 = scmp.eq.s32.totalorder %s20, 1
    %p227 = scmp.ne.s32.totalorder %s222, %s224
    %p228 = scmp.eq.s32.totalorder %s20, 0
    %p229 = por %p227, %p228
    %p230 = scmp.ne.s32.totalorder %s222, %s224
    %p231 = scmp.eq.s32.totalorder %s25, 1
    %p232 = por %p230, %p231
    %p233 = scmp.ne.s32.totalorder %s224, %s225
    %p234 = scmp.eq.s32.totalorder %s25, 0
    %p235 = por %p233, %p234
    %p236 = scmp.ne.s32.totalorder %s224, %s225
    %p237 = scmp.eq.s32.totalorder %s26, 1
    %p238 = por %p236, %p237
    %p240 = scmp.ne.s32.totalorder %s225, %s239
    %p241 = scmp.eq.s32.totalorder %s26, 0
    %p242 = por %p240, %p241
    %s244 = sadd.s32 %s243, 1
    %p247 = scmp.eq.s32.totalorder %s20, 1
    %p248 = scmp.ne.s32.totalorder %s243, %s245
    %p249 = scmp.eq.s32.totalorder %s20, 0
    %p250 = por %p248, %p249
    %p251 = scmp.ne.s32.totalorder %s243, %s245
    %p252 = scmp.eq.s32.totalorder %s25, 1
    %p253 = por %p251, %p252
    %p254 = scmp.ne.s32.totalorder %s245, %s246
    %p255 = scmp.eq.s32.totalorder %s25, 0
    %p256 = por %p254, %p255
    %p257 = scmp.ne.s32.totalorder %s245, %s246
    %p258 = scmp.eq.s32.totalorder %s26, 1
    %p259 = por %p257, %p258
    %p261 = scmp.ne.s32.totalorder %s246, %s260
    %p262 = scmp.eq.s32.totalorder %s26, 0
    %p263 = por %p261, %p262
    %s265 = sadd.s32 %s264, 1
    %p268 = scmp.eq.s32.totalorder %s20, 1
    %p269 = scmp.ne.s32.totalorder %s264, %s266
    %p270 = scmp.eq.s32.totalorder %s20, 0
    %p271 = por %p269, %p270
    %p272 = scmp.ne.s32.totalorder %s264, %s266
    %p273 = scmp.eq.s32.totalorder %s25, 1
    %p274 = por %p272, %p273
    %p275 = scmp.ne.s32.totalorder %s266, %s267
    %p276 = scmp.eq.s32.totalorder %s25, 0
    %p277 = por %p275, %p276
    %p278 = scmp.ne.s32.totalorder %s266, %s267
    %p279 = scmp.eq.s32.totalorder %s26, 1
    %p280 = por %p278, %p279
    %p282 = scmp.ne.s32.totalorder %s267, %s281
    %p283 = scmp.eq.s32.totalorder %s26, 0
    %p284 = por %p282, %p283
    %s286 = sadd.s32 %s285, 1
    %p289 = scmp.eq.s32.totalorder %s20, 1
    %p290 = scmp.ne.s32.totalorder %s285, %s287
    %p291 = scmp.eq.s32.totalorder %s20, 0
    %p292 = por %p290, %p291
    %p293 = scmp.ne.s32.totalorder %s285, %s287
    %p294 = scmp.eq.s32.totalorder %s25, 1
    %p295 = por %p293, %p294
    %p296 = scmp.ne.s32.totalorder %s287, %s288
    %p297 = scmp.eq.s32.totalorder %s25, 0
    %p298 = por %p296, %p297
    %p299 = scmp.ne.s32.totalorder %s287, %s288
    %p300 = scmp.eq.s32.totalorder %s26, 1
    %p301 = por %p299, %p300
    %p303 = scmp.ne.s32.totalorder %s288, %s302
    %p304 = scmp.eq.s32.totalorder %s26, 0
    %p305 = por %p303, %p304
    %s307 = sadd.s32 %s306, 1
    %p310 = scmp.eq.s32.totalorder %s20, 1
    %p311 = scmp.ne.s32.totalorder %s306, %s308
    %p312 = scmp.eq.s32.totalorder %s20, 0
    %p313 = por %p311, %p312
    %p314 = scmp.ne.s32.totalorder %s306, %s308
    %p315 = scmp.eq.s32.totalorder %s25, 1
    %p316 = por %p314, %p315
    %p317 = scmp.ne.s32.totalorder %s308, %s309
    %p318 = scmp.eq.s32.totalorder %s25, 0
    %p319 = por %p317, %p318
    %p320 = scmp.ne.s32.totalorder %s308, %s309
    %p321 = scmp.eq.s32.totalorder %s26, 1
    %p322 = por %p320, %p321
    %p324 = scmp.ne.s32.totalorder %s309, %s323
    %p325 = scmp.eq.s32.totalorder %s26, 0
    %p326 = por %p324, %p325
    %s327 = ssub.s32 %s20, %s27
    %p328 = scmp.eq.s32.totalorder %s327, 0
    %s330 = sadd.s32 %s329, 1
    %s331 = scalar_select %p328, %s329, %s330
    %p334 = pneg %p328
    %p335 = scmp.eq.s32.totalorder %s20, 1
    %p336 = por %p334, %p335
    %p337 = scmp.ne.s32.totalorder %s329, %s332
    %p338 = scmp.eq.s32.totalorder %s20, 0
    %p339 = por %p337, %p338
    %p340 = scmp.ne.s32.totalorder %s329, %s332
    %p341 = scmp.eq.s32.totalorder %s25, 1
    %p342 = por %p340, %p341
    %p343 = scmp.ne.s32.totalorder %s332, %s333
    %p344 = scmp.eq.s32.totalorder %s25, 0
    %p345 = por %p343, %p344
    %p346 = scmp.ne.s32.totalorder %s332, %s333
    %p347 = scmp.eq.s32.totalorder %s26, 1
    %p348 = por %p346, %p347
    %p350 = scmp.ne.s32.totalorder %s333, %s349
    %p351 = scmp.eq.s32.totalorder %s26, 0
    %p352 = por %p350, %p351
    %p353 = scmp.le.s32.totalorder 1, %s20
    %p354 = scmp.lt.s32.totalorder %s20, 3
    %p355 = pnand %p353, %p354
    %p356 = pneg %p355
    // Predicated region
    $region9: #{tpu_custom_call.1} parent=5 // pred_check
      _
    $region10: #{tpu_custom_call.1} parent=5 // pred_check_branch
      %358 = sbr.rel (%p355) target = $region12
    $region11: #{tpu_custom_call.1} parent=5 // pred_region
      %s359 = ssub.s32 %s20, 1
      // Predicated region
      $region13: #{tpu_custom_call.1} parent=11 // pred_check
        %p360 = pneg %p67
      $region14: #{tpu_custom_call.1} parent=11 // pred_check_branch
        %362 = sbr.rel (%p360) target = $region16
      $region15: #{tpu_custom_call.1} parent=11 // pred_region
        _
      $region16: #{tpu_custom_call.1} parent=11 // pred_fallthru
        _
      // Predicated region
      $region17: #{tpu_custom_call.1} parent=11 // pred_check
        %p363 = pneg %p88
      $region18: #{tpu_custom_call.1} parent=11 // pred_check_branch
        %365 = sbr.rel (%p363) target = $region20
      $region19: #{tpu_custom_call.1} parent=11 // pred_region
        _
      $region20: #{tpu_custom_call.1} parent=11 // pred_fallthru
        _
      // Predicated region
      $region21: #{tpu_custom_call.1} parent=11 // pred_check
        %p366 = pneg %p109
      $region22: #{tpu_custom_call.1} parent=11 // pred_check_branch
        %368 = sbr.rel (%p366) target = $region24
      $region23: #{tpu_custom_call.1} parent=11 // pred_region
        _
      $region24: #{tpu_custom_call.1} parent=11 // pred_fallthru
        _
      // Predicated region
      $region25: #{tpu_custom_call.1} parent=11 // pred_check
        %p369 = pneg %p130
      $region26: #{tpu_custom_call.1} parent=11 // pred_check_branch
        %371 = sbr.rel (%p369) target = $region28
      $region27: #{tpu_custom_call.1} parent=11 // pred_region
        _
      $region28: #{tpu_custom_call.1} parent=11 // pred_fallthru
        _
      // Predicated region
      $region29: #{tpu_custom_call.1} parent=11 // pred_check
        %p372 = pneg %p151
      $region30: #{tpu_custom_call.1} parent=11 // pred_check_branch
        %374 = sbr.rel (%p372) target = $region32
      $region31: #{tpu_custom_call.1} parent=11 // pred_region
        _
      $region32: #{tpu_custom_call.1} parent=11 // pred_fallthru
        _
      // Predicated region
      $region33: #{tpu_custom_call.1} parent=11 // pred_check
        %p375 = pneg %p172
      $region34: #{tpu_custom_call.1} parent=11 // pred_check_branch
        %377 = sbr.rel (%p375) target = $region36
      $region35: #{tpu_custom_call.1} parent=11 // pred_region
        _
      $region36: #{tpu_custom_call.1} parent=11 // pred_fallthru
        _
      // Predicated region
      $region37: #{tpu_custom_call.1} parent=11 // pred_check
        %p378 = pneg %p193
      $region38: #{tpu_custom_call.1} parent=11 // pred_check_branch
        %380 = sbr.rel (%p378) target = $region40
      $region39: #{tpu_custom_call.1} parent=11 // pred_region
        _
      $region40: #{tpu_custom_call.1} parent=11 // pred_fallthru
        _
      // Predicated region
      $region41: #{tpu_custom_call.1} parent=11 // pred_check
        %p381 = pneg %p214
      $region42: #{tpu_custom_call.1} parent=11 // pred_check_branch
        %383 = sbr.rel (%p381) target = $region44
      $region43: #{tpu_custom_call.1} parent=11 // pred_region
        _
      $region44: #{tpu_custom_call.1} parent=11 // pred_fallthru
        _
      // Predicated region
      $region45: #{tpu_custom_call.1} parent=11 // pred_check
        %p384 = pneg %p235
      $region46: #{tpu_custom_call.1} parent=11 // pred_check_branch
        %386 = sbr.rel (%p384) target = $region48
      $region47: #{tpu_custom_call.1} parent=11 // pred_region
        _
      $region48: #{tpu_custom_call.1} parent=11 // pred_fallthru
        _
      // Predicated region
      $region49: #{tpu_custom_call.1} parent=11 // pred_check
        %p387 = pneg %p256
      $region50: #{tpu_custom_call.1} parent=11 // pred_check_branch
        %389 = sbr.rel (%p387) target = $region52
      $region51: #{tpu_custom_call.1} parent=11 // pred_region
        _
      $region52: #{tpu_custom_call.1} parent=11 // pred_fallthru
        _
      // Predicated region
      $region53: #{tpu_custom_call.1} parent=11 // pred_check
        %p390 = pneg %p277
      $region54: #{tpu_custom_call.1} parent=11 // pred_check_branch
        %392 = sbr.rel (%p390) target = $region56
      $region55: #{tpu_custom_call.1} parent=11 // pred_region
        _
      $region56: #{tpu_custom_call.1} parent=11 // pred_fallthru
        _
      // Predicated region
      $region57: #{tpu_custom_call.1} parent=11 // pred_check
        %p393 = pneg %p298
      $region58: #{tpu_custom_call.1} parent=11 // pred_check_branch
        %395 = sbr.rel (%p393) target = $region60
      $region59: #{tpu_custom_call.1} parent=11 // pred_region
        _
      $region60: #{tpu_custom_call.1} parent=11 // pred_fallthru
        _
      // Predicated region
      $region61: #{tpu_custom_call.1} parent=11 // pred_check
        %p396 = pneg %p319
      $region62: #{tpu_custom_call.1} parent=11 // pred_check_branch
        %398 = sbr.rel (%p396) target = $region64
      $region63: #{tpu_custom_call.1} parent=11 // pred_region
        _
      $region64: #{tpu_custom_call.1} parent=11 // pred_fallthru
        _
    $region12: #{tpu_custom_call.1} parent=5 // pred_fallthru
      _
    %p399 = scmp.lt.s32.totalorder %s20, 2
    // Predicated region
    $region65: #{tpu_custom_call.1} parent=5 // pred_check
      %p400 = pneg %p399
    $region66: #{tpu_custom_call.1} parent=5 // pred_check_branch
      %402 = sbr.rel (%p400) target = $region68
    $region67: #{tpu_custom_call.1} parent=5 // pred_region
      // Predicated region
      $region69: #{tpu_custom_call.1} parent=67 // pred_check
        %p403 = pneg %p40
      $region70: #{tpu_custom_call.1} parent=67 // pred_check_branch
        %405 = sbr.rel (%p403) target = $region72
      $region71: #{tpu_custom_call.1} parent=67 // pred_region
        %p406 = scmp.lt.s32.totalorder %s20, 1
        %s407 = scalar_select %p406, %s20, 1
        %s408 = smul.addr %s407, 8
        %s409 = smul.addr %s408, 8
        %s410 = scalar_lea.vmem %s0, %s409
      $region72: #{tpu_custom_call.1} parent=67 // pred_fallthru
        _
    $region68: #{tpu_custom_call.1} parent=5 // pred_fallthru
      _
    %p411 = scmp.le.s32.totalorder 1, %s20
    %p412 = scmp.lt.s32.totalorder %s20, 3
    %p413 = pnand %p411, %p412
    %p414 = pneg %p413
    // Predicated region
    $region73: #{tpu_custom_call.1} parent=5 // pred_check
      _
    $region74: #{tpu_custom_call.1} parent=5 // pred_check_branch
      %416 = sbr.rel (%p413) target = $region76
    $region75: #{tpu_custom_call.1} parent=5 // pred_region
      %s417 = ssub.s32 %s20, 1
      %p418 = scmp.lt.s32.totalorder %s25, 1
      %s419 = scalar_select %p418, %s25, 1
      %s420 = smul.addr %s419, 8
      %s421 = smul.addr %s420, 8
      %s422 = scalar_lea.vmem %s0, %s421
      %p423 = pneg %p46
      %p424 = pneg %p43
      %p425 = pneg %p67
      %p426 = pneg %p64
      %p427 = pneg %p88
      %p428 = pneg %p85
      %p429 = pneg %p109
      %p430 = pneg %p106
      %p431 = pneg %p130
      %p432 = pneg %p127
      %p433 = pneg %p151
      %p434 = pneg %p148
      %p435 = pneg %p172
      %p436 = pneg %p169
      %p437 = pneg %p193
      %p438 = pneg %p190
      %p439 = pneg %p214
      %p440 = pneg %p211
      %p441 = pneg %p235
      %p442 = pneg %p232
      %p443 = pneg %p256
      %p444 = pneg %p253
      %p445 = pneg %p277
      %p446 = pneg %p274
      %p447 = pneg %p298
      %p448 = pneg %p295
      %p449 = pneg %p319
      %p450 = pneg %p316
      %p451 = pneg %p345
      %p452 = pneg %p342
      %p453 = scmp.lt.s32.totalorder %s25, 1
      %s454 = scalar_select %p453, %s25, 1
      %s455 = smul.addr %s454, 8
      %s456 = smul.addr %s455, 8
      %s457 = scalar_lea.vmem %s14, %s456
      %p458 = scmp.lt.s32.totalorder %s25, 1
      %s459 = scalar_select %p458, %s25, 1
      %s460 = smul.addr %s459, 8
      %s461 = smul.addr %s460, 8
      %s462 = scalar_lea.vmem %s0, %s461
      %p463 = scmp.lt.s32.totalorder %s25, 1
      %s464 = scalar_select %p463, %s25, 1
      %s465 = smul.addr %s464, 8
      %s466 = smul.addr %s465, 8
      %s467 = scalar_lea.vmem %s14, %s466
      %v468 = vld [vmem:[%s462] sm:$0xff]
      %v469 = vld [vmem:[%s462 + $0x8] sm:$0xff]
      %v470 = vld [vmem:[%s462 + $0x10] sm:$0xff]
      %v471 = vld [vmem:[%s462 + $0x18] sm:$0xff]
      %v472 = vld [vmem:[%s462 + $0x20] sm:$0xff]
      %v473 = vld [vmem:[%s462 + $0x28] sm:$0xff]
      %v474 = vld [vmem:[%s462 + $0x30] sm:$0xff]
      %v475 = vld [vmem:[%s462 + $0x38] sm:$0xff]
      %v476 = vld [vmem:[%s2] sm:$0xff]
      %v477 = vld [vmem:[%s2 + $0x8] sm:$0xff]
      %v478 = vld [vmem:[%s2 + $0x10] sm:$0xff]
      %v479 = vld [vmem:[%s2 + $0x18] sm:$0xff]
      %v480 = vld [vmem:[%s3] sm:$0x1]
      %v482 = vlaneseq
      %v483 = vshrl.u32 %v482, 7
      %v484 = vsub.s32 0, %v483
      %v485 = vrot.slane %v480, %v484
      %vm487 = vcmask 261120
      %v489 = vsel %vm487, %v468, 0
      %v492 = vsel %vm487, %v469, 0
      %v495 = vsel %vm487, %v470, 0
      %v498 = vsel %vm487, %v471, 0
      %v501 = vsel %vm487, %v472, 0
      %v504 = vsel %vm487, %v473, 0
      %v507 = vsel %vm487, %v474, 0
      %v510 = vsel %vm487, %v475, 0
      %512 = vmatprep.subr.mxu0 0.0
      %513 = vmatpush1.msra.mxu0 %v476
      %514 = vmatprep.subr.mxu0 0.0
      %515 = vmatpush1.msra.mxu0 %v477
      %516 = vmatprep.subr.mxu0 0.0
      %517 = vmatpush1.msra.mxu0 %v478
      %518 = vmatprep.subr.mxu0 0.0
      %519 = vmatpush1.msra.mxu0 %v479
      %520 = vmatprep.subr.mxu0 0.0
      %521 = vmatpush1.msra.mxu0 0.0
      %522 = vmatprep.subr.mxu0 0.0
      %523 = vmatpush1.msra.mxu0 0.0
      %524 = vmatprep.subr.mxu0 0.0
      %525 = vmatpush1.msra.mxu0 0.0
      %526 = vmatprep.subr.mxu0 0.0
      %527 = vmatpush1.msra.mxu0 0.0
      %528 = vmatprep.subr.mxu0 0.0
      %529 = vmatpush1.msra.mxu0 0.0
      %530 = vmatprep.subr.mxu0 0.0
      %531 = vmatpush1.msra.mxu0 0.0
      %532 = vmatprep.subr.mxu0 0.0
      %533 = vmatpush1.msra.mxu0 0.0
      %534 = vmatprep.subr.mxu0 0.0
      %535 = vmatpush1.msra.mxu0 0.0
      %536 = vmatprep.subr.mxu0 0.0
      %537 = vmatpush1.msra.mxu0 0.0
      %538 = vmatprep.subr.mxu0 0.0
      %539 = vmatpush1.msra.mxu0 0.0
      %540 = vmatprep.subr.mxu0 0.0
      %541 = vmatpush1.msra.mxu0 0.0
      %542 = vmatprep.subr.mxu0 0.0
      %543 = vmatpush1.msra.mxu0 0.0
      %544 = vmatprep.subr.mxu0 0.0
      %545 = vmatpush1.msra.mxu0 0.0
      %546 = vmatprep.subr.mxu0 0.0
      %547 = vmatpush1.msra.mxu0 0.0
      %548 = vmatprep.subr.mxu0 0.0
      %549 = vmatpush1.msra.mxu0 0.0
      %550 = vmatprep.subr.mxu0 0.0
      %551 = vmatpush1.msra.mxu0 0.0
      %552 = vmatprep.subr.mxu0 0.0
      %553 = vmatpush1.msra.mxu0 0.0
      %554 = vmatprep.subr.mxu0 0.0
      %555 = vmatpush1.msra.mxu0 0.0
      %556 = vmatprep.subr.mxu0 0.0
      %557 = vmatpush1.msra.mxu0 0.0
      %558 = vmatprep.subr.mxu0 0.0
      %559 = vmatpush1.msra.mxu0 0.0
      %560 = vmatprep.subr.mxu0 0.0
      %561 = vmatpush1.msra.mxu0 0.0
      %562 = vmatprep.subr.mxu0 0.0
      %563 = vmatpush1.msra.mxu0 0.0
      %564 = vmatprep.subr.mxu0 0.0
      %565 = vmatpush1.msra.mxu0 0.0
      %566 = vmatprep.subr.mxu0 0.0
      %567 = vmatpush1.msra.mxu0 0.0
      %568 = vmatprep.subr.mxu0 0.0
      %569 = vmatpush1.msra.mxu0 0.0
      %570 = vmatprep.subr.mxu0 0.0
      %571 = vmatpush1.msra.mxu0 0.0
      %572 = vmatprep.subr.mxu0 0.0
      %573 = vmatpush1.msra.mxu0 0.0
      %574 = vmatprep.subr.mxu0 0.0
      %575 = vmatpush1.msra.mxu0 0.0
      %576 = vmatprep.mubr.f32.mxu0 0.0
      %577 = vmatmul.mubr.f32.gmra.mrb[0].mxu0 %v489
      %v578 = vpop.f32.mrb[0].mxu0
      %v579 = vadd.f32 %v485, %v578
      %v580 = vpop.f32.mrb[0].mxu0
      %581 = vmatprep.mubr.f32.mxu0 0.0
      %582 = vmatmul.mubr.f32.gmra.mrb[0].mxu0 %v492
      %v583 = vpop.f32.mrb[0].mxu0
      %v584 = vadd.f32 %v485, %v583
      %v585 = vpop.f32.mrb[0].mxu0
      %586 = vmatprep.mubr.f32.mxu0 0.0
      %587 = vmatmul.mubr.f32.gmra.mrb[0].mxu0 %v495
      %v588 = vpop.f32.mrb[0].mxu0
      %v589 = vadd.f32 %v485, %v588
      %v590 = vpop.f32.mrb[0].mxu0
      %591 = vmatprep.mubr.f32.mxu0 0.0
      %592 = vmatmul.mubr.f32.gmra.mrb[0].mxu0 %v498
      %v593 = vpop.f32.mrb[0].mxu0
      %v594 = vadd.f32 %v485, %v593
      %v595 = vpop.f32.mrb[0].mxu0
      %596 = vmatprep.mubr.f32.mxu0 0.0
      %597 = vmatmul.mubr.f32.gmra.mrb[0].mxu0 %v501
      %v598 = vpop.f32.mrb[0].mxu0
      %v599 = vadd.f32 %v485, %v598
      %v600 = vpop.f32.mrb[0].mxu0
      %601 = vmatprep.mubr.f32.mxu0 0.0
      %602 = vmatmul.mubr.f32.gmra.mrb[0].mxu0 %v504
      %v603 = vpop.f32.mrb[0].mxu0
      %v604 = vadd.f32 %v485, %v603
      %v605 = vpop.f32.mrb[0].mxu0
      %606 = vmatprep.mubr.f32.mxu0 0.0
      %607 = vmatmul.mubr.f32.gmra.mrb[0].mxu0 %v507
      %v608 = vpop.f32.mrb[0].mxu0
      %v609 = vadd.f32 %v485, %v608
      %v610 = vpop.f32.mrb[0].mxu0
      %611 = vmatprep.mubr.f32.mxu0 0.0
      %612 = vmatmul.mubr.f32.gmra.mrb[0].mxu0 %v510
      %v613 = vpop.f32.mrb[0].mxu0
      %v614 = vadd.f32 %v485, %v613
      %v615 = vpop.f32.mrb[0].mxu0
      %616 = vdwg.mxu0
      %v617 = vld [vmem:[%s1] sm:$0x1]
      %v618 = vld [vmem:[%s1 + $0x1] sm:$0x1]
      %v619 = vld [vmem:[%s1 + $0x2] sm:$0x1]
      %v620 = vld [vmem:[%s1 + $0x3] sm:$0x1]
      %v625 = vlaneseq
      %v626 = vshrl.u32 %v625, 7
      %v627 = vsub.s32 0, %v626
      %v628 = vrot.slane %v617, %v627
      %v629 = vlaneseq
      %v630 = vshrl.u32 %v629, 7
      %v631 = vsub.s32 0, %v630
      %v632 = vrot.slane %v618, %v631
      %v633 = vlaneseq
      %v634 = vshrl.u32 %v633, 7
      %v635 = vsub.s32 0, %v634
      %v636 = vrot.slane %v619, %v635
      %v637 = vlaneseq
      %v638 = vshrl.u32 %v637, 7
      %v639 = vsub.s32 0, %v638
      %v640 = vrot.slane %v620, %v639
      %v645 = vmul.f32 %v579, %v628
      %v646 = vmul.f32 %v584, %v628
      %v647 = vmul.f32 %v589, %v628
      %v648 = vmul.f32 %v594, %v628
      %v649 = vmul.f32 %v599, %v628
      %v650 = vmul.f32 %v604, %v628
      %v651 = vmul.f32 %v609, %v628
      %v652 = vmul.f32 %v614, %v628
      %v653 = vmul.f32 %v579, %v632
      %v654 = vmul.f32 %v584, %v632
      %v655 = vmul.f32 %v589, %v632
      %v656 = vmul.f32 %v594, %v632
      %v657 = vmul.f32 %v599, %v632
      %v658 = vmul.f32 %v604, %v632
      %v659 = vmul.f32 %v609, %v632
      %v660 = vmul.f32 %v614, %v632
      %v661 = vmul.f32 %v579, %v636
      %v662 = vmul.f32 %v584, %v636
      %v663 = vmul.f32 %v589, %v636
      %v664 = vmul.f32 %v594, %v636
      %v665 = vmul.f32 %v599, %v636
      %v666 = vmul.f32 %v604, %v636
      %v667 = vmul.f32 %v609, %v636
      %v668 = vmul.f32 %v614, %v636
      %v669 = vmul.f32 %v579, %v640
      %v670 = vmul.f32 %v584, %v640
      %v671 = vmul.f32 %v589, %v640
      %v672 = vmul.f32 %v594, %v640
      %v673 = vmul.f32 %v599, %v640
      %v674 = vmul.f32 %v604, %v640
      %v675 = vmul.f32 %v609, %v640
      %v676 = vmul.f32 %v614, %v640
      %677 = vrot.lane.b32.xlu0 %v628, 64
      %v678 = vpop.permute.xlu0 %677
      %679 = vrot.lane.b32.xlu0 %v632, 64
      %v680 = vpop.permute.xlu0 %679
      %681 = vrot.lane.b32.xlu0 %v636, 64
      %v682 = vpop.permute.xlu0 %681
      %683 = vrot.lane.b32.xlu0 %v640, 64
      %v684 = vpop.permute.xlu0 %683
      %v689 = vmul.f32 %v579, %v678
      %v690 = vmul.f32 %v584, %v678
      %v691 = vmul.f32 %v589, %v678
      %v692 = vmul.f32 %v594, %v678
      %v693 = vmul.f32 %v599, %v678
      %v694 = vmul.f32 %v604, %v678
      %v695 = vmul.f32 %v609, %v678
      %v696 = vmul.f32 %v614, %v678
      %v697 = vmul.f32 %v579, %v680
      %v698 = vmul.f32 %v584, %v680
      %v699 = vmul.f32 %v589, %v680
      %v700 = vmul.f32 %v594, %v680
      %v701 = vmul.f32 %v599, %v680
      %v702 = vmul.f32 %v604, %v680
      %v703 = vmul.f32 %v609, %v680
      %v704 = vmul.f32 %v614, %v680
      %v705 = vmul.f32 %v579, %v682
      %v706 = vmul.f32 %v584, %v682
      %v707 = vmul.f32 %v589, %v682
      %v708 = vmul.f32 %v594, %v682
      %v709 = vmul.f32 %v599, %v682
      %v710 = vmul.f32 %v604, %v682
      %v711 = vmul.f32 %v609, %v682
      %v712 = vmul.f32 %v614, %v682
      %v713 = vmul.f32 %v579, %v684
      %v714 = vmul.f32 %v584, %v684
      %v715 = vmul.f32 %v589, %v684
      %v716 = vmul.f32 %v594, %v684
      %v717 = vmul.f32 %v599, %v684
      %v718 = vmul.f32 %v604, %v684
      %v719 = vmul.f32 %v609, %v684
      %v720 = vmul.f32 %v614, %v684
      %729 = vrot.lane.b32.xlu0 %v579, 96
      %v730 = vpop.permute.xlu0 %729
      %731 = vrot.lane.b32.xlu0 %v584, 96
      %v732 = vpop.permute.xlu0 %731
      %733 = vrot.lane.b32.xlu0 %v589, 96
      %v734 = vpop.permute.xlu0 %733
      %735 = vrot.lane.b32.xlu0 %v594, 96
      %v736 = vpop.permute.xlu0 %735
      %737 = vrot.lane.b32.xlu0 %v599, 96
      %v738 = vpop.permute.xlu0 %737
      %739 = vrot.lane.b32.xlu0 %v604, 96
      %v740 = vpop.permute.xlu0 %739
      %741 = vrot.lane.b32.xlu0 %v609, 96
      %v742 = vpop.permute.xlu0 %741
      %743 = vrot.lane.b32.xlu0 %v614, 96
      %v744 = vpop.permute.xlu0 %743
      %v746 = vsel %vm487, %v645, 0
      %v749 = vsel %vm487, %v646, 0
      %v752 = vsel %vm487, %v647, 0
      %v755 = vsel %vm487, %v648, 0
      %v758 = vsel %vm487, %v649, 0
      %v761 = vsel %vm487, %v650, 0
      %v764 = vsel %vm487, %v651, 0
      %v767 = vsel %vm487, %v652, 0
      %v769 = vsel %vm487, %v730, 0
      %v771 = vsel %vm487, %v732, 0
      %v773 = vsel %vm487, %v734, 0
      %v775 = vsel %vm487, %v736, 0
      %v777 = vsel %vm487, %v738, 0
      %v779 = vsel %vm487, %v740, 0
      %v781 = vsel %vm487, %v742, 0
      %v783 = vsel %vm487, %v744, 0
      %785 = vmatprep.subr.mxu0 0.0
      %786 = vmatpush1.xpose.msra.mxu0 %v769
      %787 = vmatprep.subr.mxu0 0.0
      %788 = vmatpush1.xpose.msra.mxu0 %v771
      %789 = vmatprep.subr.mxu0 0.0
      %790 = vmatpush1.xpose.msra.mxu0 %v773
      %791 = vmatprep.subr.mxu0 0.0
      %792 = vmatpush1.xpose.msra.mxu0 %v775
      %793 = vmatprep.subr.mxu0 0.0
      %794 = vmatpush1.xpose.msra.mxu0 %v777
      %795 = vmatprep.subr.mxu0 0.0
      %796 = vmatpush1.xpose.msra.mxu0 %v779
      %797 = vmatprep.subr.mxu0 0.0
      %798 = vmatpush1.xpose.msra.mxu0 %v781
      %799 = vmatprep.subr.mxu0 0.0
      %800 = vmatpush1.xpose.msra.mxu0 %v783
      %801 = vmatprep.subr.mxu0 0.0
      %802 = vmatpush1.xpose.msra.mxu0 0.0
      %803 = vmatprep.subr.mxu0 0.0
      %804 = vmatpush1.xpose.msra.mxu0 0.0
      %805 = vmatprep.subr.mxu0 0.0
      %806 = vmatpush1.xpose.msra.mxu0 0.0
      %807 = vmatprep.subr.mxu0 0.0
      %808 = vmatpush1.xpose.msra.mxu0 0.0
      %809 = vmatprep.subr.mxu0 0.0
      %810 = vmatpush1.xpose.msra.mxu0 0.0
      %811 = vmatprep.subr.mxu0 0.0
      %812 = vmatpush1.xpose.msra.mxu0 0.0
      %813 = vmatprep.subr.mxu0 0.0
      %814 = vmatpush1.xpose.msra.mxu0 0.0
      %815 = vmatprep.subr.mxu0 0.0
      %816 = vmatpush1.xpose.msra.mxu0 0.0
      %817 = vmatprep.subr.mxu0 0.0
      %818 = vmatpush1.xpose.msra.mxu0 0.0
      %819 = vmatprep.subr.mxu0 0.0
      %820 = vmatpush1.xpose.msra.mxu0 0.0
      %821 = vmatprep.subr.mxu0 0.0
      %822 = vmatpush1.xpose.msra.mxu0 0.0
      %823 = vmatprep.subr.mxu0 0.0
      %824 = vmatpush1.xpose.msra.mxu0 0.0
      %825 = vmatprep.subr.mxu0 0.0
      %826 = vmatpush1.xpose.msra.mxu0 0.0
      %827 = vmatprep.subr.mxu0 0.0
      %828 = vmatpush1.xpose.msra.mxu0 0.0
      %829 = vmatprep.subr.mxu0 0.0
      %830 = vmatpush1.xpose.msra.mxu0 0.0
      %831 = vmatprep.subr.mxu0 0.0
      %832 = vmatpush1.xpose.msra.mxu0 0.0
      %833 = vmatprep.subr.mxu0 0.0
      %834 = vmatpush1.xpose.msra.mxu0 0.0
      %835 = vmatprep.subr.mxu0 0.0
      %836 = vmatpush1.xpose.msra.mxu0 0.0
      %837 = vmatprep.subr.mxu0 0.0
      %838 = vmatpush1.xpose.msra.mxu0 0.0
      %839 = vmatprep.subr.mxu0 0.0
      %840 = vmatpush1.xpose.msra.mxu0 0.0
      %841 = vmatprep.subr.mxu0 0.0
      %842 = vmatpush1.xpose.msra.mxu0 0.0
      %843 = vmatprep.subr.mxu0 0.0
      %844 = vmatpush1.xpose.msra.mxu0 0.0
      %845 = vmatprep.subr.mxu0 0.0
      %846 = vmatpush1.xpose.msra.mxu0 0.0
      %847 = vmatprep.subr.mxu0 0.0
      %848 = vmatpush1.xpose.msra.mxu0 0.0
      %849 = vmatprep.mubr.f32.mxu0 0.0
      %850 = vmatmul.mubr.f32.gmra.mrb[0].mxu0 %v746
      %v851 = vpop.f32.mrb[0].mxu0
      %v852 = vadd.f32 0.0, %v851
      %v853 = vpop.f32.mrb[0].mxu0
      %854 = vmatprep.mubr.f32.mxu0 0.0
      %855 = vmatmul.mubr.f32.gmra.mrb[0].mxu0 %v749
      %v856 = vpop.f32.mrb[0].mxu0
      %v857 = vadd.f32 0.0, %v856
      %v858 = vpop.f32.mrb[0].mxu0
      %859 = vmatprep.mubr.f32.mxu0 0.0
      %860 = vmatmul.mubr.f32.gmra.mrb[0].mxu0 %v752
      %v861 = vpop.f32.mrb[0].mxu0
      %v862 = vadd.f32 0.0, %v861
      %v863 = vpop.f32.mrb[0].mxu0
      %864 = vmatprep.mubr.f32.mxu0 0.0
      %865 = vmatmul.mubr.f32.gmra.mrb[0].mxu0 %v755
      %v866 = vpop.f32.mrb[0].mxu0
      %v867 = vadd.f32 0.0, %v866
      %v868 = vpop.f32.mrb[0].mxu0
      %869 = vmatprep.mubr.f32.mxu0 0.0
      %870 = vmatmul.mubr.f32.gmra.mrb[0].mxu0 %v758
      %v871 = vpop.f32.mrb[0].mxu0
      %v872 = vadd.f32 0.0, %v871
      %v873 = vpop.f32.mrb[0].mxu0
      %874 = vmatprep.mubr.f32.mxu0 0.0
      %875 = vmatmul.mubr.f32.gmra.mrb[0].mxu0 %v761
      %v876 = vpop.f32.mrb[0].mxu0
      %v877 = vadd.f32 0.0, %v876
      %v878 = vpop.f32.mrb[0].mxu0
      %879 = vmatprep.mubr.f32.mxu0 0.0
      %880 = vmatmul.mubr.f32.gmra.mrb[0].mxu0 %v764
      %v881 = vpop.f32.mrb[0].mxu0
      %v882 = vadd.f32 0.0, %v881
      %v883 = vpop.f32.mrb[0].mxu0
      %884 = vmatprep.mubr.f32.mxu0 0.0
      %885 = vmatmul.mubr.f32.gmra.mrb[0].mxu0 %v767
      %v886 = vpop.f32.mrb[0].mxu0
      %v887 = vadd.f32 0.0, %v886
      %v888 = vpop.f32.mrb[0].mxu0
      %889 = vdwg.mxu0
      %v891 = vsel %vm487, %v653, 0
      %v894 = vsel %vm487, %v654, 0
      %v897 = vsel %vm487, %v655, 0
      %v900 = vsel %vm487, %v656, 0
      %v903 = vsel %vm487, %v657, 0
      %v906 = vsel %vm487, %v658, 0
      %v909 = vsel %vm487, %v659, 0
      %v912 = vsel %vm487, %v660, 0
      %914 = vmatprep.subr.mxu0 0.0
      %915 = vmatpush1.xpose.msra.mxu0 %v769
      %916 = vmatprep.subr.mxu0 0.0
      %917 = vmatpush1.xpose.msra.mxu0 %v771
      %918 = vmatprep.subr.mxu0 0.0
      %919 = vmatpush1.xpose.msra.mxu0 %v773
      %920 = vmatprep.subr.mxu0 0.0
      %921 = vmatpush1.xpose.msra.mxu0 %v775
      %922 = vmatprep.subr.mxu0 0.0
      %923 = vmatpush1.xpose.msra.mxu0 %v777
      %924 = vmatprep.subr.mxu0 0.0
      %925 = vmatpush1.xpose.msra.mxu0 %v779
      %926 = vmatprep.subr.mxu0 0.0
      %927 = vmatpush1.xpose.msra.mxu0 %v781
      %928 = vmatprep.subr.mxu0 0.0
      %929 = vmatpush1.xpose.msra.mxu0 %v783
      %930 = vmatprep.subr.mxu0 0.0
      %931 = vmatpush1.xpose.msra.mxu0 0.0
      %932 = vmatprep.subr.mxu0 0.0
      %933 = vmatpush1.xpose.msra.mxu0 0.0
      %934 = vmatprep.subr.mxu0 0.0
      %935 = vmatpush1.xpose.msra.mxu0 0.0
      %936 = vmatprep.subr.mxu0 0.0
      %937 = vmatpush1.xpose.msra.mxu0 0.0
      %938 = vmatprep.subr.mxu0 0.0
      %939 = vmatpush1.xpose.msra.mxu0 0.0
      %940 = vmatprep.subr.mxu0 0.0
      %941 = vmatpush1.xpose.msra.mxu0 0.0
      %942 = vmatprep.subr.mxu0 0.0
      %943 = vmatpush1.xpose.msra.mxu0 0.0
      %944 = vmatprep.subr.mxu0 0.0
      %945 = vmatpush1.xpose.msra.mxu0 0.0
      %946 = vmatprep.subr.mxu0 0.0
      %947 = vmatpush1.xpose.msra.mxu0 0.0
      %948 = vmatprep.subr.mxu0 0.0
      %949 = vmatpush1.xpose.msra.mxu0 0.0
      %950 = vmatprep.subr.mxu0 0.0
      %951 = vmatpush1.xpose.msra.mxu0 0.0
      %952 = vmatprep.subr.mxu0 0.0
      %953 = vmatpush1.xpose.msra.mxu0 0.0
      %954 = vmatprep.subr.mxu0 0.0
      %955 = vmatpush1.xpose.msra.mxu0 0.0
      %956 = vmatprep.subr.mxu0 0.0
      %957 = vmatpush1.xpose.msra.mxu0 0.0
      %958 = vmatprep.subr.mxu0 0.0
      %959 = vmatpush1.xpose.msra.mxu0 0.0
      %960 = vmatprep.subr.mxu0 0.0
      %961 = vmatpush1.xpose.msra.mxu0 0.0
      %962 = vmatprep.subr.mxu0 0.0
      %963 = vmatpush1.xpose.msra.mxu0 0.0
      %964 = vmatprep.subr.mxu0 0.0
      %965 = vmatpush1.xpose.msra.mxu0 0.0
      %966 = vmatprep.subr.mxu0 0.0
      %967 = vmatpush1.xpose.msra.mxu0 0.0
      %968 = vmatprep.subr.mxu0 0.0
      %969 = vmatpush1.xpose.msra.mxu0 0.0
      %970 = vmatprep.subr.mxu0 0.0
      %971 = vmatpush1.xpose.msra.mxu0 0.0
      %972 = vmatprep.subr.mxu0 0.0
      %973 = vmatpush1.xpose.msra.mxu0 0.0
      %974 = vmatprep.subr.mxu0 0.0
      %975 = vmatpush1.xpose.msra.mxu0 0.0
      %976 = vmatprep.subr.mxu0 0.0
      %977 = vmatpush1.xpose.msra.mxu0 0.0
      %978 = vmatprep.mubr.f32.mxu0 0.0
      %979 = vmatmul.mubr.f32.gmra.mrb[0].mxu0 %v891
      %v980 = vpop.f32.mrb[0].mxu0
      %v981 = vadd.f32 0.0, %v980
      %v982 = vpop.f32.mrb[0].mxu0
      %983 = vmatprep.mubr.f32.mxu0 0.0
      %984 = vmatmul.mubr.f32.gmra.mrb[0].mxu0 %v894
      %v985 = vpop.f32.mrb[0].mxu0
      %v986 = vadd.f32 0.0, %v985
      %v987 = vpop.f32.mrb[0].mxu0
      %988 = vmatprep.mubr.f32.mxu0 0.0
      %989 = vmatmul.mubr.f32.gmra.mrb[0].mxu0 %v897
      %v990 = vpop.f32.mrb[0].mxu0
      %v991 = vadd.f32 0.0, %v990
      %v992 = vpop.f32.mrb[0].mxu0
      %993 = vmatprep.mubr.f32.mxu0 0.0
      %994 = vmatmul.mubr.f32.gmra.mrb[0].mxu0 %v900
      %v995 = vpop.f32.mrb[0].mxu0
      %v996 = vadd.f32 0.0, %v995
      %v997 = vpop.f32.mrb[0].mxu0
      %998 = vmatprep.mubr.f32.mxu0 0.0
      %999 = vmatmul.mubr.f32.gmra.mrb[0].mxu0 %v903
      %v1000 = vpop.f32.mrb[0].mxu0
      %v1001 = vadd.f32 0.0, %v1000
      %v1002 = vpop.f32.mrb[0].mxu0
      %1003 = vmatprep.mubr.f32.mxu0 0.0
      %1004 = vmatmul.mubr.f32.gmra.mrb[0].mxu0 %v906
      %v1005 = vpop.f32.mrb[0].mxu0
      %v1006 = vadd.f32 0.0, %v1005
      %v1007 = vpop.f32.mrb[0].mxu0
      %1008 = vmatprep.mubr.f32.mxu0 0.0
      %1009 = vmatmul.mubr.f32.gmra.mrb[0].mxu0 %v909
      %v1010 = vpop.f32.mrb[0].mxu0
      %v1011 = vadd.f32 0.0, %v1010
      %v1012 = vpop.f32.mrb[0].mxu0
      %1013 = vmatprep.mubr.f32.mxu0 0.0
      %1014 = vmatmul.mubr.f32.gmra.mrb[0].mxu0 %v912
      %v1015 = vpop.f32.mrb[0].mxu0
      %v1016 = vadd.f32 0.0, %v1015
      %v1017 = vpop.f32.mrb[0].mxu0
      %1018 = vdwg.mxu0
      %v1020 = vsel %vm487, %v661, 0
      %v1023 = vsel %vm487, %v662, 0
      %v1026 = vsel %vm487, %v663, 0
      %v1029 = vsel %vm487, %v664, 0
      %v1032 = vsel %vm487, %v665, 0
      %v1035 = vsel %vm487, %v666, 0
      %v1038 = vsel %vm487, %v667, 0
      %v1041 = vsel %vm487, %v668, 0
      %1043 = vmatprep.subr.mxu0 0.0
      %1044 = vmatpush1.xpose.msra.mxu0 %v769
      %1045 = vmatprep.subr.mxu0 0.0
      %1046 = vmatpush1.xpose.msra.mxu0 %v771
      %1047 = vmatprep.subr.mxu0 0.0
      %1048 = vmatpush1.xpose.msra.mxu0 %v773
      %1049 = vmatprep.subr.mxu0 0.0
      %1050 = vmatpush1.xpose.msra.mxu0 %v775
      %1051 = vmatprep.subr.mxu0 0.0
      %1052 = vmatpush1.xpose.msra.mxu0 %v777
      %1053 = vmatprep.subr.mxu0 0.0
      %1054 = vmatpush1.xpose.msra.mxu0 %v779
      %1055 = vmatprep.subr.mxu0 0.0
      %1056 = vmatpush1.xpose.msra.mxu0 %v781
      %1057 = vmatprep.subr.mxu0 0.0
      %1058 = vmatpush1.xpose.msra.mxu0 %v783
      %1059 = vmatprep.subr.mxu0 0.0
      %1060 = vmatpush1.xpose.msra.mxu0 0.0
      %1061 = vmatprep.subr.mxu0 0.0
      %1062 = vmatpush1.xpose.msra.mxu0 0.0
      %1063 = vmatprep.subr.mxu0 0.0
      %1064 = vmatpush1.xpose.msra.mxu0 0.0
      %1065 = vmatprep.subr.mxu0 0.0
      %1066 = vmatpush1.xpose.msra.mxu0 0.0
      %1067 = vmatprep.subr.mxu0 0.0
      %1068 = vmatpush1.xpose.msra.mxu0 0.0
      %1069 = vmatprep.subr.mxu0 0.0
      %1070 = vmatpush1.xpose.msra.mxu0 0.0
      %1071 = vmatprep.subr.mxu0 0.0
      %1072 = vmatpush1.xpose.msra.mxu0 0.0
      %1073 = vmatprep.subr.mxu0 0.0
      %1074 = vmatpush1.xpose.msra.mxu0 0.0
      %1075 = vmatprep.subr.mxu0 0.0
      %1076 = vmatpush1.xpose.msra.mxu0 0.0
      %1077 = vmatprep.subr.mxu0 0.0
      %1078 = vmatpush1.xpose.msra.mxu0 0.0
      %1079 = vmatprep.subr.mxu0 0.0
      %1080 = vmatpush1.xpose.msra.mxu0 0.0
      %1081 = vmatprep.subr.mxu0 0.0
      %1082 = vmatpush1.xpose.msra.mxu0 0.0
      %1083 = vmatprep.subr.mxu0 0.0
      %1084 = vmatpush1.xpose.msra.mxu0 0.0
      %1085 = vmatprep.subr.mxu0 0.0
      %1086 = vmatpush1.xpose.msra.mxu0 0.0
      %1087 = vmatprep.subr.mxu0 0.0
      %1088 = vmatpush1.xpose.msra.mxu0 0.0
      %1089 = vmatprep.subr.mxu0 0.0
      %1090 = vmatpush1.xpose.msra.mxu0 0.0
      %1091 = vmatprep.subr.mxu0 0.0
      %1092 = vmatpush1.xpose.msra.mxu0 0.0
      %1093 = vmatprep.subr.mxu0 0.0
      %1094 = vmatpush1.xpose.msra.mxu0 0.0
      %1095 = vmatprep.subr.mxu0 0.0
      %1096 = vmatpush1.xpose.msra.mxu0 0.0
      %1097 = vmatprep.subr.mxu0 0.0
      %1098 = vmatpush1.xpose.msra.mxu0 0.0
      %1099 = vmatprep.subr.mxu0 0.0
      %1100 = vmatpush1.xpose.msra.mxu0 0.0
      %1101 = vmatprep.subr.mxu0 0.0
      %1102 = vmatpush1.xpose.msra.mxu0 0.0
      %1103 = vmatprep.subr.mxu0 0.0
      %1104 = vmatpush1.xpose.msra.mxu0 0.0
      %1105 = vmatprep.subr.mxu0 0.0
      %1106 = vmatpush1.xpose.msra.mxu0 0.0
      %1107 = vmatprep.mubr.f32.mxu0 0.0
      %1108 = vmatmul.mubr.f32.gmra.mrb[0].mxu0 %v1020
      %v1109 = vpop.f32.mrb[0].mxu0
      %v1110 = vadd.f32 0.0, %v1109
      %v1111 = vpop.f32.mrb[0].mxu0
      %1112 = vmatprep.mubr.f32.mxu0 0.0
      %1113 = vmatmul.mubr.f32.gmra.mrb[0].mxu0 %v1023
      %v1114 = vpop.f32.mrb[0].mxu0
      %v1115 = vadd.f32 0.0, %v1114
      %v1116 = vpop.f32.mrb[0].mxu0
      %1117 = vmatprep.mubr.f32.mxu0 0.0
      %1118 = vmatmul.mubr.f32.gmra.mrb[0].mxu0 %v1026
      %v1119 = vpop.f32.mrb[0].mxu0
      %v1120 = vadd.f32 0.0, %v1119
      %v1121 = vpop.f32.mrb[0].mxu0
      %1122 = vmatprep.mubr.f32.mxu0 0.0
      %1123 = vmatmul.mubr.f32.gmra.mrb[0].mxu0 %v1029
      %v1124 = vpop.f32.mrb[0].mxu0
      %v1125 = vadd.f32 0.0, %v1124
      %v1126 = vpop.f32.mrb[0].mxu0
      %1127 = vmatprep.mubr.f32.mxu0 0.0
      %1128 = vmatmul.mubr.f32.gmra.mrb[0].mxu0 %v1032
      %v1129 = vpop.f32.mrb[0].mxu0
      %v1130 = vadd.f32 0.0, %v1129
      %v1131 = vpop.f32.mrb[0].mxu0
      %1132 = vmatprep.mubr.f32.mxu0 0.0
      %1133 = vmatmul.mubr.f32.gmra.mrb[0].mxu0 %v1035
      %v1134 = vpop.f32.mrb[0].mxu0
      %v1135 = vadd.f32 0.0, %v1134
      %v1136 = vpop.f32.mrb[0].mxu0
      %1137 = vmatprep.mubr.f32.mxu0 0.0
      %1138 = vmatmul.mubr.f32.gmra.mrb[0].mxu0 %v1038
      %v1139 = vpop.f32.mrb[0].mxu0
      %v1140 = vadd.f32 0.0, %v1139
      %v1141 = vpop.f32.mrb[0].mxu0
      %1142 = vmatprep.mubr.f32.mxu0 0.0
      %1143 = vmatmul.mubr.f32.gmra.mrb[0].mxu0 %v1041
      %v1144 = vpop.f32.mrb[0].mxu0
      %v1145 = vadd.f32 0.0, %v1144
      %v1146 = vpop.f32.mrb[0].mxu0
      %1147 = vdwg.mxu0
      %v1149 = vsel %vm487, %v669, 0
      %v1152 = vsel %vm487, %v670, 0
      %v1155 = vsel %vm487, %v671, 0
      %v1158 = vsel %vm487, %v672, 0
      %v1161 = vsel %vm487, %v673, 0
      %v1164 = vsel %vm487, %v674, 0
      %v1167 = vsel %vm487, %v675, 0
      %v1170 = vsel %vm487, %v676, 0
      %1172 = vmatprep.subr.mxu0 0.0
      %1173 = vmatpush1.xpose.msra.mxu0 %v769
      %1174 = vmatprep.subr.mxu0 0.0
      %1175 = vmatpush1.xpose.msra.mxu0 %v771
      %1176 = vmatprep.subr.mxu0 0.0
      %1177 = vmatpush1.xpose.msra.mxu0 %v773
      %1178 = vmatprep.subr.mxu0 0.0
      %1179 = vmatpush1.xpose.msra.mxu0 %v775
      %1180 = vmatprep.subr.mxu0 0.0
      %1181 = vmatpush1.xpose.msra.mxu0 %v777
      %1182 = vmatprep.subr.mxu0 0.0
      %1183 = vmatpush1.xpose.msra.mxu0 %v779
      %1184 = vmatprep.subr.mxu0 0.0
      %1185 = vmatpush1.xpose.msra.mxu0 %v781
      %1186 = vmatprep.subr.mxu0 0.0
      %1187 = vmatpush1.xpose.msra.mxu0 %v783
      %1188 = vmatprep.subr.mxu0 0.0
      %1189 = vmatpush1.xpose.msra.mxu0 0.0
      %1190 = vmatprep.subr.mxu0 0.0
      %1191 = vmatpush1.xpose.msra.mxu0 0.0
      %1192 = vmatprep.subr.mxu0 0.0
      %1193 = vmatpush1.xpose.msra.mxu0 0.0
      %1194 = vmatprep.subr.mxu0 0.0
      %1195 = vmatpush1.xpose.msra.mxu0 0.0
      %1196 = vmatprep.subr.mxu0 0.0
      %1197 = vmatpush1.xpose.msra.mxu0 0.0
      %1198 = vmatprep.subr.mxu0 0.0
      %1199 = vmatpush1.xpose.msra.mxu0 0.0
      %1200 = vmatprep.subr.mxu0 0.0
      %1201 = vmatpush1.xpose.msra.mxu0 0.0
      %1202 = vmatprep.subr.mxu0 0.0
      %1203 = vmatpush1.xpose.msra.mxu0 0.0
      %1204 = vmatprep.subr.mxu0 0.0
      %1205 = vmatpush1.xpose.msra.mxu0 0.0
      %1206 = vmatprep.subr.mxu0 0.0
      %1207 = vmatpush1.xpose.msra.mxu0 0.0
      %1208 = vmatprep.subr.mxu0 0.0
      %1209 = vmatpush1.xpose.msra.mxu0 0.0
      %1210 = vmatprep.subr.mxu0 0.0
      %1211 = vmatpush1.xpose.msra.mxu0 0.0
      %1212 = vmatprep.subr.mxu0 0.0
      %1213 = vmatpush1.xpose.msra.mxu0 0.0
      %1214 = vmatprep.subr.mxu0 0.0
      %1215 = vmatpush1.xpose.msra.mxu0 0.0
      %1216 = vmatprep.subr.mxu0 0.0
      %1217 = vmatpush1.xpose.msra.mxu0 0.0
      %1218 = vmatprep.subr.mxu0 0.0
      %1219 = vmatpush1.xpose.msra.mxu0 0.0
      %1220 = vmatprep.subr.mxu0 0.0
      %1221 = vmatpush1.xpose.msra.mxu0 0.0
      %1222 = vmatprep.subr.mxu0 0.0
      %1223 = vmatpush1.xpose.msra.mxu0 0.0
      %1224 = vmatprep.subr.mxu0 0.0
      %1225 = vmatpush1.xpose.msra.mxu0 0.0
      %1226 = vmatprep.subr.mxu0 0.0
      %1227 = vmatpush1.xpose.msra.mxu0 0.0
      %1228 = vmatprep.subr.mxu0 0.0
      %1229 = vmatpush1.xpose.msra.mxu0 0.0
      %1230 = vmatprep.subr.mxu0 0.0
      %1231 = vmatpush1.xpose.msra.mxu0 0.0
      %1232 = vmatprep.subr.mxu0 0.0
      %1233 = vmatpush1.xpose.msra.mxu0 0.0
      %1234 = vmatprep.subr.mxu0 0.0
      %1235 = vmatpush1.xpose.msra.mxu0 0.0
      %1236 = vmatprep.mubr.f32.mxu0 0.0
      %1237 = vmatmul.mubr.f32.gmra.mrb[0].mxu0 %v1149
      %v1238 = vpop.f32.mrb[0].mxu0
      %v1239 = vadd.f32 0.0, %v1238
      %v1240 = vpop.f32.mrb[0].mxu0
      %1241 = vmatprep.mubr.f32.mxu0 0.0
      %1242 = vmatmul.mubr.f32.gmra.mrb[0].mxu0 %v1152
      %v1243 = vpop.f32.mrb[0].mxu0
      %v1244 = vadd.f32 0.0, %v1243
      %v1245 = vpop.f32.mrb[0].mxu0
      %1246 = vmatprep.mubr.f32.mxu0 0.0
      %1247 = vmatmul.mubr.f32.gmra.mrb[0].mxu0 %v1155
      %v1248 = vpop.f32.mrb[0].mxu0
      %v1249 = vadd.f32 0.0, %v1248
      %v1250 = vpop.f32.mrb[0].mxu0
      %1251 = vmatprep.mubr.f32.mxu0 0.0
      %1252 = vmatmul.mubr.f32.gmra.mrb[0].mxu0 %v1158
      %v1253 = vpop.f32.mrb[0].mxu0
      %v1254 = vadd.f32 0.0, %v1253
      %v1255 = vpop.f32.mrb[0].mxu0
      %1256 = vmatprep.mubr.f32.mxu0 0.0
      %1257 = vmatmul.mubr.f32.gmra.mrb[0].mxu0 %v1161
      %v1258 = vpop.f32.mrb[0].mxu0
      %v1259 = vadd.f32 0.0, %v1258
      %v1260 = vpop.f32.mrb[0].mxu0
      %1261 = vmatprep.mubr.f32.mxu0 0.0
      %1262 = vmatmul.mubr.f32.gmra.mrb[0].mxu0 %v1164
      %v1263 = vpop.f32.mrb[0].mxu0
      %v1264 = vadd.f32 0.0, %v1263
      %v1265 = vpop.f32.mrb[0].mxu0
      %1266 = vmatprep.mubr.f32.mxu0 0.0
      %1267 = vmatmul.mubr.f32.gmra.mrb[0].mxu0 %v1167
      %v1268 = vpop.f32.mrb[0].mxu0
      %v1269 = vadd.f32 0.0, %v1268
      %v1270 = vpop.f32.mrb[0].mxu0
      %1271 = vmatprep.mubr.f32.mxu0 0.0
      %1272 = vmatmul.mubr.f32.gmra.mrb[0].mxu0 %v1170
      %v1273 = vpop.f32.mrb[0].mxu0
      %v1274 = vadd.f32 0.0, %v1273
      %v1275 = vpop.f32.mrb[0].mxu0
      %1276 = vdwg.mxu0
      %vm1277 = vcmask 523264
      %v1278 = vsel %vm1277, %v852, -inf
      %1279 = vmax.xlane.f32.xlu0 %v1278
      %v1280 = vpop.xlane.xlu0 %1279
      %v1281 = vsel %vm1277, %v857, -inf
      %1282 = vmax.xlane.f32.xlu0 %v1281
      %v1283 = vpop.xlane.xlu0 %1282
      %v1284 = vsel %vm1277, %v862, -inf
      %1285 = vmax.xlane.f32.xlu0 %v1284
      %v1286 = vpop.xlane.xlu0 %1285
      %v1287 = vsel %vm1277, %v867, -inf
      %1288 = vmax.xlane.f32.xlu0 %v1287
      %v1289 = vpop.xlane.xlu0 %1288
      %v1290 = vsel %vm1277, %v872, -inf
      %1291 = vmax.xlane.f32.xlu0 %v1290
      %v1292 = vpop.xlane.xlu0 %1291
      %v1293 = vsel %vm1277, %v877, -inf
      %1294 = vmax.xlane.f32.xlu0 %v1293
      %v1295 = vpop.xlane.xlu0 %1294
      %v1296 = vsel %vm1277, %v882, -inf
      %1297 = vmax.xlane.f32.xlu0 %v1296
      %v1298 = vpop.xlane.xlu0 %1297
      %v1299 = vsel %vm1277, %v887, -inf
      %1300 = vmax.xlane.f32.xlu0 %v1299
      %v1301 = vpop.xlane.xlu0 %1300
      %v1302 = vsel %vm1277, %v981, -inf
      %1303 = vmax.xlane.f32.xlu0 %v1302
      %v1304 = vpop.xlane.xlu0 %1303
      %v1305 = vsel %vm1277, %v986, -inf
      %1306 = vmax.xlane.f32.xlu0 %v1305
      %v1307 = vpop.xlane.xlu0 %1306
      %v1308 = vsel %vm1277, %v991, -inf
      %1309 = vmax.xlane.f32.xlu0 %v1308
      %v1310 = vpop.xlane.xlu0 %1309
      %v1311 = vsel %vm1277, %v996, -inf
      %1312 = vmax.xlane.f32.xlu0 %v1311
      %v1313 = vpop.xlane.xlu0 %1312
      %v1314 = vsel %vm1277, %v1001, -inf
      %1315 = vmax.xlane.f32.xlu0 %v1314
      %v1316 = vpop.xlane.xlu0 %1315
      %v1317 = vsel %vm1277, %v1006, -inf
      %1318 = vmax.xlane.f32.xlu0 %v1317
      %v1319 = vpop.xlane.xlu0 %1318
      %v1320 = vsel %vm1277, %v1011, -inf
      %1321 = vmax.xlane.f32.xlu0 %v1320
      %v1322 = vpop.xlane.xlu0 %1321
      %v1323 = vsel %vm1277, %v1016, -inf
      %1324 = vmax.xlane.f32.xlu0 %v1323
      %v1325 = vpop.xlane.xlu0 %1324
      %v1326 = vsel %vm1277, %v1110, -inf
      %1327 = vmax.xlane.f32.xlu0 %v1326
      %v1328 = vpop.xlane.xlu0 %1327
      %v1329 = vsel %vm1277, %v1115, -inf
      %1330 = vmax.xlane.f32.xlu0 %v1329
      %v1331 = vpop.xlane.xlu0 %1330
      %v1332 = vsel %vm1277, %v1120, -inf
      %1333 = vmax.xlane.f32.xlu0 %v1332
      %v1334 = vpop.xlane.xlu0 %1333
      %v1335 = vsel %vm1277, %v1125, -inf
      %1336 = vmax.xlane.f32.xlu0 %v1335
      %v1337 = vpop.xlane.xlu0 %1336
      %v1338 = vsel %vm1277, %v1130, -inf
      %1339 = vmax.xlane.f32.xlu0 %v1338
      %v1340 = vpop.xlane.xlu0 %1339
      %v1341 = vsel %vm1277, %v1135, -inf
      %1342 = vmax.xlane.f32.xlu0 %v1341
      %v1343 = vpop.xlane.xlu0 %1342
      %v1344 = vsel %vm1277, %v1140, -inf
      %1345 = vmax.xlane.f32.xlu0 %v1344
      %v1346 = vpop.xlane.xlu0 %1345
      %v1347 = vsel %vm1277, %v1145, -inf
      %1348 = vmax.xlane.f32.xlu0 %v1347
      %v1349 = vpop.xlane.xlu0 %1348
      %v1350 = vsel %vm1277, %v1239, -inf
      %1351 = vmax.xlane.f32.xlu0 %v1350
      %v1352 = vpop.xlane.xlu0 %1351
      %v1353 = vsel %vm1277, %v1244, -inf
      %1354 = vmax.xlane.f32.xlu0 %v1353
      %v1355 = vpop.xlane.xlu0 %1354
      %v1356 = vsel %vm1277, %v1249, -inf
      %1357 = vmax.xlane.f32.xlu0 %v1356
      %v1358 = vpop.xlane.xlu0 %1357
      %v1359 = vsel %vm1277, %v1254, -inf
      %1360 = vmax.xlane.f32.xlu0 %v1359
      %v1361 = vpop.xlane.xlu0 %1360
      %v1362 = vsel %vm1277, %v1259, -inf
      %1363 = vmax.xlane.f32.xlu0 %v1362
      %v1364 = vpop.xlane.xlu0 %1363
      %v1365 = vsel %vm1277, %v1264, -inf
      %1366 = vmax.xlane.f32.xlu0 %v1365
      %v1367 = vpop.xlane.xlu0 %1366
      %v1368 = vsel %vm1277, %v1269, -inf
      %1369 = vmax.xlane.f32.xlu0 %v1368
      %v1370 = vpop.xlane.xlu0 %1369
      %v1371 = vsel %vm1277, %v1274, -inf
      %1372 = vmax.xlane.f32.xlu0 %v1371
      %v1373 = vpop.xlane.xlu0 %1372
      %v1374 = vsub.f32 %v852, %v1280
      %v1375 = vsub.f32 %v857, %v1283
      %v1376 = vsub.f32 %v862, %v1286
      %v1377 = vsub.f32 %v867, %v1289
      %v1378 = vsub.f32 %v872, %v1292
      %v1379 = vsub.f32 %v877, %v1295
      %v1380 = vsub.f32 %v882, %v1298
      %v1381 = vsub.f32 %v887, %v1301
      %v1382 = vsub.f32 %v981, %v1304
      %v1383 = vsub.f32 %v986, %v1307
      %v1384 = vsub.f32 %v991, %v1310
      %v1385 = vsub.f32 %v996, %v1313
      %v1386 = vsub.f32 %v1001, %v1316
      %v1387 = vsub.f32 %v1006, %v1319
      %v1388 = vsub.f32 %v1011, %v1322
      %v1389 = vsub.f32 %v1016, %v1325
      %v1390 = vsub.f32 %v1110, %v1328
      %v1391 = vsub.f32 %v1115, %v1331
      %v1392 = vsub.f32 %v1120, %v1334
      %v1393 = vsub.f32 %v1125, %v1337
      %v1394 = vsub.f32 %v1130, %v1340
      %v1395 = vsub.f32 %v1135, %v1343
      %v1396 = vsub.f32 %v1140, %v1346
      %v1397 = vsub.f32 %v1145, %v1349
      %v1398 = vsub.f32 %v1239, %v1352
      %v1399 = vsub.f32 %v1244, %v1355
      %v1400 = vsub.f32 %v1249, %v1358
      %v1401 = vsub.f32 %v1254, %v1361
      %v1402 = vsub.f32 %v1259, %v1364
      %v1403 = vsub.f32 %v1264, %v1367
      %v1404 = vsub.f32 %v1269, %v1370
      %v1405 = vsub.f32 %v1274, %v1373
      %v1406 = vmul.f32 %v1374, 1.442695
      %v1407 = vpow.pop %v1406
      %v1408 = vmul.f32 %v1375, 1.442695
      %v1409 = vpow.pop %v1408
      %v1410 = vmul.f32 %v1376, 1.442695
      %v1411 = vpow.pop %v1410
      %v1412 = vmul.f32 %v1377, 1.442695
      %v1413 = vpow.pop %v1412
      %v1414 = vmul.f32 %v1378, 1.442695
      %v1415 = vpow.pop %v1414
      %v1416 = vmul.f32 %v1379, 1.442695
      %v1417 = vpow.pop %v1416
      %v1418 = vmul.f32 %v1380, 1.442695
      %v1419 = vpow.pop %v1418
      %v1420 = vmul.f32 %v1381, 1.442695
      %v1421 = vpow.pop %v1420
      %v1422 = vmul.f32 %v1382, 1.442695
      %v1423 = vpow.pop %v1422
      %v1424 = vmul.f32 %v1383, 1.442695
      %v1425 = vpow.pop %v1424
      %v1426 = vmul.f32 %v1384, 1.442695
      %v1427 = vpow.pop %v1426
      %v1428 = vmul.f32 %v1385, 1.442695
      %v1429 = vpow.pop %v1428
      %v1430 = vmul.f32 %v1386, 1.442695
      %v1431 = vpow.pop %v1430
      %v1432 = vmul.f32 %v1387, 1.442695
      %v1433 = vpow.pop %v1432
      %v1434 = vmul.f32 %v1388, 1.442695
      %v1435 = vpow.pop %v1434
      %v1436 = vmul.f32 %v1389, 1.442695
      %v1437 = vpow.pop %v1436
      %v1438 = vmul.f32 %v1390, 1.442695
      %v1439 = vpow.pop %v1438
      %v1440 = vmul.f32 %v1391, 1.442695
      %v1441 = vpow.pop %v1440
      %v1442 = vmul.f32 %v1392, 1.442695
      %v1443 = vpow.pop %v1442
      %v1444 = vmul.f32 %v1393, 1.442695
      %v1445 = vpow.pop %v1444
      %v1446 = vmul.f32 %v1394, 1.442695
      %v1447 = vpow.pop %v1446
      %v1448 = vmul.f32 %v1395, 1.442695
      %v1449 = vpow.pop %v1448
      %v1450 = vmul.f32 %v1396, 1.442695
      %v1451 = vpow.pop %v1450
      %v1452 = vmul.f32 %v1397, 1.442695
      %v1453 = vpow.pop %v1452
      %v1454 = vmul.f32 %v1398, 1.442695
      %v1455 = vpow.pop %v1454
      %v1456 = vmul.f32 %v1399, 1.442695
      %v1457 = vpow.pop %v1456
      %v1458 = vmul.f32 %v1400, 1.442695
      %v1459 = vpow.pop %v1458
      %v1460 = vmul.f32 %v1401, 1.442695
      %v1461 = vpow.pop %v1460
      %v1462 = vmul.f32 %v1402, 1.442695
      %v1463 = vpow.pop %v1462
      %v1464 = vmul.f32 %v1403, 1.442695
      %v1465 = vpow.pop %v1464
      %v1466 = vmul.f32 %v1404, 1.442695
      %v1467 = vpow.pop %v1466
      %v1468 = vmul.f32 %v1405, 1.442695
      %v1469 = vpow.pop %v1468
      %v1470 = vsel %vm1277, %v1407, 0.0
      %1471 = vadd.xlane.f32.xlu0 %v1470
      %v1472 = vpop.xlane.xlu0 %1471
      %v1473 = vsel %vm1277, %v1409, 0.0
      %1474 = vadd.xlane.f32.xlu0 %v1473
      %v1475 = vpop.xlane.xlu0 %1474
      %v1476 = vsel %vm1277, %v1411, 0.0
      %1477 = vadd.xlane.f32.xlu0 %v1476
      %v1478 = vpop.xlane.xlu0 %1477
      %v1479 = vsel %vm1277, %v1413, 0.0
      %1480 = vadd.xlane.f32.xlu0 %v1479
      %v1481 = vpop.xlane.xlu0 %1480
      %v1482 = vsel %vm1277, %v1415, 0.0
      %1483 = vadd.xlane.f32.xlu0 %v1482
      %v1484 = vpop.xlane.xlu0 %1483
      %v1485 = vsel %vm1277, %v1417, 0.0
      %1486 = vadd.xlane.f32.xlu0 %v1485
      %v1487 = vpop.xlane.xlu0 %1486
      %v1488 = vsel %vm1277, %v1419, 0.0
      %1489 = vadd.xlane.f32.xlu0 %v1488
      %v1490 = vpop.xlane.xlu0 %1489
      %v1491 = vsel %vm1277, %v1421, 0.0
      %1492 = vadd.xlane.f32.xlu0 %v1491
      %v1493 = vpop.xlane.xlu0 %1492
      %v1494 = vsel %vm1277, %v1423, 0.0
      %1495 = vadd.xlane.f32.xlu0 %v1494
      %v1496 = vpop.xlane.xlu0 %1495
      %v1497 = vsel %vm1277, %v1425, 0.0
      %1498 = vadd.xlane.f32.xlu0 %v1497
      %v1499 = vpop.xlane.xlu0 %1498
      %v1500 = vsel %vm1277, %v1427, 0.0
      %1501 = vadd.xlane.f32.xlu0 %v1500
      %v1502 = vpop.xlane.xlu0 %1501
      %v1503 = vsel %vm1277, %v1429, 0.0
      %1504 = vadd.xlane.f32.xlu0 %v1503
      %v1505 = vpop.xlane.xlu0 %1504
      %v1506 = vsel %vm1277, %v1431, 0.0
      %1507 = vadd.xlane.f32.xlu0 %v1506
      %v1508 = vpop.xlane.xlu0 %1507
      %v1509 = vsel %vm1277, %v1433, 0.0
      %1510 = vadd.xlane.f32.xlu0 %v1509
      %v1511 = vpop.xlane.xlu0 %1510
      %v1512 = vsel %vm1277, %v1435, 0.0
      %1513 = vadd.xlane.f32.xlu0 %v1512
      %v1514 = vpop.xlane.xlu0 %1513
      %v1515 = vsel %vm1277, %v1437, 0.0
      %1516 = vadd.xlane.f32.xlu0 %v1515
      %v1517 = vpop.xlane.xlu0 %1516
      %v1518 = vsel %vm1277, %v1439, 0.0
      %1519 = vadd.xlane.f32.xlu0 %v1518
      %v1520 = vpop.xlane.xlu0 %1519
      %v1521 = vsel %vm1277, %v1441, 0.0
      %1522 = vadd.xlane.f32.xlu0 %v1521
      %v1523 = vpop.xlane.xlu0 %1522
      %v1524 = vsel %vm1277, %v1443, 0.0
      %1525 = vadd.xlane.f32.xlu0 %v1524
      %v1526 = vpop.xlane.xlu0 %1525
      %v1527 = vsel %vm1277, %v1445, 0.0
      %1528 = vadd.xlane.f32.xlu0 %v1527
      %v1529 = vpop.xlane.xlu0 %1528
      %v1530 = vsel %vm1277, %v1447, 0.0
      %1531 = vadd.xlane.f32.xlu0 %v1530
      %v1532 = vpop.xlane.xlu0 %1531
      %v1533 = vsel %vm1277, %v1449, 0.0
      %1534 = vadd.xlane.f32.xlu0 %v1533
      %v1535 = vpop.xlane.xlu0 %1534
      %v1536 = vsel %vm1277, %v1451, 0.0
      %1537 = vadd.xlane.f32.xlu0 %v1536
      %v1538 = vpop.xlane.xlu0 %1537
      %v1539 = vsel %vm1277, %v1453, 0.0
      %1540 = vadd.xlane.f32.xlu0 %v1539
      %v1541 = vpop.xlane.xlu0 %1540
      %v1542 = vsel %vm1277, %v1455, 0.0
      %1543 = vadd.xlane.f32.xlu0 %v1542
      %v1544 = vpop.xlane.xlu0 %1543
      %v1545 = vsel %vm1277, %v1457, 0.0
      %1546 = vadd.xlane.f32.xlu0 %v1545
      %v1547 = vpop.xlane.xlu0 %1546
      %v1548 = vsel %vm1277, %v1459, 0.0
      %1549 = vadd.xlane.f32.xlu0 %v1548
      %v1550 = vpop.xlane.xlu0 %1549
      %v1551 = vsel %vm1277, %v1461, 0.0
      %1552 = vadd.xlane.f32.xlu0 %v1551
      %v1553 = vpop.xlane.xlu0 %1552
      %v1554 = vsel %vm1277, %v1463, 0.0
      %1555 = vadd.xlane.f32.xlu0 %v1554
      %v1556 = vpop.xlane.xlu0 %1555
      %v1557 = vsel %vm1277, %v1465, 0.0
      %1558 = vadd.xlane.f32.xlu0 %v1557
      %v1559 = vpop.xlane.xlu0 %1558
      %v1560 = vsel %vm1277, %v1467, 0.0
      %1561 = vadd.xlane.f32.xlu0 %v1560
      %v1562 = vpop.xlane.xlu0 %1561
      %v1563 = vsel %vm1277, %v1469, 0.0
      %1564 = vadd.xlane.f32.xlu0 %v1563
      %v1565 = vpop.xlane.xlu0 %1564
      %v1566 = vrcp.pop %v1472
      %v1567 = vrcp.pop %v1475
      %v1568 = vrcp.pop %v1478
      %v1569 = vrcp.pop %v1481
      %v1570 = vrcp.pop %v1484
      %v1571 = vrcp.pop %v1487
      %v1572 = vrcp.pop %v1490
      %v1573 = vrcp.pop %v1493
      %v1574 = vrcp.pop %v1496
      %v1575 = vrcp.pop %v1499
      %v1576 = vrcp.pop %v1502
      %v1577 = vrcp.pop %v1505
      %v1578 = vrcp.pop %v1508
      %v1579 = vrcp.pop %v1511
      %v1580 = vrcp.pop %v1514
      %v1581 = vrcp.pop %v1517
      %v1582 = vrcp.pop %v1520
      %v1583 = vrcp.pop %v1523
      %v1584 = vrcp.pop %v1526
      %v1585 = vrcp.pop %v1529
      %v1586 = vrcp.pop %v1532
      %v1587 = vrcp.pop %v1535
      %v1588 = vrcp.pop %v1538
      %v1589 = vrcp.pop %v1541
      %v1590 = vrcp.pop %v1544
      %v1591 = vrcp.pop %v1547
      %v1592 = vrcp.pop %v1550
      %v1593 = vrcp.pop %v1553
      %v1594 = vrcp.pop %v1556
      %v1595 = vrcp.pop %v1559
      %v1596 = vrcp.pop %v1562
      %v1597 = vrcp.pop %v1565
      %v1598 = vmul.f32 %v1407, %v1566
      %v1599 = vmul.f32 %v1409, %v1567
      %v1600 = vmul.f32 %v1411, %v1568
      %v1601 = vmul.f32 %v1413, %v1569
      %v1602 = vmul.f32 %v1415, %v1570
      %v1603 = vmul.f32 %v1417, %v1571
      %v1604 = vmul.f32 %v1419, %v1572
      %v1605 = vmul.f32 %v1421, %v1573
      %v1606 = vmul.f32 %v1423, %v1574
      %v1607 = vmul.f32 %v1425, %v1575
      %v1608 = vmul.f32 %v1427, %v1576
      %v1609 = vmul.f32 %v1429, %v1577
      %v1610 = vmul.f32 %v1431, %v1578
      %v1611 = vmul.f32 %v1433, %v1579
      %v1612 = vmul.f32 %v1435, %v1580
      %v1613 = vmul.f32 %v1437, %v1581
      %v1614 = vmul.f32 %v1439, %v1582
      %v1615 = vmul.f32 %v1441, %v1583
      %v1616 = vmul.f32 %v1443, %v1584
      %v1617 = vmul.f32 %v1445, %v1585
      %v1618 = vmul.f32 %v1447, %v1586
      %v1619 = vmul.f32 %v1449, %v1587
      %v1620 = vmul.f32 %v1451, %v1588
      %v1621 = vmul.f32 %v1453, %v1589
      %v1622 = vmul.f32 %v1455, %v1590
      %v1623 = vmul.f32 %v1457, %v1591
      %v1624 = vmul.f32 %v1459, %v1592
      %v1625 = vmul.f32 %v1461, %v1593
      %v1626 = vmul.f32 %v1463, %v1594
      %v1627 = vmul.f32 %v1465, %v1595
      %v1628 = vmul.f32 %v1467, %v1596
      %v1629 = vmul.f32 %v1469, %v1597
      %1638 = vrot.lane.b32.xlu0 %v689, 64
      %v1639 = vpop.permute.xlu0 %1638
      %1640 = vrot.lane.b32.xlu0 %v690, 64
      %v1641 = vpop.permute.xlu0 %1640
      %1642 = vrot.lane.b32.xlu0 %v691, 64
      %v1643 = vpop.permute.xlu0 %1642
      %1644 = vrot.lane.b32.xlu0 %v692, 64
      %v1645 = vpop.permute.xlu0 %1644
      %1646 = vrot.lane.b32.xlu0 %v693, 64
      %v1647 = vpop.permute.xlu0 %1646
      %1648 = vrot.lane.b32.xlu0 %v694, 64
      %v1649 = vpop.permute.xlu0 %1648
      %1650 = vrot.lane.b32.xlu0 %v695, 64
      %v1651 = vpop.permute.xlu0 %1650
      %1652 = vrot.lane.b32.xlu0 %v696, 64
      %v1653 = vpop.permute.xlu0 %1652
      %v1663 = vsel %vm1277, %v1598, 0
      %v1666 = vsel %vm1277, %v1599, 0
      %v1669 = vsel %vm1277, %v1600, 0
      %v1672 = vsel %vm1277, %v1601, 0
      %v1675 = vsel %vm1277, %v1602, 0
      %v1678 = vsel %vm1277, %v1603, 0
      %v1681 = vsel %vm1277, %v1604, 0
      %v1684 = vsel %vm1277, %v1605, 0
      %1686 = vmatprep.subr.mxu0 0.0
      %1687 = vmatpush1.msra.mxu0 %v1639
      %1688 = vmatprep.subr.mxu0 0.0
      %1689 = vmatpush1.msra.mxu0 %v1641
      %1690 = vmatprep.subr.mxu0 0.0
      %1691 = vmatpush1.msra.mxu0 %v1643
      %1692 = vmatprep.subr.mxu0 0.0
      %1693 = vmatpush1.msra.mxu0 %v1645
      %1694 = vmatprep.subr.mxu0 0.0
      %1695 = vmatpush1.msra.mxu0 %v1647
      %1696 = vmatprep.subr.mxu0 0.0
      %1697 = vmatpush1.msra.mxu0 %v1649
      %1698 = vmatprep.subr.mxu0 0.0
      %1699 = vmatpush1.msra.mxu0 %v1651
      %1700 = vmatprep.subr.mxu0 0.0
      %1701 = vmatpush1.msra.mxu0 %v1653
      %1702 = vmatprep.subr.mxu0 0.0
      %1703 = vmatpush1.msra.mxu0 0.0
      %1704 = vmatprep.subr.mxu0 0.0
      %1705 = vmatpush1.msra.mxu0 0.0
      %1706 = vmatprep.subr.mxu0 0.0
      %1707 = vmatpush1.msra.mxu0 0.0
      %1708 = vmatprep.subr.mxu0 0.0
      %1709 = vmatpush1.msra.mxu0 0.0
      %1710 = vmatprep.subr.mxu0 0.0
      %1711 = vmatpush1.msra.mxu0 0.0
      %1712 = vmatprep.subr.mxu0 0.0
      %1713 = vmatpush1.msra.mxu0 0.0
      %1714 = vmatprep.subr.mxu0 0.0
      %1715 = vmatpush1.msra.mxu0 0.0
      %1716 = vmatprep.subr.mxu0 0.0
      %1717 = vmatpush1.msra.mxu0 0.0
      %1718 = vmatprep.subr.mxu0 0.0
      %1719 = vmatpush1.msra.mxu0 0.0
      %1720 = vmatprep.subr.mxu0 0.0
      %1721 = vmatpush1.msra.mxu0 0.0
      %1722 = vmatprep.subr.mxu0 0.0
      %1723 = vmatpush1.msra.mxu0 0.0
      %1724 = vmatprep.subr.mxu0 0.0
      %1725 = vmatpush1.msra.mxu0 0.0
      %1726 = vmatprep.subr.mxu0 0.0
      %1727 = vmatpush1.msra.mxu0 0.0
      %1728 = vmatprep.subr.mxu0 0.0
      %1729 = vmatpush1.msra.mxu0 0.0
      %1730 = vmatprep.subr.mxu0 0.0
      %1731 = vmatpush1.msra.mxu0 0.0
      %1732 = vmatprep.subr.mxu0 0.0
      %1733 = vmatpush1.msra.mxu0 0.0
      %1734 = vmatprep.subr.mxu0 0.0
      %1735 = vmatpush1.msra.mxu0 0.0
      %1736 = vmatprep.subr.mxu0 0.0
      %1737 = vmatpush1.msra.mxu0 0.0
      %1738 = vmatprep.subr.mxu0 0.0
      %1739 = vmatpush1.msra.mxu0 0.0
      %1740 = vmatprep.subr.mxu0 0.0
      %1741 = vmatpush1.msra.mxu0 0.0
      %1742 = vmatprep.subr.mxu0 0.0
      %1743 = vmatpush1.msra.mxu0 0.0
      %1744 = vmatprep.subr.mxu0 0.0
      %1745 = vmatpush1.msra.mxu0 0.0
      %1746 = vmatprep.subr.mxu0 0.0
      %1747 = vmatpush1.msra.mxu0 0.0
      %1748 = vmatprep.subr.mxu0 0.0
      %1749 = vmatpush1.msra.mxu0 0.0
      %1750 = vmatprep.mubr.f32.mxu0 0.0
      %1751 = vmatmul.mubr.f32.gmra.mrb[0].mxu0 %v1663
      %v1752 = vpop.f32.mrb[0].mxu0
      %v1753 = vadd.f32 0.0, %v1752
      %v1754 = vpop.f32.mrb[0].mxu0
      %1755 = vmatprep.mubr.f32.mxu0 0.0
      %1756 = vmatmul.mubr.f32.gmra.mrb[0].mxu0 %v1666
      %v1757 = vpop.f32.mrb[0].mxu0
      %v1758 = vadd.f32 0.0, %v1757
      %v1759 = vpop.f32.mrb[0].mxu0
      %1760 = vmatprep.mubr.f32.mxu0 0.0
      %1761 = vmatmul.mubr.f32.gmra.mrb[0].mxu0 %v1669
      %v1762 = vpop.f32.mrb[0].mxu0
      %v1763 = vadd.f32 0.0, %v1762
      %v1764 = vpop.f32.mrb[0].mxu0
      %1765 = vmatprep.mubr.f32.mxu0 0.0
      %1766 = vmatmul.mubr.f32.gmra.mrb[0].mxu0 %v1672
      %v1767 = vpop.f32.mrb[0].mxu0
      %v1768 = vadd.f32 0.0, %v1767
      %v1769 = vpop.f32.mrb[0].mxu0
      %1770 = vmatprep.mubr.f32.mxu0 0.0
      %1771 = vmatmul.mubr.f32.gmra.mrb[0].mxu0 %v1675
      %v1772 = vpop.f32.mrb[0].mxu0
      %v1773 = vadd.f32 0.0, %v1772
      %v1774 = vpop.f32.mrb[0].mxu0
      %1775 = vmatprep.mubr.f32.mxu0 0.0
      %1776 = vmatmul.mubr.f32.gmra.mrb[0].mxu0 %v1678
      %v1777 = vpop.f32.mrb[0].mxu0
      %v1778 = vadd.f32 0.0, %v1777
      %v1779 = vpop.f32.mrb[0].mxu0
      %1780 = vmatprep.mubr.f32.mxu0 0.0
      %1781 = vmatmul.mubr.f32.gmra.mrb[0].mxu0 %v1681
      %v1782 = vpop.f32.mrb[0].mxu0
      %v1783 = vadd.f32 0.0, %v1782
      %v1784 = vpop.f32.mrb[0].mxu0
      %1785 = vmatprep.mubr.f32.mxu0 0.0
      %1786 = vmatmul.mubr.f32.gmra.mrb[0].mxu0 %v1684
      %v1787 = vpop.f32.mrb[0].mxu0
      %v1788 = vadd.f32 0.0, %v1787
      %v1789 = vpop.f32.mrb[0].mxu0
      %1790 = vdwg.mxu0
      %1799 = vrot.lane.b32.xlu0 %v697, 64
      %v1800 = vpop.permute.xlu0 %1799
      %1801 = vrot.lane.b32.xlu0 %v698, 64
      %v1802 = vpop.permute.xlu0 %1801
      %1803 = vrot.lane.b32.xlu0 %v699, 64
      %v1804 = vpop.permute.xlu0 %1803
      %1805 = vrot.lane.b32.xlu0 %v700, 64
      %v1806 = vpop.permute.xlu0 %1805
      %1807 = vrot.lane.b32.xlu0 %v701, 64
      %v1808 = vpop.permute.xlu0 %1807
      %1809 = vrot.lane.b32.xlu0 %v702, 64
      %v1810 = vpop.permute.xlu0 %1809
      %1811 = vrot.lane.b32.xlu0 %v703, 64
      %v1812 = vpop.permute.xlu0 %1811
      %1813 = vrot.lane.b32.xlu0 %v704, 64
      %v1814 = vpop.permute.xlu0 %1813
      %v1824 = vsel %vm1277, %v1606, 0
      %v1827 = vsel %vm1277, %v1607, 0
      %v1830 = vsel %vm1277, %v1608, 0
      %v1833 = vsel %vm1277, %v1609, 0
      %v1836 = vsel %vm1277, %v1610, 0
      %v1839 = vsel %vm1277, %v1611, 0
      %v1842 = vsel %vm1277, %v1612, 0
      %v1845 = vsel %vm1277, %v1613, 0
      %1847 = vmatprep.subr.mxu0 0.0
      %1848 = vmatpush1.msra.mxu0 %v1800
      %1849 = vmatprep.subr.mxu0 0.0
      %1850 = vmatpush1.msra.mxu0 %v1802
      %1851 = vmatprep.subr.mxu0 0.0
      %1852 = vmatpush1.msra.mxu0 %v1804
      %1853 = vmatprep.subr.mxu0 0.0
      %1854 = vmatpush1.msra.mxu0 %v1806
      %1855 = vmatprep.subr.mxu0 0.0
      %1856 = vmatpush1.msra.mxu0 %v1808
      %1857 = vmatprep.subr.mxu0 0.0
      %1858 = vmatpush1.msra.mxu0 %v1810
      %1859 = vmatprep.subr.mxu0 0.0
      %1860 = vmatpush1.msra.mxu0 %v1812
      %1861 = vmatprep.subr.mxu0 0.0
      %1862 = vmatpush1.msra.mxu0 %v1814
      %1863 = vmatprep.subr.mxu0 0.0
      %1864 = vmatpush1.msra.mxu0 0.0
      %1865 = vmatprep.subr.mxu0 0.0
      %1866 = vmatpush1.msra.mxu0 0.0
      %1867 = vmatprep.subr.mxu0 0.0
      %1868 = vmatpush1.msra.mxu0 0.0
      %1869 = vmatprep.subr.mxu0 0.0
      %1870 = vmatpush1.msra.mxu0 0.0
      %1871 = vmatprep.subr.mxu0 0.0
      %1872 = vmatpush1.msra.mxu0 0.0
      %1873 = vmatprep.subr.mxu0 0.0
      %1874 = vmatpush1.msra.mxu0 0.0
      %1875 = vmatprep.subr.mxu0 0.0
      %1876 = vmatpush1.msra.mxu0 0.0
      %1877 = vmatprep.subr.mxu0 0.0
      %1878 = vmatpush1.msra.mxu0 0.0
      %1879 = vmatprep.subr.mxu0 0.0
      %1880 = vmatpush1.msra.mxu0 0.0
      %1881 = vmatprep.subr.mxu0 0.0
      %1882 = vmatpush1.msra.mxu0 0.0
      %1883 = vmatprep.subr.mxu0 0.0
      %1884 = vmatpush1.msra.mxu0 0.0
      %1885 = vmatprep.subr.mxu0 0.0
      %1886 = vmatpush1.msra.mxu0 0.0
      %1887 = vmatprep.subr.mxu0 0.0
      %1888 = vmatpush1.msra.mxu0 0.0
      %1889 = vmatprep.subr.mxu0 0.0
      %1890 = vmatpush1.msra.mxu0 0.0
      %1891 = vmatprep.subr.mxu0 0.0
      %1892 = vmatpush1.msra.mxu0 0.0
      %1893 = vmatprep.subr.mxu0 0.0
      %1894 = vmatpush1.msra.mxu0 0.0
      %1895 = vmatprep.subr.mxu0 0.0
      %1896 = vmatpush1.msra.mxu0 0.0
      %1897 = vmatprep.subr.mxu0 0.0
      %1898 = vmatpush1.msra.mxu0 0.0
      %1899 = vmatprep.subr.mxu0 0.0
      %1900 = vmatpush1.msra.mxu0 0.0
      %1901 = vmatprep.subr.mxu0 0.0
      %1902 = vmatpush1.msra.mxu0 0.0
      %1903 = vmatprep.subr.mxu0 0.0
      %1904 = vmatpush1.msra.mxu0 0.0
      %1905 = vmatprep.subr.mxu0 0.0
      %1906 = vmatpush1.msra.mxu0 0.0
      %1907 = vmatprep.subr.mxu0 0.0
      %1908 = vmatpush1.msra.mxu0 0.0
      %1909 = vmatprep.subr.mxu0 0.0
      %1910 = vmatpush1.msra.mxu0 0.0
      %1911 = vmatprep.mubr.f32.mxu0 0.0
      %1912 = vmatmul.mubr.f32.gmra.mrb[0].mxu0 %v1824
      %v1913 = vpop.f32.mrb[0].mxu0
      %v1914 = vadd.f32 0.0, %v1913
      %v1915 = vpop.f32.mrb[0].mxu0
      %1916 = vmatprep.mubr.f32.mxu0 0.0
      %1917 = vmatmul.mubr.f32.gmra.mrb[0].mxu0 %v1827
      %v1918 = vpop.f32.mrb[0].mxu0
      %v1919 = vadd.f32 0.0, %v1918
      %v1920 = vpop.f32.mrb[0].mxu0
      %1921 = vmatprep.mubr.f32.mxu0 0.0
      %1922 = vmatmul.mubr.f32.gmra.mrb[0].mxu0 %v1830
      %v1923 = vpop.f32.mrb[0].mxu0
      %v1924 = vadd.f32 0.0, %v1923
      %v1925 = vpop.f32.mrb[0].mxu0
      %1926 = vmatprep.mubr.f32.mxu0 0.0
      %1927 = vmatmul.mubr.f32.gmra.mrb[0].mxu0 %v1833
      %v1928 = vpop.f32.mrb[0].mxu0
      %v1929 = vadd.f32 0.0, %v1928
      %v1930 = vpop.f32.mrb[0].mxu0
      %1931 = vmatprep.mubr.f32.mxu0 0.0
      %1932 = vmatmul.mubr.f32.gmra.mrb[0].mxu0 %v1836
      %v1933 = vpop.f32.mrb[0].mxu0
      %v1934 = vadd.f32 0.0, %v1933
      %v1935 = vpop.f32.mrb[0].mxu0
      %1936 = vmatprep.mubr.f32.mxu0 0.0
      %1937 = vmatmul.mubr.f32.gmra.mrb[0].mxu0 %v1839
      %v1938 = vpop.f32.mrb[0].mxu0
      %v1939 = vadd.f32 0.0, %v1938
      %v1940 = vpop.f32.mrb[0].mxu0
      %1941 = vmatprep.mubr.f32.mxu0 0.0
      %1942 = vmatmul.mubr.f32.gmra.mrb[0].mxu0 %v1842
      %v1943 = vpop.f32.mrb[0].mxu0
      %v1944 = vadd.f32 0.0, %v1943
      %v1945 = vpop.f32.mrb[0].mxu0
      %1946 = vmatprep.mubr.f32.mxu0 0.0
      %1947 = vmatmul.mubr.f32.gmra.mrb[0].mxu0 %v1845
      %v1948 = vpop.f32.mrb[0].mxu0
      %v1949 = vadd.f32 0.0, %v1948
      %v1950 = vpop.f32.mrb[0].mxu0
      %1951 = vdwg.mxu0
      %1960 = vrot.lane.b32.xlu0 %v705, 64
      %v1961 = vpop.permute.xlu0 %1960
      %1962 = vrot.lane.b32.xlu0 %v706, 64
      %v1963 = vpop.permute.xlu0 %1962
      %1964 = vrot.lane.b32.xlu0 %v707, 64
      %v1965 = vpop.permute.xlu0 %1964
      %1966 = vrot.lane.b32.xlu0 %v708, 64
      %v1967 = vpop.permute.xlu0 %1966
      %1968 = vrot.lane.b32.xlu0 %v709, 64
      %v1969 = vpop.permute.xlu0 %1968
      %1970 = vrot.lane.b32.xlu0 %v710, 64
      %v1971 = vpop.permute.xlu0 %1970
      %1972 = vrot.lane.b32.xlu0 %v711, 64
      %v1973 = vpop.permute.xlu0 %1972
      %1974 = vrot.lane.b32.xlu0 %v712, 64
      %v1975 = vpop.permute.xlu0 %1974
      %v1985 = vsel %vm1277, %v1614, 0
      %v1988 = vsel %vm1277, %v1615, 0
      %v1991 = vsel %vm1277, %v1616, 0
      %v1994 = vsel %vm1277, %v1617, 0
      %v1997 = vsel %vm1277, %v1618, 0
      %v2000 = vsel %vm1277, %v1619, 0
      %v2003 = vsel %vm1277, %v1620, 0
      %v2006 = vsel %vm1277, %v1621, 0
      %2008 = vmatprep.subr.mxu0 0.0
      %2009 = vmatpush1.msra.mxu0 %v1961
      %2010 = vmatprep.subr.mxu0 0.0
      %2011 = vmatpush1.msra.mxu0 %v1963
      %2012 = vmatprep.subr.mxu0 0.0
      %2013 = vmatpush1.msra.mxu0 %v1965
      %2014 = vmatprep.subr.mxu0 0.0
      %2015 = vmatpush1.msra.mxu0 %v1967
      %2016 = vmatprep.subr.mxu0 0.0
      %2017 = vmatpush1.msra.mxu0 %v1969
      %2018 = vmatprep.subr.mxu0 0.0
      %2019 = vmatpush1.msra.mxu0 %v1971
      %2020 = vmatprep.subr.mxu0 0.0
      %2021 = vmatpush1.msra.mxu0 %v1973
      %2022 = vmatprep.subr.mxu0 0.0
      %2023 = vmatpush1.msra.mxu0 %v1975
      %2024 = vmatprep.subr.mxu0 0.0
      %2025 = vmatpush1.msra.mxu0 0.0
      %2026 = vmatprep.subr.mxu0 0.0
      %2027 = vmatpush1.msra.mxu0 0.0
      %2028 = vmatprep.subr.mxu0 0.0
      %2029 = vmatpush1.msra.mxu0 0.0
      %2030 = vmatprep.subr.mxu0 0.0
      %2031 = vmatpush1.msra.mxu0 0.0
      %2032 = vmatprep.subr.mxu0 0.0
      %2033 = vmatpush1.msra.mxu0 0.0
      %2034 = vmatprep.subr.mxu0 0.0
      %2035 = vmatpush1.msra.mxu0 0.0
      %2036 = vmatprep.subr.mxu0 0.0
      %2037 = vmatpush1.msra.mxu0 0.0
      %2038 = vmatprep.subr.mxu0 0.0
      %2039 = vmatpush1.msra.mxu0 0.0
      %2040 = vmatprep.subr.mxu0 0.0
      %2041 = vmatpush1.msra.mxu0 0.0
      %2042 = vmatprep.subr.mxu0 0.0
      %2043 = vmatpush1.msra.mxu0 0.0
      %2044 = vmatprep.subr.mxu0 0.0
      %2045 = vmatpush1.msra.mxu0 0.0
      %2046 = vmatprep.subr.mxu0 0.0
      %2047 = vmatpush1.msra.mxu0 0.0
      %2048 = vmatprep.subr.mxu0 0.0
      %2049 = vmatpush1.msra.mxu0 0.0
      %2050 = vmatprep.subr.mxu0 0.0
      %2051 = vmatpush1.msra.mxu0 0.0
      %2052 = vmatprep.subr.mxu0 0.0
      %2053 = vmatpush1.msra.mxu0 0.0
      %2054 = vmatprep.subr.mxu0 0.0
      %2055 = vmatpush1.msra.mxu0 0.0
      %2056 = vmatprep.subr.mxu0 0.0
      %2057 = vmatpush1.msra.mxu0 0.0
      %2058 = vmatprep.subr.mxu0 0.0
      %2059 = vmatpush1.msra.mxu0 0.0
      %2060 = vmatprep.subr.mxu0 0.0
      %2061 = vmatpush1.msra.mxu0 0.0
      %2062 = vmatprep.subr.mxu0 0.0
      %2063 = vmatpush1.msra.mxu0 0.0
      %2064 = vmatprep.subr.mxu0 0.0
      %2065 = vmatpush1.msra.mxu0 0.0
      %2066 = vmatprep.subr.mxu0 0.0
      %2067 = vmatpush1.msra.mxu0 0.0
      %2068 = vmatprep.subr.mxu0 0.0
      %2069 = vmatpush1.msra.mxu0 0.0
      %2070 = vmatprep.subr.mxu0 0.0
      %2071 = vmatpush1.msra.mxu0 0.0
      %2072 = vmatprep.mubr.f32.mxu0 0.0
      %2073 = vmatmul.mubr.f32.gmra.mrb[0].mxu0 %v1985
      %v2074 = vpop.f32.mrb[0].mxu0
      %v2075 = vadd.f32 0.0, %v2074
      %v2076 = vpop.f32.mrb[0].mxu0
      %2077 = vmatprep.mubr.f32.mxu0 0.0
      %2078 = vmatmul.mubr.f32.gmra.mrb[0].mxu0 %v1988
      %v2079 = vpop.f32.mrb[0].mxu0
      %v2080 = vadd.f32 0.0, %v2079
      %v2081 = vpop.f32.mrb[0].mxu0
      %2082 = vmatprep.mubr.f32.mxu0 0.0
      %2083 = vmatmul.mubr.f32.gmra.mrb[0].mxu0 %v1991
      %v2084 = vpop.f32.mrb[0].mxu0
      %v2085 = vadd.f32 0.0, %v2084
      %v2086 = vpop.f32.mrb[0].mxu0
      %2087 = vmatprep.mubr.f32.mxu0 0.0
      %2088 = vmatmul.mubr.f32.gmra.mrb[0].mxu0 %v1994
      %v2089 = vpop.f32.mrb[0].mxu0
      %v2090 = vadd.f32 0.0, %v2089
      %v2091 = vpop.f32.mrb[0].mxu0
      %2092 = vmatprep.mubr.f32.mxu0 0.0
      %2093 = vmatmul.mubr.f32.gmra.mrb[0].mxu0 %v1997
      %v2094 = vpop.f32.mrb[0].mxu0
      %v2095 = vadd.f32 0.0, %v2094
      %v2096 = vpop.f32.mrb[0].mxu0
      %2097 = vmatprep.mubr.f32.mxu0 0.0
      %2098 = vmatmul.mubr.f32.gmra.mrb[0].mxu0 %v2000
      %v2099 = vpop.f32.mrb[0].mxu0
      %v2100 = vadd.f32 0.0, %v2099
      %v2101 = vpop.f32.mrb[0].mxu0
      %2102 = vmatprep.mubr.f32.mxu0 0.0
      %2103 = vmatmul.mubr.f32.gmra.mrb[0].mxu0 %v2003
      %v2104 = vpop.f32.mrb[0].mxu0
      %v2105 = vadd.f32 0.0, %v2104
      %v2106 = vpop.f32.mrb[0].mxu0
      %2107 = vmatprep.mubr.f32.mxu0 0.0
      %2108 = vmatmul.mubr.f32.gmra.mrb[0].mxu0 %v2006
      %v2109 = vpop.f32.mrb[0].mxu0
      %v2110 = vadd.f32 0.0, %v2109
      %v2111 = vpop.f32.mrb[0].mxu0
      %2112 = vdwg.mxu0
      %2121 = vrot.lane.b32.xlu0 %v713, 64
      %v2122 = vpop.permute.xlu0 %2121
      %2123 = vrot.lane.b32.xlu0 %v714, 64
      %v2124 = vpop.permute.xlu0 %2123
      %2125 = vrot.lane.b32.xlu0 %v715, 64
      %v2126 = vpop.permute.xlu0 %2125
      %2127 = vrot.lane.b32.xlu0 %v716, 64
      %v2128 = vpop.permute.xlu0 %2127
      %2129 = vrot.lane.b32.xlu0 %v717, 64
      %v2130 = vpop.permute.xlu0 %2129
      %2131 = vrot.lane.b32.xlu0 %v718, 64
      %v2132 = vpop.permute.xlu0 %2131
      %2133 = vrot.lane.b32.xlu0 %v719, 64
      %v2134 = vpop.permute.xlu0 %2133
      %2135 = vrot.lane.b32.xlu0 %v720, 64
      %v2136 = vpop.permute.xlu0 %2135
      %v2146 = vsel %vm1277, %v1622, 0
      %v2149 = vsel %vm1277, %v1623, 0
      %v2152 = vsel %vm1277, %v1624, 0
      %v2155 = vsel %vm1277, %v1625, 0
      %v2158 = vsel %vm1277, %v1626, 0
      %v2161 = vsel %vm1277, %v1627, 0
      %v2164 = vsel %vm1277, %v1628, 0
      %v2167 = vsel %vm1277, %v1629, 0
      %2169 = vmatprep.subr.mxu0 0.0
      %2170 = vmatpush1.msra.mxu0 %v2122
      %2171 = vmatprep.subr.mxu0 0.0
      %2172 = vmatpush1.msra.mxu0 %v2124
      %2173 = vmatprep.subr.mxu0 0.0
      %2174 = vmatpush1.msra.mxu0 %v2126
      %2175 = vmatprep.subr.mxu0 0.0
      %2176 = vmatpush1.msra.mxu0 %v2128
      %2177 = vmatprep.subr.mxu0 0.0
      %2178 = vmatpush1.msra.mxu0 %v2130
      %2179 = vmatprep.subr.mxu0 0.0
      %2180 = vmatpush1.msra.mxu0 %v2132
      %2181 = vmatprep.subr.mxu0 0.0
      %2182 = vmatpush1.msra.mxu0 %v2134
      %2183 = vmatprep.subr.mxu0 0.0
      %2184 = vmatpush1.msra.mxu0 %v2136
      %2185 = vmatprep.subr.mxu0 0.0
      %2186 = vmatpush1.msra.mxu0 0.0
      %2187 = vmatprep.subr.mxu0 0.0
      %2188 = vmatpush1.msra.mxu0 0.0
      %2189 = vmatprep.subr.mxu0 0.0
      %2190 = vmatpush1.msra.mxu0 0.0
      %2191 = vmatprep.subr.mxu0 0.0
      %2192 = vmatpush1.msra.mxu0 0.0
      %2193 = vmatprep.subr.mxu0 0.0
      %2194 = vmatpush1.msra.mxu0 0.0
      %2195 = vmatprep.subr.mxu0 0.0
      %2196 = vmatpush1.msra.mxu0 0.0
      %2197 = vmatprep.subr.mxu0 0.0
      %2198 = vmatpush1.msra.mxu0 0.0
      %2199 = vmatprep.subr.mxu0 0.0
      %2200 = vmatpush1.msra.mxu0 0.0
      %2201 = vmatprep.subr.mxu0 0.0
      %2202 = vmatpush1.msra.mxu0 0.0
      %2203 = vmatprep.subr.mxu0 0.0
      %2204 = vmatpush1.msra.mxu0 0.0
      %2205 = vmatprep.subr.mxu0 0.0
      %2206 = vmatpush1.msra.mxu0 0.0
      %2207 = vmatprep.subr.mxu0 0.0
      %2208 = vmatpush1.msra.mxu0 0.0
      %2209 = vmatprep.subr.mxu0 0.0
      %2210 = vmatpush1.msra.mxu0 0.0
      %2211 = vmatprep.subr.mxu0 0.0
      %2212 = vmatpush1.msra.mxu0 0.0
      %2213 = vmatprep.subr.mxu0 0.0
      %2214 = vmatpush1.msra.mxu0 0.0
      %2215 = vmatprep.subr.mxu0 0.0
      %2216 = vmatpush1.msra.mxu0 0.0
      %2217 = vmatprep.subr.mxu0 0.0
      %2218 = vmatpush1.msra.mxu0 0.0
      %2219 = vmatprep.subr.mxu0 0.0
      %2220 = vmatpush1.msra.mxu0 0.0
      %2221 = vmatprep.subr.mxu0 0.0
      %2222 = vmatpush1.msra.mxu0 0.0
      %2223 = vmatprep.subr.mxu0 0.0
      %2224 = vmatpush1.msra.mxu0 0.0
      %2225 = vmatprep.subr.mxu0 0.0
      %2226 = vmatpush1.msra.mxu0 0.0
      %2227 = vmatprep.subr.mxu0 0.0
      %2228 = vmatpush1.msra.mxu0 0.0
      %2229 = vmatprep.subr.mxu0 0.0
      %2230 = vmatpush1.msra.mxu0 0.0
      %2231 = vmatprep.subr.mxu0 0.0
      %2232 = vmatpush1.msra.mxu0 0.0
      %2233 = vmatprep.mubr.f32.mxu0 0.0
      %2234 = vmatmul.mubr.f32.gmra.mrb[0].mxu0 %v2146
      %v2235 = vpop.f32.mrb[0].mxu0
      %v2236 = vadd.f32 0.0, %v2235
      %v2237 = vpop.f32.mrb[0].mxu0
      %2238 = vmatprep.mubr.f32.mxu0 0.0
      %2239 = vmatmul.mubr.f32.gmra.mrb[0].mxu0 %v2149
      %v2240 = vpop.f32.mrb[0].mxu0
      %v2241 = vadd.f32 0.0, %v2240
      %v2242 = vpop.f32.mrb[0].mxu0
      %2243 = vmatprep.mubr.f32.mxu0 0.0
      %2244 = vmatmul.mubr.f32.gmra.mrb[0].mxu0 %v2152
      %v2245 = vpop.f32.mrb[0].mxu0
      %v2246 = vadd.f32 0.0, %v2245
      %v2247 = vpop.f32.mrb[0].mxu0
      %2248 = vmatprep.mubr.f32.mxu0 0.0
      %2249 = vmatmul.mubr.f32.gmra.mrb[0].mxu0 %v2155
      %v2250 = vpop.f32.mrb[0].mxu0
      %v2251 = vadd.f32 0.0, %v2250
      %v2252 = vpop.f32.mrb[0].mxu0
      %2253 = vmatprep.mubr.f32.mxu0 0.0
      %2254 = vmatmul.mubr.f32.gmra.mrb[0].mxu0 %v2158
      %v2255 = vpop.f32.mrb[0].mxu0
      %v2256 = vadd.f32 0.0, %v2255
      %v2257 = vpop.f32.mrb[0].mxu0
      %2258 = vmatprep.mubr.f32.mxu0 0.0
      %2259 = vmatmul.mubr.f32.gmra.mrb[0].mxu0 %v2161
      %v2260 = vpop.f32.mrb[0].mxu0
      %v2261 = vadd.f32 0.0, %v2260
      %v2262 = vpop.f32.mrb[0].mxu0
      %2263 = vmatprep.mubr.f32.mxu0 0.0
      %2264 = vmatmul.mubr.f32.gmra.mrb[0].mxu0 %v2164
      %v2265 = vpop.f32.mrb[0].mxu0
      %v2266 = vadd.f32 0.0, %v2265
      %v2267 = vpop.f32.mrb[0].mxu0
      %2268 = vmatprep.mubr.f32.mxu0 0.0
      %2269 = vmatmul.mubr.f32.gmra.mrb[0].mxu0 %v2167
      %v2270 = vpop.f32.mrb[0].mxu0
      %v2271 = vadd.f32 0.0, %v2270
      %v2272 = vpop.f32.mrb[0].mxu0
      %2273 = vdwg.mxu0
      %v2274 = vadd.f32 %v1753, %v1914
      %v2275 = vadd.f32 %v1758, %v1919
      %v2276 = vadd.f32 %v1763, %v1924
      %v2277 = vadd.f32 %v1768, %v1929
      %v2278 = vadd.f32 %v1773, %v1934
      %v2279 = vadd.f32 %v1778, %v1939
      %v2280 = vadd.f32 %v1783, %v1944
      %v2281 = vadd.f32 %v1788, %v1949
      %v2282 = vadd.f32 %v2274, %v2075
      %v2283 = vadd.f32 %v2275, %v2080
      %v2284 = vadd.f32 %v2276, %v2085
      %v2285 = vadd.f32 %v2277, %v2090
      %v2286 = vadd.f32 %v2278, %v2095
      %v2287 = vadd.f32 %v2279, %v2100
      %v2288 = vadd.f32 %v2280, %v2105
      %v2289 = vadd.f32 %v2281, %v2110
      %v2290 = vadd.f32 %v2282, %v2236
      %v2291 = vadd.f32 %v2283, %v2241
      %v2292 = vadd.f32 %v2284, %v2246
      %v2293 = vadd.f32 %v2285, %v2251
      %v2294 = vadd.f32 %v2286, %v2256
      %v2295 = vadd.f32 %v2287, %v2261
      %v2296 = vadd.f32 %v2288, %v2266
      %v2297 = vadd.f32 %v2289, %v2271
      %v2298 = vld [vmem:[%s4] sm:$0xff]
      %v2299 = vld [vmem:[%s4 + $0x8] sm:$0xff]
      %v2300 = vld [vmem:[%s4 + $0x10] sm:$0xff]
      %v2301 = vld [vmem:[%s4 + $0x18] sm:$0xff]
      %v2302 = vld [vmem:[%s5] sm:$0x1]
      %v2304 = vlaneseq
      %v2305 = vshrl.u32 %v2304, 7
      %v2306 = vsub.s32 0, %v2305
      %v2307 = vrot.slane %v2302, %v2306
      %v2310 = vsel %vm487, %v2290, 0
      %v2313 = vsel %vm487, %v2291, 0
      %v2316 = vsel %vm487, %v2292, 0
      %v2319 = vsel %vm487, %v2293, 0
      %v2322 = vsel %vm487, %v2294, 0
      %v2325 = vsel %vm487, %v2295, 0
      %v2328 = vsel %vm487, %v2296, 0
      %v2331 = vsel %vm487, %v2297, 0
      %2333 = vmatprep.subr.mxu0 0.0
      %2334 = vmatpush1.msra.mxu0 %v2298
      %2335 = vmatprep.subr.mxu0 0.0
      %2336 = vmatpush1.msra.mxu0 %v2299
      %2337 = vmatprep.subr.mxu0 0.0
      %2338 = vmatpush1.msra.mxu0 %v2300
      %2339 = vmatprep.subr.mxu0 0.0
      %2340 = vmatpush1.msra.mxu0 %v2301
      %2341 = vmatprep.subr.mxu0 0.0
      %2342 = vmatpush1.msra.mxu0 0.0
      %2343 = vmatprep.subr.mxu0 0.0
      %2344 = vmatpush1.msra.mxu0 0.0
      %2345 = vmatprep.subr.mxu0 0.0
      %2346 = vmatpush1.msra.mxu0 0.0
      %2347 = vmatprep.subr.mxu0 0.0
      %2348 = vmatpush1.msra.mxu0 0.0
      %2349 = vmatprep.subr.mxu0 0.0
      %2350 = vmatpush1.msra.mxu0 0.0
      %2351 = vmatprep.subr.mxu0 0.0
      %2352 = vmatpush1.msra.mxu0 0.0
      %2353 = vmatprep.subr.mxu0 0.0
      %2354 = vmatpush1.msra.mxu0 0.0
      %2355 = vmatprep.subr.mxu0 0.0
      %2356 = vmatpush1.msra.mxu0 0.0
      %2357 = vmatprep.subr.mxu0 0.0
      %2358 = vmatpush1.msra.mxu0 0.0
      %2359 = vmatprep.subr.mxu0 0.0
      %2360 = vmatpush1.msra.mxu0 0.0
      %2361 = vmatprep.subr.mxu0 0.0
      %2362 = vmatpush1.msra.mxu0 0.0
      %2363 = vmatprep.subr.mxu0 0.0
      %2364 = vmatpush1.msra.mxu0 0.0
      %2365 = vmatprep.subr.mxu0 0.0
      %2366 = vmatpush1.msra.mxu0 0.0
      %2367 = vmatprep.subr.mxu0 0.0
      %2368 = vmatpush1.msra.mxu0 0.0
      %2369 = vmatprep.subr.mxu0 0.0
      %2370 = vmatpush1.msra.mxu0 0.0
      %2371 = vmatprep.subr.mxu0 0.0
      %2372 = vmatpush1.msra.mxu0 0.0
      %2373 = vmatprep.subr.mxu0 0.0
      %2374 = vmatpush1.msra.mxu0 0.0
      %2375 = vmatprep.subr.mxu0 0.0
      %2376 = vmatpush1.msra.mxu0 0.0
      %2377 = vmatprep.subr.mxu0 0.0
      %2378 = vmatpush1.msra.mxu0 0.0
      %2379 = vmatprep.subr.mxu0 0.0
      %2380 = vmatpush1.msra.mxu0 0.0
      %2381 = vmatprep.subr.mxu0 0.0
      %2382 = vmatpush1.msra.mxu0 0.0
      %2383 = vmatprep.subr.mxu0 0.0
      %2384 = vmatpush1.msra.mxu0 0.0
      %2385 = vmatprep.subr.mxu0 0.0
      %2386 = vmatpush1.msra.mxu0 0.0
      %2387 = vmatprep.subr.mxu0 0.0
      %2388 = vmatpush1.msra.mxu0 0.0
      %2389 = vmatprep.subr.mxu0 0.0
      %2390 = vmatpush1.msra.mxu0 0.0
      %2391 = vmatprep.subr.mxu0 0.0
      %2392 = vmatpush1.msra.mxu0 0.0
      %2393 = vmatprep.subr.mxu0 0.0
      %2394 = vmatpush1.msra.mxu0 0.0
      %2395 = vmatprep.subr.mxu0 0.0
      %2396 = vmatpush1.msra.mxu0 0.0
      %2397 = vmatprep.mubr.f32.mxu0 0.0
      %2398 = vmatmul.mubr.f32.gmra.mrb[0].mxu0 %v2310
      %v2399 = vpop.f32.mrb[0].mxu0
      %v2400 = vadd.f32 %v2307, %v2399
      %v2401 = vpop.f32.mrb[0].mxu0
      %2402 = vmatprep.mubr.f32.mxu0 0.0
      %2403 = vmatmul.mubr.f32.gmra.mrb[0].mxu0 %v2313
      %v2404 = vpop.f32.mrb[0].mxu0
      %v2405 = vadd.f32 %v2307, %v2404
      %v2406 = vpop.f32.mrb[0].mxu0
      %2407 = vmatprep.mubr.f32.mxu0 0.0
      %2408 = vmatmul.mubr.f32.gmra.mrb[0].mxu0 %v2316
      %v2409 = vpop.f32.mrb[0].mxu0
      %v2410 = vadd.f32 %v2307, %v2409
      %v2411 = vpop.f32.mrb[0].mxu0
      %2412 = vmatprep.mubr.f32.mxu0 0.0
      %2413 = vmatmul.mubr.f32.gmra.mrb[0].mxu0 %v2319
      %v2414 = vpop.f32.mrb[0].mxu0
      %v2415 = vadd.f32 %v2307, %v2414
      %v2416 = vpop.f32.mrb[0].mxu0
      %2417 = vmatprep.mubr.f32.mxu0 0.0
      %2418 = vmatmul.mubr.f32.gmra.mrb[0].mxu0 %v2322
      %v2419 = vpop.f32.mrb[0].mxu0
      %v2420 = vadd.f32 %v2307, %v2419
      %v2421 = vpop.f32.mrb[0].mxu0
      %2422 = vmatprep.mubr.f32.mxu0 0.0
      %2423 = vmatmul.mubr.f32.gmra.mrb[0].mxu0 %v2325
      %v2424 = vpop.f32.mrb[0].mxu0
      %v2425 = vadd.f32 %v2307, %v2424
      %v2426 = vpop.f32.mrb[0].mxu0
      %2427 = vmatprep.mubr.f32.mxu0 0.0
      %2428 = vmatmul.mubr.f32.gmra.mrb[0].mxu0 %v2328
      %v2429 = vpop.f32.mrb[0].mxu0
      %v2430 = vadd.f32 %v2307, %v2429
      %v2431 = vpop.f32.mrb[0].mxu0
      %2432 = vmatprep.mubr.f32.mxu0 0.0
      %2433 = vmatmul.mubr.f32.gmra.mrb[0].mxu0 %v2331
      %v2434 = vpop.f32.mrb[0].mxu0
      %v2435 = vadd.f32 %v2307, %v2434
      %v2436 = vpop.f32.mrb[0].mxu0
      %2437 = vdwg.mxu0
      %v2438 = vadd.f32 %v468, %v2400
      %v2439 = vadd.f32 %v469, %v2405
      %v2440 = vadd.f32 %v470, %v2410
      %v2441 = vadd.f32 %v471, %v2415
      %v2442 = vadd.f32 %v472, %v2420
      %v2443 = vadd.f32 %v473, %v2425
      %v2444 = vadd.f32 %v474, %v2430
      %v2445 = vadd.f32 %v475, %v2435
      %v2446 = vld [vmem:[%s6] sm:$0x1]
      %v2447 = vld [vmem:[%s7] sm:$0x1]
      %v2448 = vsel %vm487, %v2438, 0.0
      %2449 = vadd.xlane.f32.xlu0 %v2448
      %v2450 = vpop.xlane.xlu0 %2449
      %v2451 = vsel %vm487, %v2439, 0.0
      %2452 = vadd.xlane.f32.xlu0 %v2451
      %v2453 = vpop.xlane.xlu0 %2452
      %v2454 = vsel %vm487, %v2440, 0.0
      %2455 = vadd.xlane.f32.xlu0 %v2454
      %v2456 = vpop.xlane.xlu0 %2455
      %v2457 = vsel %vm487, %v2441, 0.0
      %2458 = vadd.xlane.f32.xlu0 %v2457
      %v2459 = vpop.xlane.xlu0 %2458
      %v2460 = vsel %vm487, %v2442, 0.0
      %2461 = vadd.xlane.f32.xlu0 %v2460
      %v2462 = vpop.xlane.xlu0 %2461
      %v2463 = vsel %vm487, %v2443, 0.0
      %2464 = vadd.xlane.f32.xlu0 %v2463
      %v2465 = vpop.xlane.xlu0 %2464
      %v2466 = vsel %vm487, %v2444, 0.0
      %2467 = vadd.xlane.f32.xlu0 %v2466
      %v2468 = vpop.xlane.xlu0 %2467
      %v2469 = vsel %vm487, %v2445, 0.0
      %2470 = vadd.xlane.f32.xlu0 %v2469
      %v2471 = vpop.xlane.xlu0 %2470
      %v2472 = vrcp.pop 32.0
      %v2473 = vmul.f32 %v2450, %v2472
      %v2474 = vmul.f32 %v2453, %v2472
      %v2475 = vmul.f32 %v2456, %v2472
      %v2476 = vmul.f32 %v2459, %v2472
      %v2477 = vmul.f32 %v2462, %v2472
      %v2478 = vmul.f32 %v2465, %v2472
      %v2479 = vmul.f32 %v2468, %v2472
      %v2480 = vmul.f32 %v2471, %v2472
      %v2481 = vsub.f32 %v2438, %v2473
      %v2482 = vsub.f32 %v2439, %v2474
      %v2483 = vsub.f32 %v2440, %v2475
      %v2484 = vsub.f32 %v2441, %v2476
      %v2485 = vsub.f32 %v2442, %v2477
      %v2486 = vsub.f32 %v2443, %v2478
      %v2487 = vsub.f32 %v2444, %v2479
      %v2488 = vsub.f32 %v2445, %v2480
      %v2489 = vmul.f32 %v2481, %v2481
      %v2490 = vmul.f32 %v2482, %v2482
      %v2491 = vmul.f32 %v2483, %v2483
      %v2492 = vmul.f32 %v2484, %v2484
      %v2493 = vmul.f32 %v2485, %v2485
      %v2494 = vmul.f32 %v2486, %v2486
      %v2495 = vmul.f32 %v2487, %v2487
      %v2496 = vmul.f32 %v2488, %v2488
      %v2497 = vsel %vm487, %v2489, 0.0
      %2498 = vadd.xlane.f32.xlu0 %v2497
      %v2499 = vpop.xlane.xlu0 %2498
      %v2500 = vsel %vm487, %v2490, 0.0
      %2501 = vadd.xlane.f32.xlu0 %v2500
      %v2502 = vpop.xlane.xlu0 %2501
      %v2503 = vsel %vm487, %v2491, 0.0
      %2504 = vadd.xlane.f32.xlu0 %v2503
      %v2505 = vpop.xlane.xlu0 %2504
      %v2506 = vsel %vm487, %v2492, 0.0
      %2507 = vadd.xlane.f32.xlu0 %v2506
      %v2508 = vpop.xlane.xlu0 %2507
      %v2509 = vsel %vm487, %v2493, 0.0
      %2510 = vadd.xlane.f32.xlu0 %v2509
      %v2511 = vpop.xlane.xlu0 %2510
      %v2512 = vsel %vm487, %v2494, 0.0
      %2513 = vadd.xlane.f32.xlu0 %v2512
      %v2514 = vpop.xlane.xlu0 %2513
      %v2515 = vsel %vm487, %v2495, 0.0
      %2516 = vadd.xlane.f32.xlu0 %v2515
      %v2517 = vpop.xlane.xlu0 %2516
      %v2518 = vsel %vm487, %v2496, 0.0
      %2519 = vadd.xlane.f32.xlu0 %v2518
      %v2520 = vpop.xlane.xlu0 %2519
      %v2521 = vmul.f32 %v2499, %v2472
      %v2522 = vmul.f32 %v2502, %v2472
      %v2523 = vmul.f32 %v2505, %v2472
      %v2524 = vmul.f32 %v2508, %v2472
      %v2525 = vmul.f32 %v2511, %v2472
      %v2526 = vmul.f32 %v2514, %v2472
      %v2527 = vmul.f32 %v2517, %v2472
      %v2528 = vmul.f32 %v2520, %v2472
      %v2529 = vadd.f32 %v2521, 1e-05
      %v2530 = vadd.f32 %v2522, 1e-05
      %v2531 = vadd.f32 %v2523, 1e-05
      %v2532 = vadd.f32 %v2524, 1e-05
      %v2533 = vadd.f32 %v2525, 1e-05
      %v2534 = vadd.f32 %v2526, 1e-05
      %v2535 = vadd.f32 %v2527, 1e-05
      %v2536 = vadd.f32 %v2528, 1e-05
      %v2537 = vrsqrt.pop %v2529
      %v2538 = vrsqrt.pop %v2530
      %v2539 = vrsqrt.pop %v2531
      %v2540 = vrsqrt.pop %v2532
      %v2541 = vrsqrt.pop %v2533
      %v2542 = vrsqrt.pop %v2534
      %v2543 = vrsqrt.pop %v2535
      %v2544 = vrsqrt.pop %v2536
      %v2545 = vmul.f32 %v2481, %v2537
      %v2546 = vmul.f32 %v2482, %v2538
      %v2547 = vmul.f32 %v2483, %v2539
      %v2548 = vmul.f32 %v2484, %v2540
      %v2549 = vmul.f32 %v2485, %v2541
      %v2550 = vmul.f32 %v2486, %v2542
      %v2551 = vmul.f32 %v2487, %v2543
      %v2552 = vmul.f32 %v2488, %v2544
      %v2554 = vlaneseq
      %v2555 = vshrl.u32 %v2554, 7
      %v2556 = vsub.s32 0, %v2555
      %v2557 = vrot.slane %v2446, %v2556
      %v2559 = vmul.f32 %v2545, %v2557
      %v2560 = vmul.f32 %v2546, %v2557
      %v2561 = vmul.f32 %v2547, %v2557
      %v2562 = vmul.f32 %v2548, %v2557
      %v2563 = vmul.f32 %v2549, %v2557
      %v2564 = vmul.f32 %v2550, %v2557
      %v2565 = vmul.f32 %v2551, %v2557
      %v2566 = vmul.f32 %v2552, %v2557
      %v2568 = vlaneseq
      %v2569 = vshrl.u32 %v2568, 7
      %v2570 = vsub.s32 0, %v2569
      %v2571 = vrot.slane %v2447, %v2570
      %v2573 = vadd.f32 %v2559, %v2571
      %v2574 = vadd.f32 %v2560, %v2571
      %v2575 = vadd.f32 %v2561, %v2571
      %v2576 = vadd.f32 %v2562, %v2571
      %v2577 = vadd.f32 %v2563, %v2571
      %v2578 = vadd.f32 %v2564, %v2571
      %v2579 = vadd.f32 %v2565, %v2571
      %v2580 = vadd.f32 %v2566, %v2571
      %v2581 = vld [vmem:[%s8] sm:$0xff]
      %v2582 = vld [vmem:[%s8 + $0x8] sm:$0xff]
      %v2583 = vld [vmem:[%s8 + $0x10] sm:$0xff]
      %v2584 = vld [vmem:[%s8 + $0x18] sm:$0xff]
      %v2585 = vld [vmem:[%s8 + $0x20] sm:$0xff]
      %v2586 = vld [vmem:[%s8 + $0x28] sm:$0xff]
      %v2587 = vld [vmem:[%s8 + $0x30] sm:$0xff]
      %v2588 = vld [vmem:[%s8 + $0x38] sm:$0xff]
      %v2589 = vld [vmem:[%s8 + $0x40] sm:$0xff]
      %v2590 = vld [vmem:[%s8 + $0x48] sm:$0xff]
      %v2591 = vld [vmem:[%s8 + $0x50] sm:$0xff]
      %v2592 = vld [vmem:[%s8 + $0x58] sm:$0xff]
      %v2593 = vld [vmem:[%s8 + $0x60] sm:$0xff]
      %v2594 = vld [vmem:[%s8 + $0x68] sm:$0xff]
      %v2595 = vld [vmem:[%s8 + $0x70] sm:$0xff]
      %v2596 = vld [vmem:[%s8 + $0x78] sm:$0xff]
      %v2597 = vld [vmem:[%s8 + $0x80] sm:$0xff]
      %v2598 = vld [vmem:[%s8 + $0x88] sm:$0xff]
      %v2599 = vld [vmem:[%s8 + $0x90] sm:$0xff]
      %v2600 = vld [vmem:[%s8 + $0x98] sm:$0xff]
      %v2601 = vld [vmem:[%s8 + $0xa0] sm:$0xff]
      %v2602 = vld [vmem:[%s8 + $0xa8] sm:$0xff]
      %v2603 = vld [vmem:[%s8 + $0xb0] sm:$0xff]
      %v2604 = vld [vmem:[%s8 + $0xb8] sm:$0xff]
      %v2605 = vld [vmem:[%s8 + $0xc0] sm:$0xff]
      %v2606 = vld [vmem:[%s8 + $0xc8] sm:$0xff]
      %v2607 = vld [vmem:[%s8 + $0xd0] sm:$0xff]
      %v2608 = vld [vmem:[%s8 + $0xd8] sm:$0xff]
      %v2609 = vld [vmem:[%s8 + $0xe0] sm:$0xff]
      %v2610 = vld [vmem:[%s8 + $0xe8] sm:$0xff]
      %v2611 = vld [vmem:[%s8 + $0xf0] sm:$0xff]
      %v2612 = vld [vmem:[%s8 + $0xf8] sm:$0xff]
      %v2613 = vld [vmem:[%s8 + $0x100] sm:$0xff]
      %v2614 = vld [vmem:[%s8 + $0x108] sm:$0xff]
      %v2615 = vld [vmem:[%s8 + $0x110] sm:$0xff]
      %v2616 = vld [vmem:[%s8 + $0x118] sm:$0xff]
      %v2617 = vld [vmem:[%s8 + $0x120] sm:$0xff]
      %v2618 = vld [vmem:[%s8 + $0x128] sm:$0xff]
      %v2619 = vld [vmem:[%s8 + $0x130] sm:$0xff]
      %v2620 = vld [vmem:[%s8 + $0x138] sm:$0xff]
      %v2621 = vld [vmem:[%s8 + $0x140] sm:$0xff]
      %v2622 = vld [vmem:[%s8 + $0x148] sm:$0xff]
      %v2623 = vld [vmem:[%s8 + $0x150] sm:$0xff]
      %v2624 = vld [vmem:[%s8 + $0x158] sm:$0xff]
      %v2625 = vld [vmem:[%s8 + $0x160] sm:$0xff]
      %v2626 = vld [vmem:[%s8 + $0x168] sm:$0xff]
      %v2627 = vld [vmem:[%s8 + $0x170] sm:$0xff]
      %v2628 = vld [vmem:[%s8 + $0x178] sm:$0xff]
      %v2629 = vld [vmem:[%s8 + $0x180] sm:$0xff]
      %v2630 = vld [vmem:[%s8 + $0x188] sm:$0xff]
      %v2631 = vld [vmem:[%s8 + $0x190] sm:$0xff]
      %v2632 = vld [vmem:[%s8 + $0x198] sm:$0xff]
      %v2633 = vld [vmem:[%s8 + $0x1a0] sm:$0xff]
      %v2634 = vld [vmem:[%s8 + $0x1a8] sm:$0xff]
      %v2635 = vld [vmem:[%s8 + $0x1b0] sm:$0xff]
      %v2636 = vld [vmem:[%s8 + $0x1b8] sm:$0xff]
      %v2637 = vld [vmem:[%s8 + $0x1c0] sm:$0xff]
      %v2638 = vld [vmem:[%s8 + $0x1c8] sm:$0xff]
      %v2639 = vld [vmem:[%s8 + $0x1d0] sm:$0xff]
      %v2640 = vld [vmem:[%s8 + $0x1d8] sm:$0xff]
      %v2641 = vld [vmem:[%s8 + $0x1e0] sm:$0xff]
      %v2642 = vld [vmem:[%s8 + $0x1e8] sm:$0xff]
      %v2643 = vld [vmem:[%s8 + $0x1f0] sm:$0xff]
      %v2644 = vld [vmem:[%s8 + $0x1f8] sm:$0xff]
      %v2645 = vld [vmem:[%s9] sm:$0xff]
      %v2646 = vld [vmem:[%s9 + $0x8] sm:$0xff]
      %v2649 = vlaneseq
      %v2650 = vshrl.u32 %v2649, 7
      %v2651 = vsub.s32 0, %v2650
      %v2652 = vrot.slane %v2645, %v2651
      %v2653 = vlaneseq
      %v2654 = vshrl.u32 %v2653, 7
      %v2655 = vsub.s32 1, %v2654
      %v2656 = vrot.slane %v2645, %v2655
      %v2657 = vlaneseq
      %v2658 = vshrl.u32 %v2657, 7
      %v2659 = vsub.s32 2, %v2658
      %v2660 = vrot.slane %v2645, %v2659
      %v2661 = vlaneseq
      %v2662 = vshrl.u32 %v2661, 7
      %v2663 = vsub.s32 3, %v2662
      %v2664 = vrot.slane %v2645, %v2663
      %v2665 = vlaneseq
      %v2666 = vshrl.u32 %v2665, 7
      %v2667 = vsub.s32 4, %v2666
      %v2668 = vrot.slane %v2645, %v2667
      %v2669 = vlaneseq
      %v2670 = vshrl.u32 %v2669, 7
      %v2671 = vsub.s32 5, %v2670
      %v2672 = vrot.slane %v2645, %v2671
      %v2673 = vlaneseq
      %v2674 = vshrl.u32 %v2673, 7
      %v2675 = vsub.s32 6, %v2674
      %v2676 = vrot.slane %v2645, %v2675
      %v2677 = vlaneseq
      %v2678 = vshrl.u32 %v2677, 7
      %v2679 = vsub.s32 7, %v2678
      %v2680 = vrot.slane %v2645, %v2679
      %v2681 = vlaneseq
      %v2682 = vshrl.u32 %v2681, 7
      %v2683 = vsub.s32 0, %v2682
      %v2684 = vrot.slane %v2646, %v2683
      %v2685 = vlaneseq
      %v2686 = vshrl.u32 %v2685, 7
      %v2687 = vsub.s32 1, %v2686
      %v2688 = vrot.slane %v2646, %v2687
      %v2689 = vlaneseq
      %v2690 = vshrl.u32 %v2689, 7
      %v2691 = vsub.s32 2, %v2690
      %v2692 = vrot.slane %v2646, %v2691
      %v2693 = vlaneseq
      %v2694 = vshrl.u32 %v2693, 7
      %v2695 = vsub.s32 3, %v2694
      %v2696 = vrot.slane %v2646, %v2695
      %v2697 = vlaneseq
      %v2698 = vshrl.u32 %v2697, 7
      %v2699 = vsub.s32 4, %v2698
      %v2700 = vrot.slane %v2646, %v2699
      %v2701 = vlaneseq
      %v2702 = vshrl.u32 %v2701, 7
      %v2703 = vsub.s32 5, %v2702
      %v2704 = vrot.slane %v2646, %v2703
      %v2705 = vlaneseq
      %v2706 = vshrl.u32 %v2705, 7
      %v2707 = vsub.s32 6, %v2706
      %v2708 = vrot.slane %v2646, %v2707
      %v2709 = vlaneseq
      %v2710 = vshrl.u32 %v2709, 7
      %v2711 = vsub.s32 7, %v2710
      %v2712 = vrot.slane %v2646, %v2711
      %v2730 = vsel %vm487, %v2573, 0
      %v2733 = vsel %vm487, %v2574, 0
      %v2736 = vsel %vm487, %v2575, 0
      %v2739 = vsel %vm487, %v2576, 0
      %v2742 = vsel %vm487, %v2577, 0
      %v2745 = vsel %vm487, %v2578, 0
      %v2748 = vsel %vm487, %v2579, 0
      %v2751 = vsel %vm487, %v2580, 0
      %2753 = vmatprep.subr.mxu0 %v2582
      %2754 = vmatpush1.msra.mxu0 %v2581
      %2755 = vmatprep.subr.mxu0 %v2598
      %2756 = vmatpush1.msra.mxu0 %v2597
      %2757 = vmatprep.subr.mxu0 %v2614
      %2758 = vmatpush1.msra.mxu0 %v2613
      %2759 = vmatprep.subr.mxu0 %v2630
      %2760 = vmatpush1.msra.mxu0 %v2629
      %2761 = vmatprep.subr.mxu0 0.0
      %2762 = vmatpush1.msra.mxu0 0.0
      %2763 = vmatprep.subr.mxu0 0.0
      %2764 = vmatpush1.msra.mxu0 0.0
      %2765 = vmatprep.subr.mxu0 0.0
      %2766 = vmatpush1.msra.mxu0 0.0
      %2767 = vmatprep.subr.mxu0 0.0
      %2768 = vmatpush1.msra.mxu0 0.0
      %2769 = vmatprep.subr.mxu0 0.0
      %2770 = vmatpush1.msra.mxu0 0.0
      %2771 = vmatprep.subr.mxu0 0.0
      %2772 = vmatpush1.msra.mxu0 0.0
      %2773 = vmatprep.subr.mxu0 0.0
      %2774 = vmatpush1.msra.mxu0 0.0
      %2775 = vmatprep.subr.mxu0 0.0
      %2776 = vmatpush1.msra.mxu0 0.0
      %2777 = vmatprep.subr.mxu0 0.0
      %2778 = vmatpush1.msra.mxu0 0.0
      %2779 = vmatprep.subr.mxu0 0.0
      %2780 = vmatpush1.msra.mxu0 0.0
      %2781 = vmatprep.subr.mxu0 0.0
      %2782 = vmatpush1.msra.mxu0 0.0
      %2783 = vmatprep.subr.mxu0 0.0
      %2784 = vmatpush1.msra.mxu0 0.0
      %2785 = vmatprep.subr.mxu0 0.0
      %2786 = vmatpush1.msra.mxu0 0.0
      %2787 = vmatprep.subr.mxu0 0.0
      %2788 = vmatpush1.msra.mxu0 0.0
      %2789 = vmatprep.subr.mxu0 0.0
      %2790 = vmatpush1.msra.mxu0 0.0
      %2791 = vmatprep.subr.mxu0 0.0
      %2792 = vmatpush1.msra.mxu0 0.0
      %2793 = vmatprep.subr.mxu0 0.0
      %2794 = vmatpush1.msra.mxu0 0.0
      %2795 = vmatprep.subr.mxu0 0.0
      %2796 = vmatpush1.msra.mxu0 0.0
      %2797 = vmatprep.subr.mxu0 0.0
      %2798 = vmatpush1.msra.mxu0 0.0
      %2799 = vmatprep.subr.mxu0 0.0
      %2800 = vmatpush1.msra.mxu0 0.0
      %2801 = vmatprep.subr.mxu0 0.0
      %2802 = vmatpush1.msra.mxu0 0.0
      %2803 = vmatprep.subr.mxu0 0.0
      %2804 = vmatpush1.msra.mxu0 0.0
      %2805 = vmatprep.subr.mxu0 0.0
      %2806 = vmatpush1.msra.mxu0 0.0
      %2807 = vmatprep.subr.mxu0 0.0
      %2808 = vmatpush1.msra.mxu0 0.0
      %2809 = vmatprep.subr.mxu0 0.0
      %2810 = vmatpush1.msra.mxu0 0.0
      %2811 = vmatprep.subr.mxu0 0.0
      %2812 = vmatpush1.msra.mxu0 0.0
      %2813 = vmatprep.subr.mxu0 0.0
      %2814 = vmatpush1.msra.mxu0 0.0
      %2815 = vmatprep.subr.mxu0 0.0
      %2816 = vmatpush1.msra.mxu0 0.0
      %2817 = vmatprep.mubr.f32.mxu0 0.0
      %2818 = vmatmul.mubr.f32.gmra.mrb[0].mxu0 %v2730
      %v2819 = vpop.f32.mrb[0].mxu0
      %v2820 = vadd.f32 %v2652, %v2819
      %v2821 = vpop.f32.mrb[0].mxu0
      %v2822 = vadd.f32 %v2656, %v2821
      %2823 = vmatprep.mubr.f32.mxu0 0.0
      %2824 = vmatmul.mubr.f32.gmra.mrb[0].mxu0 %v2733
      %v2825 = vpop.f32.mrb[0].mxu0
      %v2826 = vadd.f32 %v2652, %v2825
      %v2827 = vpop.f32.mrb[0].mxu0
      %v2828 = vadd.f32 %v2656, %v2827
      %2829 = vmatprep.mubr.f32.mxu0 0.0
      %2830 = vmatmul.mubr.f32.gmra.mrb[0].mxu0 %v2736
      %v2831 = vpop.f32.mrb[0].mxu0
      %v2832 = vadd.f32 %v2652, %v2831
      %v2833 = vpop.f32.mrb[0].mxu0
      %v2834 = vadd.f32 %v2656, %v2833
      %2835 = vmatprep.mubr.f32.mxu0 0.0
      %2836 = vmatmul.mubr.f32.gmra.mrb[0].mxu0 %v2739
      %v2837 = vpop.f32.mrb[0].mxu0
      %v2838 = vadd.f32 %v2652, %v2837
      %v2839 = vpop.f32.mrb[0].mxu0
      %v2840 = vadd.f32 %v2656, %v2839
      %2841 = vmatprep.mubr.f32.mxu0 0.0
      %2842 = vmatmul.mubr.f32.gmra.mrb[0].mxu0 %v2742
      %v2843 = vpop.f32.mrb[0].mxu0
      %v2844 = vadd.f32 %v2652, %v2843
      %v2845 = vpop.f32.mrb[0].mxu0
      %v2846 = vadd.f32 %v2656, %v2845
      %2847 = vmatprep.mubr.f32.mxu0 0.0
      %2848 = vmatmul.mubr.f32.gmra.mrb[0].mxu0 %v2745
      %v2849 = vpop.f32.mrb[0].mxu0
      %v2850 = vadd.f32 %v2652, %v2849
      %v2851 = vpop.f32.mrb[0].mxu0
      %v2852 = vadd.f32 %v2656, %v2851
      %2853 = vmatprep.mubr.f32.mxu0 0.0
      %2854 = vmatmul.mubr.f32.gmra.mrb[0].mxu0 %v2748
      %v2855 = vpop.f32.mrb[0].mxu0
      %v2856 = vadd.f32 %v2652, %v2855
      %v2857 = vpop.f32.mrb[0].mxu0
      %v2858 = vadd.f32 %v2656, %v2857
      %2859 = vmatprep.mubr.f32.mxu0 0.0
      %2860 = vmatmul.mubr.f32.gmra.mrb[0].mxu0 %v2751
      %v2861 = vpop.f32.mrb[0].mxu0
      %v2862 = vadd.f32 %v2652, %v2861
      %v2863 = vpop.f32.mrb[0].mxu0
      %v2864 = vadd.f32 %v2656, %v2863
      %2865 = vdwg.mxu0
      %2866 = vmatprep.subr.mxu0 %v2584
      %2867 = vmatpush1.msra.mxu0 %v2583
      %2868 = vmatprep.subr.mxu0 %v2600
      %2869 = vmatpush1.msra.mxu0 %v2599
      %2870 = vmatprep.subr.mxu0 %v2616
      %2871 = vmatpush1.msra.mxu0 %v2615
      %2872 = vmatprep.subr.mxu0 %v2632
      %2873 = vmatpush1.msra.mxu0 %v2631
      %2874 = vmatprep.subr.mxu0 0.0
      %2875 = vmatpush1.msra.mxu0 0.0
      %2876 = vmatprep.subr.mxu0 0.0
      %2877 = vmatpush1.msra.mxu0 0.0
      %2878 = vmatprep.subr.mxu0 0.0
      %2879 = vmatpush1.msra.mxu0 0.0
      %2880 = vmatprep.subr.mxu0 0.0
      %2881 = vmatpush1.msra.mxu0 0.0
      %2882 = vmatprep.subr.mxu0 0.0
      %2883 = vmatpush1.msra.mxu0 0.0
      %2884 = vmatprep.subr.mxu0 0.0
      %2885 = vmatpush1.msra.mxu0 0.0
      %2886 = vmatprep.subr.mxu0 0.0
      %2887 = vmatpush1.msra.mxu0 0.0
      %2888 = vmatprep.subr.mxu0 0.0
      %2889 = vmatpush1.msra.mxu0 0.0
      %2890 = vmatprep.subr.mxu0 0.0
      %2891 = vmatpush1.msra.mxu0 0.0
      %2892 = vmatprep.subr.mxu0 0.0
      %2893 = vmatpush1.msra.mxu0 0.0
      %2894 = vmatprep.subr.mxu0 0.0
      %2895 = vmatpush1.msra.mxu0 0.0
      %2896 = vmatprep.subr.mxu0 0.0
      %2897 = vmatpush1.msra.mxu0 0.0
      %2898 = vmatprep.subr.mxu0 0.0
      %2899 = vmatpush1.msra.mxu0 0.0
      %2900 = vmatprep.subr.mxu0 0.0
      %2901 = vmatpush1.msra.mxu0 0.0
      %2902 = vmatprep.subr.mxu0 0.0
      %2903 = vmatpush1.msra.mxu0 0.0
      %2904 = vmatprep.subr.mxu0 0.0
      %2905 = vmatpush1.msra.mxu0 0.0
      %2906 = vmatprep.subr.mxu0 0.0
      %2907 = vmatpush1.msra.mxu0 0.0
      %2908 = vmatprep.subr.mxu0 0.0
      %2909 = vmatpush1.msra.mxu0 0.0
      %2910 = vmatprep.subr.mxu0 0.0
      %2911 = vmatpush1.msra.mxu0 0.0
      %2912 = vmatprep.subr.mxu0 0.0
      %2913 = vmatpush1.msra.mxu0 0.0
      %2914 = vmatprep.subr.mxu0 0.0
      %2915 = vmatpush1.msra.mxu0 0.0
      %2916 = vmatprep.subr.mxu0 0.0
      %2917 = vmatpush1.msra.mxu0 0.0
      %2918 = vmatprep.subr.mxu0 0.0
      %2919 = vmatpush1.msra.mxu0 0.0
      %2920 = vmatprep.subr.mxu0 0.0
      %2921 = vmatpush1.msra.mxu0 0.0
      %2922 = vmatprep.subr.mxu0 0.0
      %2923 = vmatpush1.msra.mxu0 0.0
      %2924 = vmatprep.subr.mxu0 0.0
      %2925 = vmatpush1.msra.mxu0 0.0
      %2926 = vmatprep.subr.mxu0 0.0
      %2927 = vmatpush1.msra.mxu0 0.0
      %2928 = vmatprep.subr.mxu0 0.0
      %2929 = vmatpush1.msra.mxu0 0.0
      %2930 = vmatprep.mubr.f32.mxu0 0.0
      %2931 = vmatmul.mubr.f32.gmra.mrb[0].mxu0 %v2730
      %v2932 = vpop.f32.mrb[0].mxu0
      %v2933 = vadd.f32 %v2660, %v2932
      %v2934 = vpop.f32.mrb[0].mxu0
      %v2935 = vadd.f32 %v2664, %v2934
      %2936 = vmatprep.mubr.f32.mxu0 0.0
      %2937 = vmatmul.mubr.f32.gmra.mrb[0].mxu0 %v2733
      %v2938 = vpop.f32.mrb[0].mxu0
      %v2939 = vadd.f32 %v2660, %v2938
      %v2940 = vpop.f32.mrb[0].mxu0
      %v2941 = vadd.f32 %v2664, %v2940
      %2942 = vmatprep.mubr.f32.mxu0 0.0
      %2943 = vmatmul.mubr.f32.gmra.mrb[0].mxu0 %v2736
      %v2944 = vpop.f32.mrb[0].mxu0
      %v2945 = vadd.f32 %v2660, %v2944
      %v2946 = vpop.f32.mrb[0].mxu0
      %v2947 = vadd.f32 %v2664, %v2946
      %2948 = vmatprep.mubr.f32.mxu0 0.0
      %2949 = vmatmul.mubr.f32.gmra.mrb[0].mxu0 %v2739
      %v2950 = vpop.f32.mrb[0].mxu0
      %v2951 = vadd.f32 %v2660, %v2950
      %v2952 = vpop.f32.mrb[0].mxu0
      %v2953 = vadd.f32 %v2664, %v2952
      %2954 = vmatprep.mubr.f32.mxu0 0.0
      %2955 = vmatmul.mubr.f32.gmra.mrb[0].mxu0 %v2742
      %v2956 = vpop.f32.mrb[0].mxu0
      %v2957 = vadd.f32 %v2660, %v2956
      %v2958 = vpop.f32.mrb[0].mxu0
      %v2959 = vadd.f32 %v2664, %v2958
      %2960 = vmatprep.mubr.f32.mxu0 0.0
      %2961 = vmatmul.mubr.f32.gmra.mrb[0].mxu0 %v2745
      %v2962 = vpop.f32.mrb[0].mxu0
      %v2963 = vadd.f32 %v2660, %v2962
      %v2964 = vpop.f32.mrb[0].mxu0
      %v2965 = vadd.f32 %v2664, %v2964
      %2966 = vmatprep.mubr.f32.mxu0 0.0
      %2967 = vmatmul.mubr.f32.gmra.mrb[0].mxu0 %v2748
      %v2968 = vpop.f32.mrb[0].mxu0
      %v2969 = vadd.f32 %v2660, %v2968
      %v2970 = vpop.f32.mrb[0].mxu0
      %v2971 = vadd.f32 %v2664, %v2970
      %2972 = vmatprep.mubr.f32.mxu0 0.0
      %2973 = vmatmul.mubr.f32.gmra.mrb[0].mxu0 %v2751
      %v2974 = vpop.f32.mrb[0].mxu0
      %v2975 = vadd.f32 %v2660, %v2974
      %v2976 = vpop.f32.mrb[0].mxu0
      %v2977 = vadd.f32 %v2664, %v2976
      %2978 = vdwg.mxu0
      %2979 = vmatprep.subr.mxu0 %v2586
      %2980 = vmatpush1.msra.mxu0 %v2585
      %2981 = vmatprep.subr.mxu0 %v2602
      %2982 = vmatpush1.msra.mxu0 %v2601
      %2983 = vmatprep.subr.mxu0 %v2618
      %2984 = vmatpush1.msra.mxu0 %v2617
      %2985 = vmatprep.subr.mxu0 %v2634
      %2986 = vmatpush1.msra.mxu0 %v2633
      %2987 = vmatprep.subr.mxu0 0.0
      %2988 = vmatpush1.msra.mxu0 0.0
      %2989 = vmatprep.subr.mxu0 0.0
      %2990 = vmatpush1.msra.mxu0 0.0
      %2991 = vmatprep.subr.mxu0 0.0
      %2992 = vmatpush1.msra.mxu0 0.0
      %2993 = vmatprep.subr.mxu0 0.0
      %2994 = vmatpush1.msra.mxu0 0.0
      %2995 = vmatprep.subr.mxu0 0.0
      %2996 = vmatpush1.msra.mxu0 0.0
      %2997 = vmatprep.subr.mxu0 0.0
      %2998 = vmatpush1.msra.mxu0 0.0
      %2999 = vmatprep.subr.mxu0 0.0
      %3000 = vmatpush1.msra.mxu0 0.0
      %3001 = vmatprep.subr.mxu0 0.0
      %3002 = vmatpush1.msra.mxu0 0.0
      %3003 = vmatprep.subr.mxu0 0.0
      %3004 = vmatpush1.msra.mxu0 0.0
      %3005 = vmatprep.subr.mxu0 0.0
      %3006 = vmatpush1.msra.mxu0 0.0
      %3007 = vmatprep.subr.mxu0 0.0
      %3008 = vmatpush1.msra.mxu0 0.0
      %3009 = vmatprep.subr.mxu0 0.0
      %3010 = vmatpush1.msra.mxu0 0.0
      %3011 = vmatprep.subr.mxu0 0.0
      %3012 = vmatpush1.msra.mxu0 0.0
      %3013 = vmatprep.subr.mxu0 0.0
      %3014 = vmatpush1.msra.mxu0 0.0
      %3015 = vmatprep.subr.mxu0 0.0
      %3016 = vmatpush1.msra.mxu0 0.0
      %3017 = vmatprep.subr.mxu0 0.0
      %3018 = vmatpush1.msra.mxu0 0.0
      %3019 = vmatprep.subr.mxu0 0.0
      %3020 = vmatpush1.msra.mxu0 0.0
      %3021 = vmatprep.subr.mxu0 0.0
      %3022 = vmatpush1.msra.mxu0 0.0
      %3023 = vmatprep.subr.mxu0 0.0
      %3024 = vmatpush1.msra.mxu0 0.0
      %3025 = vmatprep.subr.mxu0 0.0
      %3026 = vmatpush1.msra.mxu0 0.0
      %3027 = vmatprep.subr.mxu0 0.0
      %3028 = vmatpush1.msra.mxu0 0.0
      %3029 = vmatprep.subr.mxu0 0.0
      %3030 = vmatpush1.msra.mxu0 0.0
      %3031 = vmatprep.subr.mxu0 0.0
      %3032 = vmatpush1.msra.mxu0 0.0
      %3033 = vmatprep.subr.mxu0 0.0
      %3034 = vmatpush1.msra.mxu0 0.0
      %3035 = vmatprep.subr.mxu0 0.0
      %3036 = vmatpush1.msra.mxu0 0.0
      %3037 = vmatprep.subr.mxu0 0.0
      %3038 = vmatpush1.msra.mxu0 0.0
      %3039 = vmatprep.subr.mxu0 0.0
      %3040 = vmatpush1.msra.mxu0 0.0
      %3041 = vmatprep.subr.mxu0 0.0
      %3042 = vmatpush1.msra.mxu0 0.0
      %3043 = vmatprep.mubr.f32.mxu0 0.0
      %3044 = vmatmul.mubr.f32.gmra.mrb[0].mxu0 %v2730
      %v3045 = vpop.f32.mrb[0].mxu0
      %v3046 = vadd.f32 %v2668, %v3045
      %v3047 = vpop.f32.mrb[0].mxu0
      %v3048 = vadd.f32 %v2672, %v3047
      %3049 = vmatprep.mubr.f32.mxu0 0.0
      %3050 = vmatmul.mubr.f32.gmra.mrb[0].mxu0 %v2733
      %v3051 = vpop.f32.mrb[0].mxu0
      %v3052 = vadd.f32 %v2668, %v3051
      %v3053 = vpop.f32.mrb[0].mxu0
      %v3054 = vadd.f32 %v2672, %v3053
      %3055 = vmatprep.mubr.f32.mxu0 0.0
      %3056 = vmatmul.mubr.f32.gmra.mrb[0].mxu0 %v2736
      %v3057 = vpop.f32.mrb[0].mxu0
      %v3058 = vadd.f32 %v2668, %v3057
      %v3059 = vpop.f32.mrb[0].mxu0
      %v3060 = vadd.f32 %v2672, %v3059
      %3061 = vmatprep.mubr.f32.mxu0 0.0
      %3062 = vmatmul.mubr.f32.gmra.mrb[0].mxu0 %v2739
      %v3063 = vpop.f32.mrb[0].mxu0
      %v3064 = vadd.f32 %v2668, %v3063
      %v3065 = vpop.f32.mrb[0].mxu0
      %v3066 = vadd.f32 %v2672, %v3065
      %3067 = vmatprep.mubr.f32.mxu0 0.0
      %3068 = vmatmul.mubr.f32.gmra.mrb[0].mxu0 %v2742
      %v3069 = vpop.f32.mrb[0].mxu0
      %v3070 = vadd.f32 %v2668, %v3069
      %v3071 = vpop.f32.mrb[0].mxu0
      %v3072 = vadd.f32 %v2672, %v3071
      %3073 = vmatprep.mubr.f32.mxu0 0.0
      %3074 = vmatmul.mubr.f32.gmra.mrb[0].mxu0 %v2745
      %v3075 = vpop.f32.mrb[0].mxu0
      %v3076 = vadd.f32 %v2668, %v3075
      %v3077 = vpop.f32.mrb[0].mxu0
      %v3078 = vadd.f32 %v2672, %v3077
      %3079 = vmatprep.mubr.f32.mxu0 0.0
      %3080 = vmatmul.mubr.f32.gmra.mrb[0].mxu0 %v2748
      %v3081 = vpop.f32.mrb[0].mxu0
      %v3082 = vadd.f32 %v2668, %v3081
      %v3083 = vpop.f32.mrb[0].mxu0
      %v3084 = vadd.f32 %v2672, %v3083
      %3085 = vmatprep.mubr.f32.mxu0 0.0
      %3086 = vmatmul.mubr.f32.gmra.mrb[0].mxu0 %v2751
      %v3087 = vpop.f32.mrb[0].mxu0
      %v3088 = vadd.f32 %v2668, %v3087
      %v3089 = vpop.f32.mrb[0].mxu0
      %v3090 = vadd.f32 %v2672, %v3089
      %3091 = vdwg.mxu0
      %3092 = vmatprep.subr.mxu0 %v2588
      %3093 = vmatpush1.msra.mxu0 %v2587
      %3094 = vmatprep.subr.mxu0 %v2604
      %3095 = vmatpush1.msra.mxu0 %v2603
      %3096 = vmatprep.subr.mxu0 %v2620
      %3097 = vmatpush1.msra.mxu0 %v2619
      %3098 = vmatprep.subr.mxu0 %v2636
      %3099 = vmatpush1.msra.mxu0 %v2635
      %3100 = vmatprep.subr.mxu0 0.0
      %3101 = vmatpush1.msra.mxu0 0.0
      %3102 = vmatprep.subr.mxu0 0.0
      %3103 = vmatpush1.msra.mxu0 0.0
      %3104 = vmatprep.subr.mxu0 0.0
      %3105 = vmatpush1.msra.mxu0 0.0
      %3106 = vmatprep.subr.mxu0 0.0
      %3107 = vmatpush1.msra.mxu0 0.0
      %3108 = vmatprep.subr.mxu0 0.0
      %3109 = vmatpush1.msra.mxu0 0.0
      %3110 = vmatprep.subr.mxu0 0.0
      %3111 = vmatpush1.msra.mxu0 0.0
      %3112 = vmatprep.subr.mxu0 0.0
      %3113 = vmatpush1.msra.mxu0 0.0
      %3114 = vmatprep.subr.mxu0 0.0
      %3115 = vmatpush1.msra.mxu0 0.0
      %3116 = vmatprep.subr.mxu0 0.0
      %3117 = vmatpush1.msra.mxu0 0.0
      %3118 = vmatprep.subr.mxu0 0.0
      %3119 = vmatpush1.msra.mxu0 0.0
      %3120 = vmatprep.subr.mxu0 0.0
      %3121 = vmatpush1.msra.mxu0 0.0
      %3122 = vmatprep.subr.mxu0 0.0
      %3123 = vmatpush1.msra.mxu0 0.0
      %3124 = vmatprep.subr.mxu0 0.0
      %3125 = vmatpush1.msra.mxu0 0.0
      %3126 = vmatprep.subr.mxu0 0.0
      %3127 = vmatpush1.msra.mxu0 0.0
      %3128 = vmatprep.subr.mxu0 0.0
      %3129 = vmatpush1.msra.mxu0 0.0
      %3130 = vmatprep.subr.mxu0 0.0
      %3131 = vmatpush1.msra.mxu0 0.0
      %3132 = vmatprep.subr.mxu0 0.0
      %3133 = vmatpush1.msra.mxu0 0.0
      %3134 = vmatprep.subr.mxu0 0.0
      %3135 = vmatpush1.msra.mxu0 0.0
      %3136 = vmatprep.subr.mxu0 0.0
      %3137 = vmatpush1.msra.mxu0 0.0
      %3138 = vmatprep.subr.mxu0 0.0
      %3139 = vmatpush1.msra.mxu0 0.0
      %3140 = vmatprep.subr.mxu0 0.0
      %3141 = vmatpush1.msra.mxu0 0.0
      %3142 = vmatprep.subr.mxu0 0.0
      %3143 = vmatpush1.msra.mxu0 0.0
      %3144 = vmatprep.subr.mxu0 0.0
      %3145 = vmatpush1.msra.mxu0 0.0
      %3146 = vmatprep.subr.mxu0 0.0
      %3147 = vmatpush1.msra.mxu0 0.0
      %3148 = vmatprep.subr.mxu0 0.0
      %3149 = vmatpush1.msra.mxu0 0.0
      %3150 = vmatprep.subr.mxu0 0.0
      %3151 = vmatpush1.msra.mxu0 0.0
      %3152 = vmatprep.subr.mxu0 0.0
      %3153 = vmatpush1.msra.mxu0 0.0
      %3154 = vmatprep.subr.mxu0 0.0
      %3155 = vmatpush1.msra.mxu0 0.0
      %3156 = vmatprep.mubr.f32.mxu0 0.0
      %3157 = vmatmul.mubr.f32.gmra.mrb[0].mxu0 %v2730
      %v3158 = vpop.f32.mrb[0].mxu0
      %v3159 = vadd.f32 %v2676, %v3158
      %v3160 = vpop.f32.mrb[0].mxu0
      %v3161 = vadd.f32 %v2680, %v3160
      %3162 = vmatprep.mubr.f32.mxu0 0.0
      %3163 = vmatmul.mubr.f32.gmra.mrb[0].mxu0 %v2733
      %v3164 = vpop.f32.mrb[0].mxu0
      %v3165 = vadd.f32 %v2676, %v3164
      %v3166 = vpop.f32.mrb[0].mxu0
      %v3167 = vadd.f32 %v2680, %v3166
      %3168 = vmatprep.mubr.f32.mxu0 0.0
      %3169 = vmatmul.mubr.f32.gmra.mrb[0].mxu0 %v2736
      %v3170 = vpop.f32.mrb[0].mxu0
      %v3171 = vadd.f32 %v2676, %v3170
      %v3172 = vpop.f32.mrb[0].mxu0
      %v3173 = vadd.f32 %v2680, %v3172
      %3174 = vmatprep.mubr.f32.mxu0 0.0
      %3175 = vmatmul.mubr.f32.gmra.mrb[0].mxu0 %v2739
      %v3176 = vpop.f32.mrb[0].mxu0
      %v3177 = vadd.f32 %v2676, %v3176
      %v3178 = vpop.f32.mrb[0].mxu0
      %v3179 = vadd.f32 %v2680, %v3178
      %3180 = vmatprep.mubr.f32.mxu0 0.0
      %3181 = vmatmul.mubr.f32.gmra.mrb[0].mxu0 %v2742
      %v3182 = vpop.f32.mrb[0].mxu0
      %v3183 = vadd.f32 %v2676, %v3182
      %v3184 = vpop.f32.mrb[0].mxu0
      %v3185 = vadd.f32 %v2680, %v3184
      %3186 = vmatprep.mubr.f32.mxu0 0.0
      %3187 = vmatmul.mubr.f32.gmra.mrb[0].mxu0 %v2745
      %v3188 = vpop.f32.mrb[0].mxu0
      %v3189 = vadd.f32 %v2676, %v3188
      %v3190 = vpop.f32.mrb[0].mxu0
      %v3191 = vadd.f32 %v2680, %v3190
      %3192 = vmatprep.mubr.f32.mxu0 0.0
      %3193 = vmatmul.mubr.f32.gmra.mrb[0].mxu0 %v2748
      %v3194 = vpop.f32.mrb[0].mxu0
      %v3195 = vadd.f32 %v2676, %v3194
      %v3196 = vpop.f32.mrb[0].mxu0
      %v3197 = vadd.f32 %v2680, %v3196
      %3198 = vmatprep.mubr.f32.mxu0 0.0
      %3199 = vmatmul.mubr.f32.gmra.mrb[0].mxu0 %v2751
      %v3200 = vpop.f32.mrb[0].mxu0
      %v3201 = vadd.f32 %v2676, %v3200
      %v3202 = vpop.f32.mrb[0].mxu0
      %v3203 = vadd.f32 %v2680, %v3202
      %3204 = vdwg.mxu0
      %3205 = vmatprep.subr.mxu0 %v2590
      %3206 = vmatpush1.msra.mxu0 %v2589
      %3207 = vmatprep.subr.mxu0 %v2606
      %3208 = vmatpush1.msra.mxu0 %v2605
      %3209 = vmatprep.subr.mxu0 %v2622
      %3210 = vmatpush1.msra.mxu0 %v2621
      %3211 = vmatprep.subr.mxu0 %v2638
      %3212 = vmatpush1.msra.mxu0 %v2637
      %3213 = vmatprep.subr.mxu0 0.0
      %3214 = vmatpush1.msra.mxu0 0.0
      %3215 = vmatprep.subr.mxu0 0.0
      %3216 = vmatpush1.msra.mxu0 0.0
      %3217 = vmatprep.subr.mxu0 0.0
      %3218 = vmatpush1.msra.mxu0 0.0
      %3219 = vmatprep.subr.mxu0 0.0
      %3220 = vmatpush1.msra.mxu0 0.0
      %3221 = vmatprep.subr.mxu0 0.0
      %3222 = vmatpush1.msra.mxu0 0.0
      %3223 = vmatprep.subr.mxu0 0.0
      %3224 = vmatpush1.msra.mxu0 0.0
      %3225 = vmatprep.subr.mxu0 0.0
      %3226 = vmatpush1.msra.mxu0 0.0
      %3227 = vmatprep.subr.mxu0 0.0
      %3228 = vmatpush1.msra.mxu0 0.0
      %3229 = vmatprep.subr.mxu0 0.0
      %3230 = vmatpush1.msra.mxu0 0.0
      %3231 = vmatprep.subr.mxu0 0.0
      %3232 = vmatpush1.msra.mxu0 0.0
      %3233 = vmatprep.subr.mxu0 0.0
      %3234 = vmatpush1.msra.mxu0 0.0
      %3235 = vmatprep.subr.mxu0 0.0
      %3236 = vmatpush1.msra.mxu0 0.0
      %3237 = vmatprep.subr.mxu0 0.0
      %3238 = vmatpush1.msra.mxu0 0.0
      %3239 = vmatprep.subr.mxu0 0.0
      %3240 = vmatpush1.msra.mxu0 0.0
      %3241 = vmatprep.subr.mxu0 0.0
      %3242 = vmatpush1.msra.mxu0 0.0
      %3243 = vmatprep.subr.mxu0 0.0
      %3244 = vmatpush1.msra.mxu0 0.0
      %3245 = vmatprep.subr.mxu0 0.0
      %3246 = vmatpush1.msra.mxu0 0.0
      %3247 = vmatprep.subr.mxu0 0.0
      %3248 = vmatpush1.msra.mxu0 0.0
      %3249 = vmatprep.subr.mxu0 0.0
      %3250 = vmatpush1.msra.mxu0 0.0
      %3251 = vmatprep.subr.mxu0 0.0
      %3252 = vmatpush1.msra.mxu0 0.0
      %3253 = vmatprep.subr.mxu0 0.0
      %3254 = vmatpush1.msra.mxu0 0.0
      %3255 = vmatprep.subr.mxu0 0.0
      %3256 = vmatpush1.msra.mxu0 0.0
      %3257 = vmatprep.subr.mxu0 0.0
      %3258 = vmatpush1.msra.mxu0 0.0
      %3259 = vmatprep.subr.mxu0 0.0
      %3260 = vmatpush1.msra.mxu0 0.0
      %3261 = vmatprep.subr.mxu0 0.0
      %3262 = vmatpush1.msra.mxu0 0.0
      %3263 = vmatprep.subr.mxu0 0.0
      %3264 = vmatpush1.msra.mxu0 0.0
      %3265 = vmatprep.subr.mxu0 0.0
      %3266 = vmatpush1.msra.mxu0 0.0
      %3267 = vmatprep.subr.mxu0 0.0
      %3268 = vmatpush1.msra.mxu0 0.0
      %3269 = vmatprep.mubr.f32.mxu0 0.0
      %3270 = vmatmul.mubr.f32.gmra.mrb[0].mxu0 %v2730
      %v3271 = vpop.f32.mrb[0].mxu0
      %v3272 = vadd.f32 %v2684, %v3271
      %v3273 = vpop.f32.mrb[0].mxu0
      %v3274 = vadd.f32 %v2688, %v3273
      %3275 = vmatprep.mubr.f32.mxu0 0.0
      %3276 = vmatmul.mubr.f32.gmra.mrb[0].mxu0 %v2733
      %v3277 = vpop.f32.mrb[0].mxu0
      %v3278 = vadd.f32 %v2684, %v3277
      %v3279 = vpop.f32.mrb[0].mxu0
      %v3280 = vadd.f32 %v2688, %v3279
      %3281 = vmatprep.mubr.f32.mxu0 0.0
      %3282 = vmatmul.mubr.f32.gmra.mrb[0].mxu0 %v2736
      %v3283 = vpop.f32.mrb[0].mxu0
      %v3284 = vadd.f32 %v2684, %v3283
      %v3285 = vpop.f32.mrb[0].mxu0
      %v3286 = vadd.f32 %v2688, %v3285
      %3287 = vmatprep.mubr.f32.mxu0 0.0
      %3288 = vmatmul.mubr.f32.gmra.mrb[0].mxu0 %v2739
      %v3289 = vpop.f32.mrb[0].mxu0
      %v3290 = vadd.f32 %v2684, %v3289
      %v3291 = vpop.f32.mrb[0].mxu0
      %v3292 = vadd.f32 %v2688, %v3291
      %3293 = vmatprep.mubr.f32.mxu0 0.0
      %3294 = vmatmul.mubr.f32.gmra.mrb[0].mxu0 %v2742
      %v3295 = vpop.f32.mrb[0].mxu0
      %v3296 = vadd.f32 %v2684, %v3295
      %v3297 = vpop.f32.mrb[0].mxu0
      %v3298 = vadd.f32 %v2688, %v3297
      %3299 = vmatprep.mubr.f32.mxu0 0.0
      %3300 = vmatmul.mubr.f32.gmra.mrb[0].mxu0 %v2745
      %v3301 = vpop.f32.mrb[0].mxu0
      %v3302 = vadd.f32 %v2684, %v3301
      %v3303 = vpop.f32.mrb[0].mxu0
      %v3304 = vadd.f32 %v2688, %v3303
      %3305 = vmatprep.mubr.f32.mxu0 0.0
      %3306 = vmatmul.mubr.f32.gmra.mrb[0].mxu0 %v2748
      %v3307 = vpop.f32.mrb[0].mxu0
      %v3308 = vadd.f32 %v2684, %v3307
      %v3309 = vpop.f32.mrb[0].mxu0
      %v3310 = vadd.f32 %v2688, %v3309
      %3311 = vmatprep.mubr.f32.mxu0 0.0
      %3312 = vmatmul.mubr.f32.gmra.mrb[0].mxu0 %v2751
      %v3313 = vpop.f32.mrb[0].mxu0
      %v3314 = vadd.f32 %v2684, %v3313
      %v3315 = vpop.f32.mrb[0].mxu0
      %v3316 = vadd.f32 %v2688, %v3315
      %3317 = vdwg.mxu0
      %3318 = vmatprep.subr.mxu0 %v2592
      %3319 = vmatpush1.msra.mxu0 %v2591
      %3320 = vmatprep.subr.mxu0 %v2608
      %3321 = vmatpush1.msra.mxu0 %v2607
      %3322 = vmatprep.subr.mxu0 %v2624
      %3323 = vmatpush1.msra.mxu0 %v2623
      %3324 = vmatprep.subr.mxu0 %v2640
      %3325 = vmatpush1.msra.mxu0 %v2639
      %3326 = vmatprep.subr.mxu0 0.0
      %3327 = vmatpush1.msra.mxu0 0.0
      %3328 = vmatprep.subr.mxu0 0.0
      %3329 = vmatpush1.msra.mxu0 0.0
      %3330 = vmatprep.subr.mxu0 0.0
      %3331 = vmatpush1.msra.mxu0 0.0
      %3332 = vmatprep.subr.mxu0 0.0
      %3333 = vmatpush1.msra.mxu0 0.0
      %3334 = vmatprep.subr.mxu0 0.0
      %3335 = vmatpush1.msra.mxu0 0.0
      %3336 = vmatprep.subr.mxu0 0.0
      %3337 = vmatpush1.msra.mxu0 0.0
      %3338 = vmatprep.subr.mxu0 0.0
      %3339 = vmatpush1.msra.mxu0 0.0
      %3340 = vmatprep.subr.mxu0 0.0
      %3341 = vmatpush1.msra.mxu0 0.0
      %3342 = vmatprep.subr.mxu0 0.0
      %3343 = vmatpush1.msra.mxu0 0.0
      %3344 = vmatprep.subr.mxu0 0.0
      %3345 = vmatpush1.msra.mxu0 0.0
      %3346 = vmatprep.subr.mxu0 0.0
      %3347 = vmatpush1.msra.mxu0 0.0
      %3348 = vmatprep.subr.mxu0 0.0
      %3349 = vmatpush1.msra.mxu0 0.0
      %3350 = vmatprep.subr.mxu0 0.0
      %3351 = vmatpush1.msra.mxu0 0.0
      %3352 = vmatprep.subr.mxu0 0.0
      %3353 = vmatpush1.msra.mxu0 0.0
      %3354 = vmatprep.subr.mxu0 0.0
      %3355 = vmatpush1.msra.mxu0 0.0
      %3356 = vmatprep.subr.mxu0 0.0
      %3357 = vmatpush1.msra.mxu0 0.0
      %3358 = vmatprep.subr.mxu0 0.0
      %3359 = vmatpush1.msra.mxu0 0.0
      %3360 = vmatprep.subr.mxu0 0.0
      %3361 = vmatpush1.msra.mxu0 0.0
      %3362 = vmatprep.subr.mxu0 0.0
      %3363 = vmatpush1.msra.mxu0 0.0
      %3364 = vmatprep.subr.mxu0 0.0
      %3365 = vmatpush1.msra.mxu0 0.0
      %3366 = vmatprep.subr.mxu0 0.0
      %3367 = vmatpush1.msra.mxu0 0.0
      %3368 = vmatprep.subr.mxu0 0.0
      %3369 = vmatpush1.msra.mxu0 0.0
      %3370 = vmatprep.subr.mxu0 0.0
      %3371 = vmatpush1.msra.mxu0 0.0
      %3372 = vmatprep.subr.mxu0 0.0
      %3373 = vmatpush1.msra.mxu0 0.0
      %3374 = vmatprep.subr.mxu0 0.0
      %3375 = vmatpush1.msra.mxu0 0.0
      %3376 = vmatprep.subr.mxu0 0.0
      %3377 = vmatpush1.msra.mxu0 0.0
      %3378 = vmatprep.subr.mxu0 0.0
      %3379 = vmatpush1.msra.mxu0 0.0
      %3380 = vmatprep.subr.mxu0 0.0
      %3381 = vmatpush1.msra.mxu0 0.0
      %3382 = vmatprep.mubr.f32.mxu0 0.0
      %3383 = vmatmul.mubr.f32.gmra.mrb[0].mxu0 %v2730
      %v3384 = vpop.f32.mrb[0].mxu0
      %v3385 = vadd.f32 %v2692, %v3384
      %v3386 = vpop.f32.mrb[0].mxu0
      %v3387 = vadd.f32 %v2696, %v3386
      %3388 = vmatprep.mubr.f32.mxu0 0.0
      %3389 = vmatmul.mubr.f32.gmra.mrb[0].mxu0 %v2733
      %v3390 = vpop.f32.mrb[0].mxu0
      %v3391 = vadd.f32 %v2692, %v3390
      %v3392 = vpop.f32.mrb[0].mxu0
      %v3393 = vadd.f32 %v2696, %v3392
      %3394 = vmatprep.mubr.f32.mxu0 0.0
      %3395 = vmatmul.mubr.f32.gmra.mrb[0].mxu0 %v2736
      %v3396 = vpop.f32.mrb[0].mxu0
      %v3397 = vadd.f32 %v2692, %v3396
      %v3398 = vpop.f32.mrb[0].mxu0
      %v3399 = vadd.f32 %v2696, %v3398
      %3400 = vmatprep.mubr.f32.mxu0 0.0
      %3401 = vmatmul.mubr.f32.gmra.mrb[0].mxu0 %v2739
      %v3402 = vpop.f32.mrb[0].mxu0
      %v3403 = vadd.f32 %v2692, %v3402
      %v3404 = vpop.f32.mrb[0].mxu0
      %v3405 = vadd.f32 %v2696, %v3404
      %3406 = vmatprep.mubr.f32.mxu0 0.0
      %3407 = vmatmul.mubr.f32.gmra.mrb[0].mxu0 %v2742
      %v3408 = vpop.f32.mrb[0].mxu0
      %v3409 = vadd.f32 %v2692, %v3408
      %v3410 = vpop.f32.mrb[0].mxu0
      %v3411 = vadd.f32 %v2696, %v3410
      %3412 = vmatprep.mubr.f32.mxu0 0.0
      %3413 = vmatmul.mubr.f32.gmra.mrb[0].mxu0 %v2745
      %v3414 = vpop.f32.mrb[0].mxu0
      %v3415 = vadd.f32 %v2692, %v3414
      %v3416 = vpop.f32.mrb[0].mxu0
      %v3417 = vadd.f32 %v2696, %v3416
      %3418 = vmatprep.mubr.f32.mxu0 0.0
      %3419 = vmatmul.mubr.f32.gmra.mrb[0].mxu0 %v2748
      %v3420 = vpop.f32.mrb[0].mxu0
      %v3421 = vadd.f32 %v2692, %v3420
      %v3422 = vpop.f32.mrb[0].mxu0
      %v3423 = vadd.f32 %v2696, %v3422
      %3424 = vmatprep.mubr.f32.mxu0 0.0
      %3425 = vmatmul.mubr.f32.gmra.mrb[0].mxu0 %v2751
      %v3426 = vpop.f32.mrb[0].mxu0
      %v3427 = vadd.f32 %v2692, %v3426
      %v3428 = vpop.f32.mrb[0].mxu0
      %v3429 = vadd.f32 %v2696, %v3428
      %3430 = vdwg.mxu0
      %3431 = vmatprep.subr.mxu0 %v2594
      %3432 = vmatpush1.msra.mxu0 %v2593
      %3433 = vmatprep.subr.mxu0 %v2610
      %3434 = vmatpush1.msra.mxu0 %v2609
      %3435 = vmatprep.subr.mxu0 %v2626
      %3436 = vmatpush1.msra.mxu0 %v2625
      %3437 = vmatprep.subr.mxu0 %v2642
      %3438 = vmatpush1.msra.mxu0 %v2641
      %3439 = vmatprep.subr.mxu0 0.0
      %3440 = vmatpush1.msra.mxu0 0.0
      %3441 = vmatprep.subr.mxu0 0.0
      %3442 = vmatpush1.msra.mxu0 0.0
      %3443 = vmatprep.subr.mxu0 0.0
      %3444 = vmatpush1.msra.mxu0 0.0
      %3445 = vmatprep.subr.mxu0 0.0
      %3446 = vmatpush1.msra.mxu0 0.0
      %3447 = vmatprep.subr.mxu0 0.0
      %3448 = vmatpush1.msra.mxu0 0.0
      %3449 = vmatprep.subr.mxu0 0.0
      %3450 = vmatpush1.msra.mxu0 0.0
      %3451 = vmatprep.subr.mxu0 0.0
      %3452 = vmatpush1.msra.mxu0 0.0
      %3453 = vmatprep.subr.mxu0 0.0
      %3454 = vmatpush1.msra.mxu0 0.0
      %3455 = vmatprep.subr.mxu0 0.0
      %3456 = vmatpush1.msra.mxu0 0.0
      %3457 = vmatprep.subr.mxu0 0.0
      %3458 = vmatpush1.msra.mxu0 0.0
      %3459 = vmatprep.subr.mxu0 0.0
      %3460 = vmatpush1.msra.mxu0 0.0
      %3461 = vmatprep.subr.mxu0 0.0
      %3462 = vmatpush1.msra.mxu0 0.0
      %3463 = vmatprep.subr.mxu0 0.0
      %3464 = vmatpush1.msra.mxu0 0.0
      %3465 = vmatprep.subr.mxu0 0.0
      %3466 = vmatpush1.msra.mxu0 0.0
      %3467 = vmatprep.subr.mxu0 0.0
      %3468 = vmatpush1.msra.mxu0 0.0
      %3469 = vmatprep.subr.mxu0 0.0
      %3470 = vmatpush1.msra.mxu0 0.0
      %3471 = vmatprep.subr.mxu0 0.0
      %3472 = vmatpush1.msra.mxu0 0.0
      %3473 = vmatprep.subr.mxu0 0.0
      %3474 = vmatpush1.msra.mxu0 0.0
      %3475 = vmatprep.subr.mxu0 0.0
      %3476 = vmatpush1.msra.mxu0 0.0
      %3477 = vmatprep.subr.mxu0 0.0
      %3478 = vmatpush1.msra.mxu0 0.0
      %3479 = vmatprep.subr.mxu0 0.0
      %3480 = vmatpush1.msra.mxu0 0.0
      %3481 = vmatprep.subr.mxu0 0.0
      %3482 = vmatpush1.msra.mxu0 0.0
      %3483 = vmatprep.subr.mxu0 0.0
      %3484 = vmatpush1.msra.mxu0 0.0
      %3485 = vmatprep.subr.mxu0 0.0
      %3486 = vmatpush1.msra.mxu0 0.0
      %3487 = vmatprep.subr.mxu0 0.0
      %3488 = vmatpush1.msra.mxu0 0.0
      %3489 = vmatprep.subr.mxu0 0.0
      %3490 = vmatpush1.msra.mxu0 0.0
      %3491 = vmatprep.subr.mxu0 0.0
      %3492 = vmatpush1.msra.mxu0 0.0
      %3493 = vmatprep.subr.mxu0 0.0
      %3494 = vmatpush1.msra.mxu0 0.0
      %3495 = vmatprep.mubr.f32.mxu0 0.0
      %3496 = vmatmul.mubr.f32.gmra.mrb[0].mxu0 %v2730
      %v3497 = vpop.f32.mrb[0].mxu0
      %v3498 = vadd.f32 %v2700, %v3497
      %v3499 = vpop.f32.mrb[0].mxu0
      %v3500 = vadd.f32 %v2704, %v3499
      %3501 = vmatprep.mubr.f32.mxu0 0.0
      %3502 = vmatmul.mubr.f32.gmra.mrb[0].mxu0 %v2733
      %v3503 = vpop.f32.mrb[0].mxu0
      %v3504 = vadd.f32 %v2700, %v3503
      %v3505 = vpop.f32.mrb[0].mxu0
      %v3506 = vadd.f32 %v2704, %v3505
      %3507 = vmatprep.mubr.f32.mxu0 0.0
      %3508 = vmatmul.mubr.f32.gmra.mrb[0].mxu0 %v2736
      %v3509 = vpop.f32.mrb[0].mxu0
      %v3510 = vadd.f32 %v2700, %v3509
      %v3511 = vpop.f32.mrb[0].mxu0
      %v3512 = vadd.f32 %v2704, %v3511
      %3513 = vmatprep.mubr.f32.mxu0 0.0
      %3514 = vmatmul.mubr.f32.gmra.mrb[0].mxu0 %v2739
      %v3515 = vpop.f32.mrb[0].mxu0
      %v3516 = vadd.f32 %v2700, %v3515
      %v3517 = vpop.f32.mrb[0].mxu0
      %v3518 = vadd.f32 %v2704, %v3517
      %3519 = vmatprep.mubr.f32.mxu0 0.0
      %3520 = vmatmul.mubr.f32.gmra.mrb[0].mxu0 %v2742
      %v3521 = vpop.f32.mrb[0].mxu0
      %v3522 = vadd.f32 %v2700, %v3521
      %v3523 = vpop.f32.mrb[0].mxu0
      %v3524 = vadd.f32 %v2704, %v3523
      %3525 = vmatprep.mubr.f32.mxu0 0.0
      %3526 = vmatmul.mubr.f32.gmra.mrb[0].mxu0 %v2745
      %v3527 = vpop.f32.mrb[0].mxu0
      %v3528 = vadd.f32 %v2700, %v3527
      %v3529 = vpop.f32.mrb[0].mxu0
      %v3530 = vadd.f32 %v2704, %v3529
      %3531 = vmatprep.mubr.f32.mxu0 0.0
      %3532 = vmatmul.mubr.f32.gmra.mrb[0].mxu0 %v2748
      %v3533 = vpop.f32.mrb[0].mxu0
      %v3534 = vadd.f32 %v2700, %v3533
      %v3535 = vpop.f32.mrb[0].mxu0
      %v3536 = vadd.f32 %v2704, %v3535
      %3537 = vmatprep.mubr.f32.mxu0 0.0
      %3538 = vmatmul.mubr.f32.gmra.mrb[0].mxu0 %v2751
      %v3539 = vpop.f32.mrb[0].mxu0
      %v3540 = vadd.f32 %v2700, %v3539
      %v3541 = vpop.f32.mrb[0].mxu0
      %v3542 = vadd.f32 %v2704, %v3541
      %3543 = vdwg.mxu0
      %3544 = vmatprep.subr.mxu0 %v2596
      %3545 = vmatpush1.msra.mxu0 %v2595
      %3546 = vmatprep.subr.mxu0 %v2612
      %3547 = vmatpush1.msra.mxu0 %v2611
      %3548 = vmatprep.subr.mxu0 %v2628
      %3549 = vmatpush1.msra.mxu0 %v2627
      %3550 = vmatprep.subr.mxu0 %v2644
      %3551 = vmatpush1.msra.mxu0 %v2643
      %3552 = vmatprep.subr.mxu0 0.0
      %3553 = vmatpush1.msra.mxu0 0.0
      %3554 = vmatprep.subr.mxu0 0.0
      %3555 = vmatpush1.msra.mxu0 0.0
      %3556 = vmatprep.subr.mxu0 0.0
      %3557 = vmatpush1.msra.mxu0 0.0
      %3558 = vmatprep.subr.mxu0 0.0
      %3559 = vmatpush1.msra.mxu0 0.0
      %3560 = vmatprep.subr.mxu0 0.0
      %3561 = vmatpush1.msra.mxu0 0.0
      %3562 = vmatprep.subr.mxu0 0.0
      %3563 = vmatpush1.msra.mxu0 0.0
      %3564 = vmatprep.subr.mxu0 0.0
      %3565 = vmatpush1.msra.mxu0 0.0
      %3566 = vmatprep.subr.mxu0 0.0
      %3567 = vmatpush1.msra.mxu0 0.0
      %3568 = vmatprep.subr.mxu0 0.0
      %3569 = vmatpush1.msra.mxu0 0.0
      %3570 = vmatprep.subr.mxu0 0.0
      %3571 = vmatpush1.msra.mxu0 0.0
      %3572 = vmatprep.subr.mxu0 0.0
      %3573 = vmatpush1.msra.mxu0 0.0
      %3574 = vmatprep.subr.mxu0 0.0
      %3575 = vmatpush1.msra.mxu0 0.0
      %3576 = vmatprep.subr.mxu0 0.0
      %3577 = vmatpush1.msra.mxu0 0.0
      %3578 = vmatprep.subr.mxu0 0.0
      %3579 = vmatpush1.msra.mxu0 0.0
      %3580 = vmatprep.subr.mxu0 0.0
      %3581 = vmatpush1.msra.mxu0 0.0
      %3582 = vmatprep.subr.mxu0 0.0
      %3583 = vmatpush1.msra.mxu0 0.0
      %3584 = vmatprep.subr.mxu0 0.0
      %3585 = vmatpush1.msra.mxu0 0.0
      %3586 = vmatprep.subr.mxu0 0.0
      %3587 = vmatpush1.msra.mxu0 0.0
      %3588 = vmatprep.subr.mxu0 0.0
      %3589 = vmatpush1.msra.mxu0 0.0
      %3590 = vmatprep.subr.mxu0 0.0
      %3591 = vmatpush1.msra.mxu0 0.0
      %3592 = vmatprep.subr.mxu0 0.0
      %3593 = vmatpush1.msra.mxu0 0.0
      %3594 = vmatprep.subr.mxu0 0.0
      %3595 = vmatpush1.msra.mxu0 0.0
      %3596 = vmatprep.subr.mxu0 0.0
      %3597 = vmatpush1.msra.mxu0 0.0
      %3598 = vmatprep.subr.mxu0 0.0
      %3599 = vmatpush1.msra.mxu0 0.0
      %3600 = vmatprep.subr.mxu0 0.0
      %3601 = vmatpush1.msra.mxu0 0.0
      %3602 = vmatprep.subr.mxu0 0.0
      %3603 = vmatpush1.msra.mxu0 0.0
      %3604 = vmatprep.subr.mxu0 0.0
      %3605 = vmatpush1.msra.mxu0 0.0
      %3606 = vmatprep.subr.mxu0 0.0
      %3607 = vmatpush1.msra.mxu0 0.0
      %3608 = vmatprep.mubr.f32.mxu0 0.0
      %3609 = vmatmul.mubr.f32.gmra.mrb[0].mxu0 %v2730
      %v3610 = vpop.f32.mrb[0].mxu0
      %v3611 = vadd.f32 %v2708, %v3610
      %v3612 = vpop.f32.mrb[0].mxu0
      %v3613 = vadd.f32 %v2712, %v3612
      %3614 = vmatprep.mubr.f32.mxu0 0.0
      %3615 = vmatmul.mubr.f32.gmra.mrb[0].mxu0 %v2733
      %v3616 = vpop.f32.mrb[0].mxu0
      %v3617 = vadd.f32 %v2708, %v3616
      %v3618 = vpop.f32.mrb[0].mxu0
      %v3619 = vadd.f32 %v2712, %v3618
      %3620 = vmatprep.mubr.f32.mxu0 0.0
      %3621 = vmatmul.mubr.f32.gmra.mrb[0].mxu0 %v2736
      %v3622 = vpop.f32.mrb[0].mxu0
      %v3623 = vadd.f32 %v2708, %v3622
      %v3624 = vpop.f32.mrb[0].mxu0
      %v3625 = vadd.f32 %v2712, %v3624
      %3626 = vmatprep.mubr.f32.mxu0 0.0
      %3627 = vmatmul.mubr.f32.gmra.mrb[0].mxu0 %v2739
      %v3628 = vpop.f32.mrb[0].mxu0
      %v3629 = vadd.f32 %v2708, %v3628
      %v3630 = vpop.f32.mrb[0].mxu0
      %v3631 = vadd.f32 %v2712, %v3630
      %3632 = vmatprep.mubr.f32.mxu0 0.0
      %3633 = vmatmul.mubr.f32.gmra.mrb[0].mxu0 %v2742
      %v3634 = vpop.f32.mrb[0].mxu0
      %v3635 = vadd.f32 %v2708, %v3634
      %v3636 = vpop.f32.mrb[0].mxu0
      %v3637 = vadd.f32 %v2712, %v3636
      %3638 = vmatprep.mubr.f32.mxu0 0.0
      %3639 = vmatmul.mubr.f32.gmra.mrb[0].mxu0 %v2745
      %v3640 = vpop.f32.mrb[0].mxu0
      %v3641 = vadd.f32 %v2708, %v3640
      %v3642 = vpop.f32.mrb[0].mxu0
      %v3643 = vadd.f32 %v2712, %v3642
      %3644 = vmatprep.mubr.f32.mxu0 0.0
      %3645 = vmatmul.mubr.f32.gmra.mrb[0].mxu0 %v2748
      %v3646 = vpop.f32.mrb[0].mxu0
      %v3647 = vadd.f32 %v2708, %v3646
      %v3648 = vpop.f32.mrb[0].mxu0
      %v3649 = vadd.f32 %v2712, %v3648
      %3650 = vmatprep.mubr.f32.mxu0 0.0
      %3651 = vmatmul.mubr.f32.gmra.mrb[0].mxu0 %v2751
      %v3652 = vpop.f32.mrb[0].mxu0
      %v3653 = vadd.f32 %v2708, %v3652
      %v3654 = vpop.f32.mrb[0].mxu0
      %v3655 = vadd.f32 %v2712, %v3654
      %3656 = vdwg.mxu0
      %v3657 = vmax.f32 %v2820, 0.0
      %v3658 = vmax.f32 %v2822, 0.0
      %v3659 = vmax.f32 %v2933, 0.0
      %v3660 = vmax.f32 %v2935, 0.0
      %v3661 = vmax.f32 %v3046, 0.0
      %v3662 = vmax.f32 %v3048, 0.0
      %v3663 = vmax.f32 %v3159, 0.0
      %v3664 = vmax.f32 %v3161, 0.0
      %v3665 = vmax.f32 %v3272, 0.0
      %v3666 = vmax.f32 %v3274, 0.0
      %v3667 = vmax.f32 %v3385, 0.0
      %v3668 = vmax.f32 %v3387, 0.0
      %v3669 = vmax.f32 %v3498, 0.0
      %v3670 = vmax.f32 %v3500, 0.0
      %v3671 = vmax.f32 %v3611, 0.0
      %v3672 = vmax.f32 %v3613, 0.0
      %v3673 = vmax.f32 %v2826, 0.0
      %v3674 = vmax.f32 %v2828, 0.0
      %v3675 = vmax.f32 %v2939, 0.0
      %v3676 = vmax.f32 %v2941, 0.0
      %v3677 = vmax.f32 %v3052, 0.0
      %v3678 = vmax.f32 %v3054, 0.0
      %v3679 = vmax.f32 %v3165, 0.0
      %v3680 = vmax.f32 %v3167, 0.0
      %v3681 = vmax.f32 %v3278, 0.0
      %v3682 = vmax.f32 %v3280, 0.0
      %v3683 = vmax.f32 %v3391, 0.0
      %v3684 = vmax.f32 %v3393, 0.0
      %v3685 = vmax.f32 %v3504, 0.0
      %v3686 = vmax.f32 %v3506, 0.0
      %v3687 = vmax.f32 %v3617, 0.0
      %v3688 = vmax.f32 %v3619, 0.0
      %v3689 = vmax.f32 %v2832, 0.0
      %v3690 = vmax.f32 %v2834, 0.0
      %v3691 = vmax.f32 %v2945, 0.0
      %v3692 = vmax.f32 %v2947, 0.0
      %v3693 = vmax.f32 %v3058, 0.0
      %v3694 = vmax.f32 %v3060, 0.0
      %v3695 = vmax.f32 %v3171, 0.0
      %v3696 = vmax.f32 %v3173, 0.0
      %v3697 = vmax.f32 %v3284, 0.0
      %v3698 = vmax.f32 %v3286, 0.0
      %v3699 = vmax.f32 %v3397, 0.0
      %v3700 = vmax.f32 %v3399, 0.0
      %v3701 = vmax.f32 %v3510, 0.0
      %v3702 = vmax.f32 %v3512, 0.0
      %v3703 = vmax.f32 %v3623, 0.0
      %v3704 = vmax.f32 %v3625, 0.0
      %v3705 = vmax.f32 %v2838, 0.0
      %v3706 = vmax.f32 %v2840, 0.0
      %v3707 = vmax.f32 %v2951, 0.0
      %v3708 = vmax.f32 %v2953, 0.0
      %v3709 = vmax.f32 %v3064, 0.0
      %v3710 = vmax.f32 %v3066, 0.0
      %v3711 = vmax.f32 %v3177, 0.0
      %v3712 = vmax.f32 %v3179, 0.0
      %v3713 = vmax.f32 %v3290, 0.0
      %v3714 = vmax.f32 %v3292, 0.0
      %v3715 = vmax.f32 %v3403, 0.0
      %v3716 = vmax.f32 %v3405, 0.0
      %v3717 = vmax.f32 %v3516, 0.0
      %v3718 = vmax.f32 %v3518, 0.0
      %v3719 = vmax.f32 %v3629, 0.0
      %v3720 = vmax.f32 %v3631, 0.0
      %v3721 = vmax.f32 %v2844, 0.0
      %v3722 = vmax.f32 %v2846, 0.0
      %v3723 = vmax.f32 %v2957, 0.0
      %v3724 = vmax.f32 %v2959, 0.0
      %v3725 = vmax.f32 %v3070, 0.0
      %v3726 = vmax.f32 %v3072, 0.0
      %v3727 = vmax.f32 %v3183, 0.0
      %v3728 = vmax.f32 %v3185, 0.0
      %v3729 = vmax.f32 %v3296, 0.0
      %v3730 = vmax.f32 %v3298, 0.0
      %v3731 = vmax.f32 %v3409, 0.0
      %v3732 = vmax.f32 %v3411, 0.0
      %v3733 = vmax.f32 %v3522, 0.0
      %v3734 = vmax.f32 %v3524, 0.0
      %v3735 = vmax.f32 %v3635, 0.0
      %v3736 = vmax.f32 %v3637, 0.0
      %v3737 = vmax.f32 %v2850, 0.0
      %v3738 = vmax.f32 %v2852, 0.0
      %v3739 = vmax.f32 %v2963, 0.0
      %v3740 = vmax.f32 %v2965, 0.0
      %v3741 = vmax.f32 %v3076, 0.0
      %v3742 = vmax.f32 %v3078, 0.0
      %v3743 = vmax.f32 %v3189, 0.0
      %v3744 = vmax.f32 %v3191, 0.0
      %v3745 = vmax.f32 %v3302, 0.0
      %v3746 = vmax.f32 %v3304, 0.0
      %v3747 = vmax.f32 %v3415, 0.0
      %v3748 = vmax.f32 %v3417, 0.0
      %v3749 = vmax.f32 %v3528, 0.0
      %v3750 = vmax.f32 %v3530, 0.0
      %v3751 = vmax.f32 %v3641, 0.0
      %v3752 = vmax.f32 %v3643, 0.0
      %v3753 = vmax.f32 %v2856, 0.0
      %v3754 = vmax.f32 %v2858, 0.0
      %v3755 = vmax.f32 %v2969, 0.0
      %v3756 = vmax.f32 %v2971, 0.0
      %v3757 = vmax.f32 %v3082, 0.0
      %v3758 = vmax.f32 %v3084, 0.0
      %v3759 = vmax.f32 %v3195, 0.0
      %v3760 = vmax.f32 %v3197, 0.0
      %v3761 = vmax.f32 %v3308, 0.0
      %v3762 = vmax.f32 %v3310, 0.0
      %v3763 = vmax.f32 %v3421, 0.0
      %v3764 = vmax.f32 %v3423, 0.0
      %v3765 = vmax.f32 %v3534, 0.0
      %v3766 = vmax.f32 %v3536, 0.0
      %v3767 = vmax.f32 %v3647, 0.0
      %v3768 = vmax.f32 %v3649, 0.0
      %v3769 = vmax.f32 %v2862, 0.0
      %v3770 = vmax.f32 %v2864, 0.0
      %v3771 = vmax.f32 %v2975, 0.0
      %v3772 = vmax.f32 %v2977, 0.0
      %v3773 = vmax.f32 %v3088, 0.0
      %v3774 = vmax.f32 %v3090, 0.0
      %v3775 = vmax.f32 %v3201, 0.0
      %v3776 = vmax.f32 %v3203, 0.0
      %v3777 = vmax.f32 %v3314, 0.0
      %v3778 = vmax.f32 %v3316, 0.0
      %v3779 = vmax.f32 %v3427, 0.0
      %v3780 = vmax.f32 %v3429, 0.0
      %v3781 = vmax.f32 %v3540, 0.0
      %v3782 = vmax.f32 %v3542, 0.0
      %v3783 = vmax.f32 %v3653, 0.0
      %v3784 = vmax.f32 %v3655, 0.0
      %v3785 = vld [vmem:[%s10] sm:$0xff]
      %v3786 = vld [vmem:[%s10 + $0x8] sm:$0xff]
      %v3787 = vld [vmem:[%s10 + $0x10] sm:$0xff]
      %v3788 = vld [vmem:[%s10 + $0x18] sm:$0xff]
      %v3789 = vld [vmem:[%s10 + $0x20] sm:$0xff]
      %v3790 = vld [vmem:[%s10 + $0x28] sm:$0xff]
      %v3791 = vld [vmem:[%s10 + $0x30] sm:$0xff]
      %v3792 = vld [vmem:[%s10 + $0x38] sm:$0xff]
      %v3793 = vld [vmem:[%s10 + $0x40] sm:$0xff]
      %v3794 = vld [vmem:[%s10 + $0x48] sm:$0xff]
      %v3795 = vld [vmem:[%s10 + $0x50] sm:$0xff]
      %v3796 = vld [vmem:[%s10 + $0x58] sm:$0xff]
      %v3797 = vld [vmem:[%s10 + $0x60] sm:$0xff]
      %v3798 = vld [vmem:[%s10 + $0x68] sm:$0xff]
      %v3799 = vld [vmem:[%s10 + $0x70] sm:$0xff]
      %v3800 = vld [vmem:[%s10 + $0x78] sm:$0xff]
      %v3801 = vld [vmem:[%s10 + $0x80] sm:$0xff]
      %v3802 = vld [vmem:[%s10 + $0x88] sm:$0xff]
      %v3803 = vld [vmem:[%s10 + $0x90] sm:$0xff]
      %v3804 = vld [vmem:[%s10 + $0x98] sm:$0xff]
      %v3805 = vld [vmem:[%s10 + $0xa0] sm:$0xff]
      %v3806 = vld [vmem:[%s10 + $0xa8] sm:$0xff]
      %v3807 = vld [vmem:[%s10 + $0xb0] sm:$0xff]
      %v3808 = vld [vmem:[%s10 + $0xb8] sm:$0xff]
      %v3809 = vld [vmem:[%s10 + $0xc0] sm:$0xff]
      %v3810 = vld [vmem:[%s10 + $0xc8] sm:$0xff]
      %v3811 = vld [vmem:[%s10 + $0xd0] sm:$0xff]
      %v3812 = vld [vmem:[%s10 + $0xd8] sm:$0xff]
      %v3813 = vld [vmem:[%s10 + $0xe0] sm:$0xff]
      %v3814 = vld [vmem:[%s10 + $0xe8] sm:$0xff]
      %v3815 = vld [vmem:[%s10 + $0xf0] sm:$0xff]
      %v3816 = vld [vmem:[%s10 + $0xf8] sm:$0xff]
      %v3817 = vld [vmem:[%s10 + $0x100] sm:$0xff]
      %v3818 = vld [vmem:[%s10 + $0x108] sm:$0xff]
      %v3819 = vld [vmem:[%s10 + $0x110] sm:$0xff]
      %v3820 = vld [vmem:[%s10 + $0x118] sm:$0xff]
      %v3821 = vld [vmem:[%s10 + $0x120] sm:$0xff]
      %v3822 = vld [vmem:[%s10 + $0x128] sm:$0xff]
      %v3823 = vld [vmem:[%s10 + $0x130] sm:$0xff]
      %v3824 = vld [vmem:[%s10 + $0x138] sm:$0xff]
      %v3825 = vld [vmem:[%s10 + $0x140] sm:$0xff]
      %v3826 = vld [vmem:[%s10 + $0x148] sm:$0xff]
      %v3827 = vld [vmem:[%s10 + $0x150] sm:$0xff]
      %v3828 = vld [vmem:[%s10 + $0x158] sm:$0xff]
      %v3829 = vld [vmem:[%s10 + $0x160] sm:$0xff]
      %v3830 = vld [vmem:[%s10 + $0x168] sm:$0xff]
      %v3831 = vld [vmem:[%s10 + $0x170] sm:$0xff]
      %v3832 = vld [vmem:[%s10 + $0x178] sm:$0xff]
      %v3833 = vld [vmem:[%s10 + $0x180] sm:$0xff]
      %v3834 = vld [vmem:[%s10 + $0x188] sm:$0xff]
      %v3835 = vld [vmem:[%s10 + $0x190] sm:$0xff]
      %v3836 = vld [vmem:[%s10 + $0x198] sm:$0xff]
      %v3837 = vld [vmem:[%s10 + $0x1a0] sm:$0xff]
      %v3838 = vld [vmem:[%s10 + $0x1a8] sm:$0xff]
      %v3839 = vld [vmem:[%s10 + $0x1b0] sm:$0xff]
      %v3840 = vld [vmem:[%s10 + $0x1b8] sm:$0xff]
      %v3841 = vld [vmem:[%s10 + $0x1c0] sm:$0xff]
      %v3842 = vld [vmem:[%s10 + $0x1c8] sm:$0xff]
      %v3843 = vld [vmem:[%s10 + $0x1d0] sm:$0xff]
      %v3844 = vld [vmem:[%s10 + $0x1d8] sm:$0xff]
      %v3845 = vld [vmem:[%s10 + $0x1e0] sm:$0xff]
      %v3846 = vld [vmem:[%s10 + $0x1e8] sm:$0xff]
      %v3847 = vld [vmem:[%s10 + $0x1f0] sm:$0xff]
      %v3848 = vld [vmem:[%s10 + $0x1f8] sm:$0xff]
      %v3849 = vld [vmem:[%s10 + $0x200] sm:$0xff]
      %v3850 = vld [vmem:[%s10 + $0x208] sm:$0xff]
      %v3851 = vld [vmem:[%s10 + $0x210] sm:$0xff]
      %v3852 = vld [vmem:[%s10 + $0x218] sm:$0xff]
      %v3853 = vld [vmem:[%s10 + $0x220] sm:$0xff]
      %v3854 = vld [vmem:[%s10 + $0x228] sm:$0xff]
      %v3855 = vld [vmem:[%s10 + $0x230] sm:$0xff]
      %v3856 = vld [vmem:[%s10 + $0x238] sm:$0xff]
      %v3857 = vld [vmem:[%s10 + $0x240] sm:$0xff]
      %v3858 = vld [vmem:[%s10 + $0x248] sm:$0xff]
      %v3859 = vld [vmem:[%s10 + $0x250] sm:$0xff]
      %v3860 = vld [vmem:[%s10 + $0x258] sm:$0xff]
      %v3861 = vld [vmem:[%s10 + $0x260] sm:$0xff]
      %v3862 = vld [vmem:[%s10 + $0x268] sm:$0xff]
      %v3863 = vld [vmem:[%s10 + $0x270] sm:$0xff]
      %v3864 = vld [vmem:[%s10 + $0x278] sm:$0xff]
      %v3865 = vld [vmem:[%s10 + $0x280] sm:$0xff]
      %v3866 = vld [vmem:[%s10 + $0x288] sm:$0xff]
      %v3867 = vld [vmem:[%s10 + $0x290] sm:$0xff]
      %v3868 = vld [vmem:[%s10 + $0x298] sm:$0xff]
      %v3869 = vld [vmem:[%s10 + $0x2a0] sm:$0xff]
      %v3870 = vld [vmem:[%s10 + $0x2a8] sm:$0xff]
      %v3871 = vld [vmem:[%s10 + $0x2b0] sm:$0xff]
      %v3872 = vld [vmem:[%s10 + $0x2b8] sm:$0xff]
      %v3873 = vld [vmem:[%s10 + $0x2c0] sm:$0xff]
      %v3874 = vld [vmem:[%s10 + $0x2c8] sm:$0xff]
      %v3875 = vld [vmem:[%s10 + $0x2d0] sm:$0xff]
      %v3876 = vld [vmem:[%s10 + $0x2d8] sm:$0xff]
      %v3877 = vld [vmem:[%s10 + $0x2e0] sm:$0xff]
      %v3878 = vld [vmem:[%s10 + $0x2e8] sm:$0xff]
      %v3879 = vld [vmem:[%s10 + $0x2f0] sm:$0xff]
      %v3880 = vld [vmem:[%s10 + $0x2f8] sm:$0xff]
      %v3881 = vld [vmem:[%s10 + $0x300] sm:$0xff]
      %v3882 = vld [vmem:[%s10 + $0x308] sm:$0xff]
      %v3883 = vld [vmem:[%s10 + $0x310] sm:$0xff]
      %v3884 = vld [vmem:[%s10 + $0x318] sm:$0xff]
      %v3885 = vld [vmem:[%s10 + $0x320] sm:$0xff]
      %v3886 = vld [vmem:[%s10 + $0x328] sm:$0xff]
      %v3887 = vld [vmem:[%s10 + $0x330] sm:$0xff]
      %v3888 = vld [vmem:[%s10 + $0x338] sm:$0xff]
      %v3889 = vld [vmem:[%s10 + $0x340] sm:$0xff]
      %v3890 = vld [vmem:[%s10 + $0x348] sm:$0xff]
      %v3891 = vld [vmem:[%s10 + $0x350] sm:$0xff]
      %v3892 = vld [vmem:[%s10 + $0x358] sm:$0xff]
      %v3893 = vld [vmem:[%s10 + $0x360] sm:$0xff]
      %v3894 = vld [vmem:[%s10 + $0x368] sm:$0xff]
      %v3895 = vld [vmem:[%s10 + $0x370] sm:$0xff]
      %v3896 = vld [vmem:[%s10 + $0x378] sm:$0xff]
      %v3897 = vld [vmem:[%s10 + $0x380] sm:$0xff]
      %v3898 = vld [vmem:[%s10 + $0x388] sm:$0xff]
      %v3899 = vld [vmem:[%s10 + $0x390] sm:$0xff]
      %v3900 = vld [vmem:[%s10 + $0x398] sm:$0xff]
      %v3901 = vld [vmem:[%s10 + $0x3a0] sm:$0xff]
      %v3902 = vld [vmem:[%s10 + $0x3a8] sm:$0xff]
      %v3903 = vld [vmem:[%s10 + $0x3b0] sm:$0xff]
      %v3904 = vld [vmem:[%s10 + $0x3b8] sm:$0xff]
      %v3905 = vld [vmem:[%s10 + $0x3c0] sm:$0xff]
      %v3906 = vld [vmem:[%s10 + $0x3c8] sm:$0xff]
      %v3907 = vld [vmem:[%s10 + $0x3d0] sm:$0xff]
      %v3908 = vld [vmem:[%s10 + $0x3d8] sm:$0xff]
      %v3909 = vld [vmem:[%s10 + $0x3e0] sm:$0xff]
      %v3910 = vld [vmem:[%s10 + $0x3e8] sm:$0xff]
      %v3911 = vld [vmem:[%s10 + $0x3f0] sm:$0xff]
      %v3912 = vld [vmem:[%s10 + $0x3f8] sm:$0xff]
      %v3913 = vld [vmem:[%s10 + $0x400] sm:$0xff]
      %v3914 = vld [vmem:[%s10 + $0x408] sm:$0xff]
      %v3915 = vld [vmem:[%s10 + $0x410] sm:$0xff]
      %v3916 = vld [vmem:[%s10 + $0x418] sm:$0xff]
      %v3917 = vld [vmem:[%s10 + $0x420] sm:$0xff]
      %v3918 = vld [vmem:[%s10 + $0x428] sm:$0xff]
      %v3919 = vld [vmem:[%s10 + $0x430] sm:$0xff]
      %v3920 = vld [vmem:[%s10 + $0x438] sm:$0xff]
      %v3921 = vld [vmem:[%s10 + $0x440] sm:$0xff]
      %v3922 = vld [vmem:[%s10 + $0x448] sm:$0xff]
      %v3923 = vld [vmem:[%s10 + $0x450] sm:$0xff]
      %v3924 = vld [vmem:[%s10 + $0x458] sm:$0xff]
      %v3925 = vld [vmem:[%s10 + $0x460] sm:$0xff]
      %v3926 = vld [vmem:[%s10 + $0x468] sm:$0xff]
      %v3927 = vld [vmem:[%s10 + $0x470] sm:$0xff]
      %v3928 = vld [vmem:[%s10 + $0x478] sm:$0xff]
      %v3929 = vld [vmem:[%s10 + $0x480] sm:$0xff]
      %v3930 = vld [vmem:[%s10 + $0x488] sm:$0xff]
      %v3931 = vld [vmem:[%s10 + $0x490] sm:$0xff]
      %v3932 = vld [vmem:[%s10 + $0x498] sm:$0xff]
      %v3933 = vld [vmem:[%s10 + $0x4a0] sm:$0xff]
      %v3934 = vld [vmem:[%s10 + $0x4a8] sm:$0xff]
      %v3935 = vld [vmem:[%s10 + $0x4b0] sm:$0xff]
      %v3936 = vld [vmem:[%s10 + $0x4b8] sm:$0xff]
      %v3937 = vld [vmem:[%s10 + $0x4c0] sm:$0xff]
      %v3938 = vld [vmem:[%s10 + $0x4c8] sm:$0xff]
      %v3939 = vld [vmem:[%s10 + $0x4d0] sm:$0xff]
      %v3940 = vld [vmem:[%s10 + $0x4d8] sm:$0xff]
      %v3941 = vld [vmem:[%s10 + $0x4e0] sm:$0xff]
      %v3942 = vld [vmem:[%s10 + $0x4e8] sm:$0xff]
      %v3943 = vld [vmem:[%s10 + $0x4f0] sm:$0xff]
      %v3944 = vld [vmem:[%s10 + $0x4f8] sm:$0xff]
      %v3945 = vld [vmem:[%s10 + $0x500] sm:$0xff]
      %v3946 = vld [vmem:[%s10 + $0x508] sm:$0xff]
      %v3947 = vld [vmem:[%s10 + $0x510] sm:$0xff]
      %v3948 = vld [vmem:[%s10 + $0x518] sm:$0xff]
      %v3949 = vld [vmem:[%s10 + $0x520] sm:$0xff]
      %v3950 = vld [vmem:[%s10 + $0x528] sm:$0xff]
      %v3951 = vld [vmem:[%s10 + $0x530] sm:$0xff]
      %v3952 = vld [vmem:[%s10 + $0x538] sm:$0xff]
      %v3953 = vld [vmem:[%s10 + $0x540] sm:$0xff]
      %v3954 = vld [vmem:[%s10 + $0x548] sm:$0xff]
      %v3955 = vld [vmem:[%s10 + $0x550] sm:$0xff]
      %v3956 = vld [vmem:[%s10 + $0x558] sm:$0xff]
      %v3957 = vld [vmem:[%s10 + $0x560] sm:$0xff]
      %v3958 = vld [vmem:[%s10 + $0x568] sm:$0xff]
      %v3959 = vld [vmem:[%s10 + $0x570] sm:$0xff]
      %v3960 = vld [vmem:[%s10 + $0x578] sm:$0xff]
      %v3961 = vld [vmem:[%s10 + $0x580] sm:$0xff]
      %v3962 = vld [vmem:[%s10 + $0x588] sm:$0xff]
      %v3963 = vld [vmem:[%s10 + $0x590] sm:$0xff]
      %v3964 = vld [vmem:[%s10 + $0x598] sm:$0xff]
      %v3965 = vld [vmem:[%s10 + $0x5a0] sm:$0xff]
      %v3966 = vld [vmem:[%s10 + $0x5a8] sm:$0xff]
      %v3967 = vld [vmem:[%s10 + $0x5b0] sm:$0xff]
      %v3968 = vld [vmem:[%s10 + $0x5b8] sm:$0xff]
      %v3969 = vld [vmem:[%s10 + $0x5c0] sm:$0xff]
      %v3970 = vld [vmem:[%s10 + $0x5c8] sm:$0xff]
      %v3971 = vld [vmem:[%s10 + $0x5d0] sm:$0xff]
      %v3972 = vld [vmem:[%s10 + $0x5d8] sm:$0xff]
      %v3973 = vld [vmem:[%s10 + $0x5e0] sm:$0xff]
      %v3974 = vld [vmem:[%s10 + $0x5e8] sm:$0xff]
      %v3975 = vld [vmem:[%s10 + $0x5f0] sm:$0xff]
      %v3976 = vld [vmem:[%s10 + $0x5f8] sm:$0xff]
      %v3977 = vld [vmem:[%s10 + $0x600] sm:$0xff]
      %v3978 = vld [vmem:[%s10 + $0x608] sm:$0xff]
      %v3979 = vld [vmem:[%s10 + $0x610] sm:$0xff]
      %v3980 = vld [vmem:[%s10 + $0x618] sm:$0xff]
      %v3981 = vld [vmem:[%s10 + $0x620] sm:$0xff]
      %v3982 = vld [vmem:[%s10 + $0x628] sm:$0xff]
      %v3983 = vld [vmem:[%s10 + $0x630] sm:$0xff]
      %v3984 = vld [vmem:[%s10 + $0x638] sm:$0xff]
      %v3985 = vld [vmem:[%s10 + $0x640] sm:$0xff]
      %v3986 = vld [vmem:[%s10 + $0x648] sm:$0xff]
      %v3987 = vld [vmem:[%s10 + $0x650] sm:$0xff]
      %v3988 = vld [vmem:[%s10 + $0x658] sm:$0xff]
      %v3989 = vld [vmem:[%s10 + $0x660] sm:$0xff]
      %v3990 = vld [vmem:[%s10 + $0x668] sm:$0xff]
      %v3991 = vld [vmem:[%s10 + $0x670] sm:$0xff]
      %v3992 = vld [vmem:[%s10 + $0x678] sm:$0xff]
      %v3993 = vld [vmem:[%s10 + $0x680] sm:$0xff]
      %v3994 = vld [vmem:[%s10 + $0x688] sm:$0xff]
      %v3995 = vld [vmem:[%s10 + $0x690] sm:$0xff]
      %v3996 = vld [vmem:[%s10 + $0x698] sm:$0xff]
      %v3997 = vld [vmem:[%s10 + $0x6a0] sm:$0xff]
      %v3998 = vld [vmem:[%s10 + $0x6a8] sm:$0xff]
      %v3999 = vld [vmem:[%s10 + $0x6b0] sm:$0xff]
      %v4000 = vld [vmem:[%s10 + $0x6b8] sm:$0xff]
      %v4001 = vld [vmem:[%s10 + $0x6c0] sm:$0xff]
      %v4002 = vld [vmem:[%s10 + $0x6c8] sm:$0xff]
      %v4003 = vld [vmem:[%s10 + $0x6d0] sm:$0xff]
      %v4004 = vld [vmem:[%s10 + $0x6d8] sm:$0xff]
      %v4005 = vld [vmem:[%s10 + $0x6e0] sm:$0xff]
      %v4006 = vld [vmem:[%s10 + $0x6e8] sm:$0xff]
      %v4007 = vld [vmem:[%s10 + $0x6f0] sm:$0xff]
      %v4008 = vld [vmem:[%s10 + $0x6f8] sm:$0xff]
      %v4009 = vld [vmem:[%s10 + $0x700] sm:$0xff]
      %v4010 = vld [vmem:[%s10 + $0x708] sm:$0xff]
      %v4011 = vld [vmem:[%s10 + $0x710] sm:$0xff]
      %v4012 = vld [vmem:[%s10 + $0x718] sm:$0xff]
      %v4013 = vld [vmem:[%s10 + $0x720] sm:$0xff]
      %v4014 = vld [vmem:[%s10 + $0x728] sm:$0xff]
      %v4015 = vld [vmem:[%s10 + $0x730] sm:$0xff]
      %v4016 = vld [vmem:[%s10 + $0x738] sm:$0xff]
      %v4017 = vld [vmem:[%s10 + $0x740] sm:$0xff]
      %v4018 = vld [vmem:[%s10 + $0x748] sm:$0xff]
      %v4019 = vld [vmem:[%s10 + $0x750] sm:$0xff]
      %v4020 = vld [vmem:[%s10 + $0x758] sm:$0xff]
      %v4021 = vld [vmem:[%s10 + $0x760] sm:$0xff]
      %v4022 = vld [vmem:[%s10 + $0x768] sm:$0xff]
      %v4023 = vld [vmem:[%s10 + $0x770] sm:$0xff]
      %v4024 = vld [vmem:[%s10 + $0x778] sm:$0xff]
      %v4025 = vld [vmem:[%s10 + $0x780] sm:$0xff]
      %v4026 = vld [vmem:[%s10 + $0x788] sm:$0xff]
      %v4027 = vld [vmem:[%s10 + $0x790] sm:$0xff]
      %v4028 = vld [vmem:[%s10 + $0x798] sm:$0xff]
      %v4029 = vld [vmem:[%s10 + $0x7a0] sm:$0xff]
      %v4030 = vld [vmem:[%s10 + $0x7a8] sm:$0xff]
      %v4031 = vld [vmem:[%s10 + $0x7b0] sm:$0xff]
      %v4032 = vld [vmem:[%s10 + $0x7b8] sm:$0xff]
      %v4033 = vld [vmem:[%s10 + $0x7c0] sm:$0xff]
      %v4034 = vld [vmem:[%s10 + $0x7c8] sm:$0xff]
      %v4035 = vld [vmem:[%s10 + $0x7d0] sm:$0xff]
      %v4036 = vld [vmem:[%s10 + $0x7d8] sm:$0xff]
      %v4037 = vld [vmem:[%s10 + $0x7e0] sm:$0xff]
      %v4038 = vld [vmem:[%s10 + $0x7e8] sm:$0xff]
      %v4039 = vld [vmem:[%s10 + $0x7f0] sm:$0xff]
      %v4040 = vld [vmem:[%s10 + $0x7f8] sm:$0xff]
      %v4041 = vld [vmem:[%s11] sm:$0x1]
      %v4043 = vlaneseq
      %v4044 = vshrl.u32 %v4043, 7
      %v4045 = vsub.s32 0, %v4044
      %v4046 = vrot.slane %v4041, %v4045
      %4048 = vmatprep.subr.mxu0 0.0
      %4049 = vmatpush1.msra.mxu0 %v3785
      %4050 = vmatprep.subr.mxu0 0.0
      %4051 = vmatpush1.msra.mxu0 %v3786
      %4052 = vmatprep.subr.mxu0 0.0
      %4053 = vmatpush1.msra.mxu0 %v3787
      %4054 = vmatprep.subr.mxu0 0.0
      %4055 = vmatpush1.msra.mxu0 %v3788
      %4056 = vmatprep.subr.mxu0 0.0
      %4057 = vmatpush1.msra.mxu0 %v3789
      %4058 = vmatprep.subr.mxu0 0.0
      %4059 = vmatpush1.msra.mxu0 %v3790
      %4060 = vmatprep.subr.mxu0 0.0
      %4061 = vmatpush1.msra.mxu0 %v3791
      %4062 = vmatprep.subr.mxu0 0.0
      %4063 = vmatpush1.msra.mxu0 %v3792
      %4064 = vmatprep.subr.mxu0 0.0
      %4065 = vmatpush1.msra.mxu0 %v3793
      %4066 = vmatprep.subr.mxu0 0.0
      %4067 = vmatpush1.msra.mxu0 %v3794
      %4068 = vmatprep.subr.mxu0 0.0
      %4069 = vmatpush1.msra.mxu0 %v3795
      %4070 = vmatprep.subr.mxu0 0.0
      %4071 = vmatpush1.msra.mxu0 %v3796
      %4072 = vmatprep.subr.mxu0 0.0
      %4073 = vmatpush1.msra.mxu0 %v3797
      %4074 = vmatprep.subr.mxu0 0.0
      %4075 = vmatpush1.msra.mxu0 %v3798
      %4076 = vmatprep.subr.mxu0 0.0
      %4077 = vmatpush1.msra.mxu0 %v3799
      %4078 = vmatprep.subr.mxu0 0.0
      %4079 = vmatpush1.msra.mxu0 %v3800
      %4080 = vmatprep.subr.mxu0 0.0
      %4081 = vmatpush1.msra.mxu0 %v3801
      %4082 = vmatprep.subr.mxu0 0.0
      %4083 = vmatpush1.msra.mxu0 %v3802
      %4084 = vmatprep.subr.mxu0 0.0
      %4085 = vmatpush1.msra.mxu0 %v3803
      %4086 = vmatprep.subr.mxu0 0.0
      %4087 = vmatpush1.msra.mxu0 %v3804
      %4088 = vmatprep.subr.mxu0 0.0
      %4089 = vmatpush1.msra.mxu0 %v3805
      %4090 = vmatprep.subr.mxu0 0.0
      %4091 = vmatpush1.msra.mxu0 %v3806
      %4092 = vmatprep.subr.mxu0 0.0
      %4093 = vmatpush1.msra.mxu0 %v3807
      %4094 = vmatprep.subr.mxu0 0.0
      %4095 = vmatpush1.msra.mxu0 %v3808
      %4096 = vmatprep.subr.mxu0 0.0
      %4097 = vmatpush1.msra.mxu0 %v3809
      %4098 = vmatprep.subr.mxu0 0.0
      %4099 = vmatpush1.msra.mxu0 %v3810
      %4100 = vmatprep.subr.mxu0 0.0
      %4101 = vmatpush1.msra.mxu0 %v3811
      %4102 = vmatprep.subr.mxu0 0.0
      %4103 = vmatpush1.msra.mxu0 %v3812
      %4104 = vmatprep.subr.mxu0 0.0
      %4105 = vmatpush1.msra.mxu0 %v3813
      %4106 = vmatprep.subr.mxu0 0.0
      %4107 = vmatpush1.msra.mxu0 %v3814
      %4108 = vmatprep.subr.mxu0 0.0
      %4109 = vmatpush1.msra.mxu0 %v3815
      %4110 = vmatprep.subr.mxu0 0.0
      %4111 = vmatpush1.msra.mxu0 %v3816
      %4112 = vmatprep.mubr.f32.mxu0 %v3658
      %4113 = vmatmul.mubr.f32.gmra.mrb[0].mxu0 %v3657
      %v4114 = vpop.f32.mrb[0].mxu0
      %v4115 = vadd.f32 %v4046, %v4114
      %v4116 = vpop.f32.mrb[0].mxu0
      %4117 = vmatprep.mubr.f32.mxu0 %v3674
      %4118 = vmatmul.mubr.f32.gmra.mrb[0].mxu0 %v3673
      %v4119 = vpop.f32.mrb[0].mxu0
      %v4120 = vadd.f32 %v4046, %v4119
      %v4121 = vpop.f32.mrb[0].mxu0
      %4122 = vmatprep.mubr.f32.mxu0 %v3690
      %4123 = vmatmul.mubr.f32.gmra.mrb[0].mxu0 %v3689
      %v4124 = vpop.f32.mrb[0].mxu0
      %v4125 = vadd.f32 %v4046, %v4124
      %v4126 = vpop.f32.mrb[0].mxu0
      %4127 = vmatprep.mubr.f32.mxu0 %v3706
      %4128 = vmatmul.mubr.f32.gmra.mrb[0].mxu0 %v3705
      %v4129 = vpop.f32.mrb[0].mxu0
      %v4130 = vadd.f32 %v4046, %v4129
      %v4131 = vpop.f32.mrb[0].mxu0
      %4132 = vmatprep.mubr.f32.mxu0 %v3722
      %4133 = vmatmul.mubr.f32.gmra.mrb[0].mxu0 %v3721
      %v4134 = vpop.f32.mrb[0].mxu0
      %v4135 = vadd.f32 %v4046, %v4134
      %v4136 = vpop.f32.mrb[0].mxu0
      %4137 = vmatprep.mubr.f32.mxu0 %v3738
      %4138 = vmatmul.mubr.f32.gmra.mrb[0].mxu0 %v3737
      %v4139 = vpop.f32.mrb[0].mxu0
      %v4140 = vadd.f32 %v4046, %v4139
      %v4141 = vpop.f32.mrb[0].mxu0
      %4142 = vmatprep.mubr.f32.mxu0 %v3754
      %4143 = vmatmul.mubr.f32.gmra.mrb[0].mxu0 %v3753
      %v4144 = vpop.f32.mrb[0].mxu0
      %v4145 = vadd.f32 %v4046, %v4144
      %v4146 = vpop.f32.mrb[0].mxu0
      %4147 = vmatprep.mubr.f32.mxu0 %v3770
      %4148 = vmatmul.mubr.f32.gmra.mrb[0].mxu0 %v3769
      %v4149 = vpop.f32.mrb[0].mxu0
      %v4150 = vadd.f32 %v4046, %v4149
      %v4151 = vpop.f32.mrb[0].mxu0
      %4152 = vdwg.mxu0
      %4153 = vmatprep.subr.mxu0 0.0
      %4154 = vmatpush1.msra.mxu0 %v3817
      %4155 = vmatprep.subr.mxu0 0.0
      %4156 = vmatpush1.msra.mxu0 %v3818
      %4157 = vmatprep.subr.mxu0 0.0
      %4158 = vmatpush1.msra.mxu0 %v3819
      %4159 = vmatprep.subr.mxu0 0.0
      %4160 = vmatpush1.msra.mxu0 %v3820
      %4161 = vmatprep.subr.mxu0 0.0
      %4162 = vmatpush1.msra.mxu0 %v3821
      %4163 = vmatprep.subr.mxu0 0.0
      %4164 = vmatpush1.msra.mxu0 %v3822
      %4165 = vmatprep.subr.mxu0 0.0
      %4166 = vmatpush1.msra.mxu0 %v3823
      %4167 = vmatprep.subr.mxu0 0.0
      %4168 = vmatpush1.msra.mxu0 %v3824
      %4169 = vmatprep.subr.mxu0 0.0
      %4170 = vmatpush1.msra.mxu0 %v3825
      %4171 = vmatprep.subr.mxu0 0.0
      %4172 = vmatpush1.msra.mxu0 %v3826
      %4173 = vmatprep.subr.mxu0 0.0
      %4174 = vmatpush1.msra.mxu0 %v3827
      %4175 = vmatprep.subr.mxu0 0.0
      %4176 = vmatpush1.msra.mxu0 %v3828
      %4177 = vmatprep.subr.mxu0 0.0
      %4178 = vmatpush1.msra.mxu0 %v3829
      %4179 = vmatprep.subr.mxu0 0.0
      %4180 = vmatpush1.msra.mxu0 %v3830
      %4181 = vmatprep.subr.mxu0 0.0
      %4182 = vmatpush1.msra.mxu0 %v3831
      %4183 = vmatprep.subr.mxu0 0.0
      %4184 = vmatpush1.msra.mxu0 %v3832
      %4185 = vmatprep.subr.mxu0 0.0
      %4186 = vmatpush1.msra.mxu0 %v3833
      %4187 = vmatprep.subr.mxu0 0.0
      %4188 = vmatpush1.msra.mxu0 %v3834
      %4189 = vmatprep.subr.mxu0 0.0
      %4190 = vmatpush1.msra.mxu0 %v3835
      %4191 = vmatprep.subr.mxu0 0.0
      %4192 = vmatpush1.msra.mxu0 %v3836
      %4193 = vmatprep.subr.mxu0 0.0
      %4194 = vmatpush1.msra.mxu0 %v3837
      %4195 = vmatprep.subr.mxu0 0.0
      %4196 = vmatpush1.msra.mxu0 %v3838
      %4197 = vmatprep.subr.mxu0 0.0
      %4198 = vmatpush1.msra.mxu0 %v3839
      %4199 = vmatprep.subr.mxu0 0.0
      %4200 = vmatpush1.msra.mxu0 %v3840
      %4201 = vmatprep.subr.mxu0 0.0
      %4202 = vmatpush1.msra.mxu0 %v3841
      %4203 = vmatprep.subr.mxu0 0.0
      %4204 = vmatpush1.msra.mxu0 %v3842
      %4205 = vmatprep.subr.mxu0 0.0
      %4206 = vmatpush1.msra.mxu0 %v3843
      %4207 = vmatprep.subr.mxu0 0.0
      %4208 = vmatpush1.msra.mxu0 %v3844
      %4209 = vmatprep.subr.mxu0 0.0
      %4210 = vmatpush1.msra.mxu0 %v3845
      %4211 = vmatprep.subr.mxu0 0.0
      %4212 = vmatpush1.msra.mxu0 %v3846
      %4213 = vmatprep.subr.mxu0 0.0
      %4214 = vmatpush1.msra.mxu0 %v3847
      %4215 = vmatprep.subr.mxu0 0.0
      %4216 = vmatpush1.msra.mxu0 %v3848
      %4217 = vmatprep.mubr.f32.mxu0 %v3660
      %4218 = vmatmul.mubr.f32.gmra.mrb[0].mxu0 %v3659
      %v4219 = vpop.f32.mrb[0].mxu0
      %v4220 = vadd.f32 %v4115, %v4219
      %v4221 = vpop.f32.mrb[0].mxu0
      %4222 = vmatprep.mubr.f32.mxu0 %v3676
      %4223 = vmatmul.mubr.f32.gmra.mrb[0].mxu0 %v3675
      %v4224 = vpop.f32.mrb[0].mxu0
      %v4225 = vadd.f32 %v4120, %v4224
      %v4226 = vpop.f32.mrb[0].mxu0
      %4227 = vmatprep.mubr.f32.mxu0 %v3692
      %4228 = vmatmul.mubr.f32.gmra.mrb[0].mxu0 %v3691
      %v4229 = vpop.f32.mrb[0].mxu0
      %v4230 = vadd.f32 %v4125, %v4229
      %v4231 = vpop.f32.mrb[0].mxu0
      %4232 = vmatprep.mubr.f32.mxu0 %v3708
      %4233 = vmatmul.mubr.f32.gmra.mrb[0].mxu0 %v3707
      %v4234 = vpop.f32.mrb[0].mxu0
      %v4235 = vadd.f32 %v4130, %v4234
      %v4236 = vpop.f32.mrb[0].mxu0
      %4237 = vmatprep.mubr.f32.mxu0 %v3724
      %4238 = vmatmul.mubr.f32.gmra.mrb[0].mxu0 %v3723
      %v4239 = vpop.f32.mrb[0].mxu0
      %v4240 = vadd.f32 %v4135, %v4239
      %v4241 = vpop.f32.mrb[0].mxu0
      %4242 = vmatprep.mubr.f32.mxu0 %v3740
      %4243 = vmatmul.mubr.f32.gmra.mrb[0].mxu0 %v3739
      %v4244 = vpop.f32.mrb[0].mxu0
      %v4245 = vadd.f32 %v4140, %v4244
      %v4246 = vpop.f32.mrb[0].mxu0
      %4247 = vmatprep.mubr.f32.mxu0 %v3756
      %4248 = vmatmul.mubr.f32.gmra.mrb[0].mxu0 %v3755
      %v4249 = vpop.f32.mrb[0].mxu0
      %v4250 = vadd.f32 %v4145, %v4249
      %v4251 = vpop.f32.mrb[0].mxu0
      %4252 = vmatprep.mubr.f32.mxu0 %v3772
      %4253 = vmatmul.mubr.f32.gmra.mrb[0].mxu0 %v3771
      %v4254 = vpop.f32.mrb[0].mxu0
      %v4255 = vadd.f32 %v4150, %v4254
      %v4256 = vpop.f32.mrb[0].mxu0
      %4257 = vdwg.mxu0
      %4258 = vmatprep.subr.mxu0 0.0
      %4259 = vmatpush1.msra.mxu0 %v3849
      %4260 = vmatprep.subr.mxu0 0.0
      %4261 = vmatpush1.msra.mxu0 %v3850
      %4262 = vmatprep.subr.mxu0 0.0
      %4263 = vmatpush1.msra.mxu0 %v3851
      %4264 = vmatprep.subr.mxu0 0.0
      %4265 = vmatpush1.msra.mxu0 %v3852
      %4266 = vmatprep.subr.mxu0 0.0
      %4267 = vmatpush1.msra.mxu0 %v3853
      %4268 = vmatprep.subr.mxu0 0.0
      %4269 = vmatpush1.msra.mxu0 %v3854
      %4270 = vmatprep.subr.mxu0 0.0
      %4271 = vmatpush1.msra.mxu0 %v3855
      %4272 = vmatprep.subr.mxu0 0.0
      %4273 = vmatpush1.msra.mxu0 %v3856
      %4274 = vmatprep.subr.mxu0 0.0
      %4275 = vmatpush1.msra.mxu0 %v3857
      %4276 = vmatprep.subr.mxu0 0.0
      %4277 = vmatpush1.msra.mxu0 %v3858
      %4278 = vmatprep.subr.mxu0 0.0
      %4279 = vmatpush1.msra.mxu0 %v3859
      %4280 = vmatprep.subr.mxu0 0.0
      %4281 = vmatpush1.msra.mxu0 %v3860
      %4282 = vmatprep.subr.mxu0 0.0
      %4283 = vmatpush1.msra.mxu0 %v3861
      %4284 = vmatprep.subr.mxu0 0.0
      %4285 = vmatpush1.msra.mxu0 %v3862
      %4286 = vmatprep.subr.mxu0 0.0
      %4287 = vmatpush1.msra.mxu0 %v3863
      %4288 = vmatprep.subr.mxu0 0.0
      %4289 = vmatpush1.msra.mxu0 %v3864
      %4290 = vmatprep.subr.mxu0 0.0
      %4291 = vmatpush1.msra.mxu0 %v3865
      %4292 = vmatprep.subr.mxu0 0.0
      %4293 = vmatpush1.msra.mxu0 %v3866
      %4294 = vmatprep.subr.mxu0 0.0
      %4295 = vmatpush1.msra.mxu0 %v3867
      %4296 = vmatprep.subr.mxu0 0.0
      %4297 = vmatpush1.msra.mxu0 %v3868
      %4298 = vmatprep.subr.mxu0 0.0
      %4299 = vmatpush1.msra.mxu0 %v3869
      %4300 = vmatprep.subr.mxu0 0.0
      %4301 = vmatpush1.msra.mxu0 %v3870
      %4302 = vmatprep.subr.mxu0 0.0
      %4303 = vmatpush1.msra.mxu0 %v3871
      %4304 = vmatprep.subr.mxu0 0.0
      %4305 = vmatpush1.msra.mxu0 %v3872
      %4306 = vmatprep.subr.mxu0 0.0
      %4307 = vmatpush1.msra.mxu0 %v3873
      %4308 = vmatprep.subr.mxu0 0.0
      %4309 = vmatpush1.msra.mxu0 %v3874
      %4310 = vmatprep.subr.mxu0 0.0
      %4311 = vmatpush1.msra.mxu0 %v3875
      %4312 = vmatprep.subr.mxu0 0.0
      %4313 = vmatpush1.msra.mxu0 %v3876
      %4314 = vmatprep.subr.mxu0 0.0
      %4315 = vmatpush1.msra.mxu0 %v3877
      %4316 = vmatprep.subr.mxu0 0.0
      %4317 = vmatpush1.msra.mxu0 %v3878
      %4318 = vmatprep.subr.mxu0 0.0
      %4319 = vmatpush1.msra.mxu0 %v3879
      %4320 = vmatprep.subr.mxu0 0.0
      %4321 = vmatpush1.msra.mxu0 %v3880
      %4322 = vmatprep.mubr.f32.mxu0 %v3662
      %4323 = vmatmul.mubr.f32.gmra.mrb[0].mxu0 %v3661
      %v4324 = vpop.f32.mrb[0].mxu0
      %v4325 = vadd.f32 %v4220, %v4324
      %v4326 = vpop.f32.mrb[0].mxu0
      %4327 = vmatprep.mubr.f32.mxu0 %v3678
      %4328 = vmatmul.mubr.f32.gmra.mrb[0].mxu0 %v3677
      %v4329 = vpop.f32.mrb[0].mxu0
      %v4330 = vadd.f32 %v4225, %v4329
      %v4331 = vpop.f32.mrb[0].mxu0
      %4332 = vmatprep.mubr.f32.mxu0 %v3694
      %4333 = vmatmul.mubr.f32.gmra.mrb[0].mxu0 %v3693
      %v4334 = vpop.f32.mrb[0].mxu0
      %v4335 = vadd.f32 %v4230, %v4334
      %v4336 = vpop.f32.mrb[0].mxu0
      %4337 = vmatprep.mubr.f32.mxu0 %v3710
      %4338 = vmatmul.mubr.f32.gmra.mrb[0].mxu0 %v3709
      %v4339 = vpop.f32.mrb[0].mxu0
      %v4340 = vadd.f32 %v4235, %v4339
      %v4341 = vpop.f32.mrb[0].mxu0
      %4342 = vmatprep.mubr.f32.mxu0 %v3726
      %4343 = vmatmul.mubr.f32.gmra.mrb[0].mxu0 %v3725
      %v4344 = vpop.f32.mrb[0].mxu0
      %v4345 = vadd.f32 %v4240, %v4344
      %v4346 = vpop.f32.mrb[0].mxu0
      %4347 = vmatprep.mubr.f32.mxu0 %v3742
      %4348 = vmatmul.mubr.f32.gmra.mrb[0].mxu0 %v3741
      %v4349 = vpop.f32.mrb[0].mxu0
      %v4350 = vadd.f32 %v4245, %v4349
      %v4351 = vpop.f32.mrb[0].mxu0
      %4352 = vmatprep.mubr.f32.mxu0 %v3758
      %4353 = vmatmul.mubr.f32.gmra.mrb[0].mxu0 %v3757
      %v4354 = vpop.f32.mrb[0].mxu0
      %v4355 = vadd.f32 %v4250, %v4354
      %v4356 = vpop.f32.mrb[0].mxu0
      %4357 = vmatprep.mubr.f32.mxu0 %v3774
      %4358 = vmatmul.mubr.f32.gmra.mrb[0].mxu0 %v3773
      %v4359 = vpop.f32.mrb[0].mxu0
      %v4360 = vadd.f32 %v4255, %v4359
      %v4361 = vpop.f32.mrb[0].mxu0
      %4362 = vdwg.mxu0
      %4363 = vmatprep.subr.mxu0 0.0
      %4364 = vmatpush1.msra.mxu0 %v3881
      %4365 = vmatprep.subr.mxu0 0.0
      %4366 = vmatpush1.msra.mxu0 %v3882
      %4367 = vmatprep.subr.mxu0 0.0
      %4368 = vmatpush1.msra.mxu0 %v3883
      %4369 = vmatprep.subr.mxu0 0.0
      %4370 = vmatpush1.msra.mxu0 %v3884
      %4371 = vmatprep.subr.mxu0 0.0
      %4372 = vmatpush1.msra.mxu0 %v3885
      %4373 = vmatprep.subr.mxu0 0.0
      %4374 = vmatpush1.msra.mxu0 %v3886
      %4375 = vmatprep.subr.mxu0 0.0
      %4376 = vmatpush1.msra.mxu0 %v3887
      %4377 = vmatprep.subr.mxu0 0.0
      %4378 = vmatpush1.msra.mxu0 %v3888
      %4379 = vmatprep.subr.mxu0 0.0
      %4380 = vmatpush1.msra.mxu0 %v3889
      %4381 = vmatprep.subr.mxu0 0.0
      %4382 = vmatpush1.msra.mxu0 %v3890
      %4383 = vmatprep.subr.mxu0 0.0
      %4384 = vmatpush1.msra.mxu0 %v3891
      %4385 = vmatprep.subr.mxu0 0.0
      %4386 = vmatpush1.msra.mxu0 %v3892
      %4387 = vmatprep.subr.mxu0 0.0
      %4388 = vmatpush1.msra.mxu0 %v3893
      %4389 = vmatprep.subr.mxu0 0.0
      %4390 = vmatpush1.msra.mxu0 %v3894
      %4391 = vmatprep.subr.mxu0 0.0
      %4392 = vmatpush1.msra.mxu0 %v3895
      %4393 = vmatprep.subr.mxu0 0.0
      %4394 = vmatpush1.msra.mxu0 %v3896
      %4395 = vmatprep.subr.mxu0 0.0
      %4396 = vmatpush1.msra.mxu0 %v3897
      %4397 = vmatprep.subr.mxu0 0.0
      %4398 = vmatpush1.msra.mxu0 %v3898
      %4399 = vmatprep.subr.mxu0 0.0
      %4400 = vmatpush1.msra.mxu0 %v3899
      %4401 = vmatprep.subr.mxu0 0.0
      %4402 = vmatpush1.msra.mxu0 %v3900
      %4403 = vmatprep.subr.mxu0 0.0
      %4404 = vmatpush1.msra.mxu0 %v3901
      %4405 = vmatprep.subr.mxu0 0.0
      %4406 = vmatpush1.msra.mxu0 %v3902
      %4407 = vmatprep.subr.mxu0 0.0
      %4408 = vmatpush1.msra.mxu0 %v3903
      %4409 = vmatprep.subr.mxu0 0.0
      %4410 = vmatpush1.msra.mxu0 %v3904
      %4411 = vmatprep.subr.mxu0 0.0
      %4412 = vmatpush1.msra.mxu0 %v3905
      %4413 = vmatprep.subr.mxu0 0.0
      %4414 = vmatpush1.msra.mxu0 %v3906
      %4415 = vmatprep.subr.mxu0 0.0
      %4416 = vmatpush1.msra.mxu0 %v3907
      %4417 = vmatprep.subr.mxu0 0.0
      %4418 = vmatpush1.msra.mxu0 %v3908
      %4419 = vmatprep.subr.mxu0 0.0
      %4420 = vmatpush1.msra.mxu0 %v3909
      %4421 = vmatprep.subr.mxu0 0.0
      %4422 = vmatpush1.msra.mxu0 %v3910
      %4423 = vmatprep.subr.mxu0 0.0
      %4424 = vmatpush1.msra.mxu0 %v3911
      %4425 = vmatprep.subr.mxu0 0.0
      %4426 = vmatpush1.msra.mxu0 %v3912
      %4427 = vmatprep.mubr.f32.mxu0 %v3664
      %4428 = vmatmul.mubr.f32.gmra.mrb[0].mxu0 %v3663
      %v4429 = vpop.f32.mrb[0].mxu0
      %v4430 = vadd.f32 %v4325, %v4429
      %v4431 = vpop.f32.mrb[0].mxu0
      %4432 = vmatprep.mubr.f32.mxu0 %v3680
      %4433 = vmatmul.mubr.f32.gmra.mrb[0].mxu0 %v3679
      %v4434 = vpop.f32.mrb[0].mxu0
      %v4435 = vadd.f32 %v4330, %v4434
      %v4436 = vpop.f32.mrb[0].mxu0
      %4437 = vmatprep.mubr.f32.mxu0 %v3696
      %4438 = vmatmul.mubr.f32.gmra.mrb[0].mxu0 %v3695
      %v4439 = vpop.f32.mrb[0].mxu0
      %v4440 = vadd.f32 %v4335, %v4439
      %v4441 = vpop.f32.mrb[0].mxu0
      %4442 = vmatprep.mubr.f32.mxu0 %v3712
      %4443 = vmatmul.mubr.f32.gmra.mrb[0].mxu0 %v3711
      %v4444 = vpop.f32.mrb[0].mxu0
      %v4445 = vadd.f32 %v4340, %v4444
      %v4446 = vpop.f32.mrb[0].mxu0
      %4447 = vmatprep.mubr.f32.mxu0 %v3728
      %4448 = vmatmul.mubr.f32.gmra.mrb[0].mxu0 %v3727
      %v4449 = vpop.f32.mrb[0].mxu0
      %v4450 = vadd.f32 %v4345, %v4449
      %v4451 = vpop.f32.mrb[0].mxu0
      %4452 = vmatprep.mubr.f32.mxu0 %v3744
      %4453 = vmatmul.mubr.f32.gmra.mrb[0].mxu0 %v3743
      %v4454 = vpop.f32.mrb[0].mxu0
      %v4455 = vadd.f32 %v4350, %v4454
      %v4456 = vpop.f32.mrb[0].mxu0
      %4457 = vmatprep.mubr.f32.mxu0 %v3760
      %4458 = vmatmul.mubr.f32.gmra.mrb[0].mxu0 %v3759
      %v4459 = vpop.f32.mrb[0].mxu0
      %v4460 = vadd.f32 %v4355, %v4459
      %v4461 = vpop.f32.mrb[0].mxu0
      %4462 = vmatprep.mubr.f32.mxu0 %v3776
      %4463 = vmatmul.mubr.f32.gmra.mrb[0].mxu0 %v3775
      %v4464 = vpop.f32.mrb[0].mxu0
      %v4465 = vadd.f32 %v4360, %v4464
      %v4466 = vpop.f32.mrb[0].mxu0
      %4467 = vdwg.mxu0
      %4468 = vmatprep.subr.mxu0 0.0
      %4469 = vmatpush1.msra.mxu0 %v3913
      %4470 = vmatprep.subr.mxu0 0.0
      %4471 = vmatpush1.msra.mxu0 %v3914
      %4472 = vmatprep.subr.mxu0 0.0
      %4473 = vmatpush1.msra.mxu0 %v3915
      %4474 = vmatprep.subr.mxu0 0.0
      %4475 = vmatpush1.msra.mxu0 %v3916
      %4476 = vmatprep.subr.mxu0 0.0
      %4477 = vmatpush1.msra.mxu0 %v3917
      %4478 = vmatprep.subr.mxu0 0.0
      %4479 = vmatpush1.msra.mxu0 %v3918
      %4480 = vmatprep.subr.mxu0 0.0
      %4481 = vmatpush1.msra.mxu0 %v3919
      %4482 = vmatprep.subr.mxu0 0.0
      %4483 = vmatpush1.msra.mxu0 %v3920
      %4484 = vmatprep.subr.mxu0 0.0
      %4485 = vmatpush1.msra.mxu0 %v3921
      %4486 = vmatprep.subr.mxu0 0.0
      %4487 = vmatpush1.msra.mxu0 %v3922
      %4488 = vmatprep.subr.mxu0 0.0
      %4489 = vmatpush1.msra.mxu0 %v3923
      %4490 = vmatprep.subr.mxu0 0.0
      %4491 = vmatpush1.msra.mxu0 %v3924
      %4492 = vmatprep.subr.mxu0 0.0
      %4493 = vmatpush1.msra.mxu0 %v3925
      %4494 = vmatprep.subr.mxu0 0.0
      %4495 = vmatpush1.msra.mxu0 %v3926
      %4496 = vmatprep.subr.mxu0 0.0
      %4497 = vmatpush1.msra.mxu0 %v3927
      %4498 = vmatprep.subr.mxu0 0.0
      %4499 = vmatpush1.msra.mxu0 %v3928
      %4500 = vmatprep.subr.mxu0 0.0
      %4501 = vmatpush1.msra.mxu0 %v3929
      %4502 = vmatprep.subr.mxu0 0.0
      %4503 = vmatpush1.msra.mxu0 %v3930
      %4504 = vmatprep.subr.mxu0 0.0
      %4505 = vmatpush1.msra.mxu0 %v3931
      %4506 = vmatprep.subr.mxu0 0.0
      %4507 = vmatpush1.msra.mxu0 %v3932
      %4508 = vmatprep.subr.mxu0 0.0
      %4509 = vmatpush1.msra.mxu0 %v3933
      %4510 = vmatprep.subr.mxu0 0.0
      %4511 = vmatpush1.msra.mxu0 %v3934
      %4512 = vmatprep.subr.mxu0 0.0
      %4513 = vmatpush1.msra.mxu0 %v3935
      %4514 = vmatprep.subr.mxu0 0.0
      %4515 = vmatpush1.msra.mxu0 %v3936
      %4516 = vmatprep.subr.mxu0 0.0
      %4517 = vmatpush1.msra.mxu0 %v3937
      %4518 = vmatprep.subr.mxu0 0.0
      %4519 = vmatpush1.msra.mxu0 %v3938
      %4520 = vmatprep.subr.mxu0 0.0
      %4521 = vmatpush1.msra.mxu0 %v3939
      %4522 = vmatprep.subr.mxu0 0.0
      %4523 = vmatpush1.msra.mxu0 %v3940
      %4524 = vmatprep.subr.mxu0 0.0
      %4525 = vmatpush1.msra.mxu0 %v3941
      %4526 = vmatprep.subr.mxu0 0.0
      %4527 = vmatpush1.msra.mxu0 %v3942
      %4528 = vmatprep.subr.mxu0 0.0
      %4529 = vmatpush1.msra.mxu0 %v3943
      %4530 = vmatprep.subr.mxu0 0.0
      %4531 = vmatpush1.msra.mxu0 %v3944
      %4532 = vmatprep.mubr.f32.mxu0 %v3666
      %4533 = vmatmul.mubr.f32.gmra.mrb[0].mxu0 %v3665
      %v4534 = vpop.f32.mrb[0].mxu0
      %v4535 = vadd.f32 %v4430, %v4534
      %v4536 = vpop.f32.mrb[0].mxu0
      %4537 = vmatprep.mubr.f32.mxu0 %v3682
      %4538 = vmatmul.mubr.f32.gmra.mrb[0].mxu0 %v3681
      %v4539 = vpop.f32.mrb[0].mxu0
      %v4540 = vadd.f32 %v4435, %v4539
      %v4541 = vpop.f32.mrb[0].mxu0
      %4542 = vmatprep.mubr.f32.mxu0 %v3698
      %4543 = vmatmul.mubr.f32.gmra.mrb[0].mxu0 %v3697
      %v4544 = vpop.f32.mrb[0].mxu0
      %v4545 = vadd.f32 %v4440, %v4544
      %v4546 = vpop.f32.mrb[0].mxu0
      %4547 = vmatprep.mubr.f32.mxu0 %v3714
      %4548 = vmatmul.mubr.f32.gmra.mrb[0].mxu0 %v3713
      %v4549 = vpop.f32.mrb[0].mxu0
      %v4550 = vadd.f32 %v4445, %v4549
      %v4551 = vpop.f32.mrb[0].mxu0
      %4552 = vmatprep.mubr.f32.mxu0 %v3730
      %4553 = vmatmul.mubr.f32.gmra.mrb[0].mxu0 %v3729
      %v4554 = vpop.f32.mrb[0].mxu0
      %v4555 = vadd.f32 %v4450, %v4554
      %v4556 = vpop.f32.mrb[0].mxu0
      %4557 = vmatprep.mubr.f32.mxu0 %v3746
      %4558 = vmatmul.mubr.f32.gmra.mrb[0].mxu0 %v3745
      %v4559 = vpop.f32.mrb[0].mxu0
      %v4560 = vadd.f32 %v4455, %v4559
      %v4561 = vpop.f32.mrb[0].mxu0
      %4562 = vmatprep.mubr.f32.mxu0 %v3762
      %4563 = vmatmul.mubr.f32.gmra.mrb[0].mxu0 %v3761
      %v4564 = vpop.f32.mrb[0].mxu0
      %v4565 = vadd.f32 %v4460, %v4564
      %v4566 = vpop.f32.mrb[0].mxu0
      %4567 = vmatprep.mubr.f32.mxu0 %v3778
      %4568 = vmatmul.mubr.f32.gmra.mrb[0].mxu0 %v3777
      %v4569 = vpop.f32.mrb[0].mxu0
      %v4570 = vadd.f32 %v4465, %v4569
      %v4571 = vpop.f32.mrb[0].mxu0
      %4572 = vdwg.mxu0
      %4573 = vmatprep.subr.mxu0 0.0
      %4574 = vmatpush1.msra.mxu0 %v3945
      %4575 = vmatprep.subr.mxu0 0.0
      %4576 = vmatpush1.msra.mxu0 %v3946
      %4577 = vmatprep.subr.mxu0 0.0
      %4578 = vmatpush1.msra.mxu0 %v3947
      %4579 = vmatprep.subr.mxu0 0.0
      %4580 = vmatpush1.msra.mxu0 %v3948
      %4581 = vmatprep.subr.mxu0 0.0
      %4582 = vmatpush1.msra.mxu0 %v3949
      %4583 = vmatprep.subr.mxu0 0.0
      %4584 = vmatpush1.msra.mxu0 %v3950
      %4585 = vmatprep.subr.mxu0 0.0
      %4586 = vmatpush1.msra.mxu0 %v3951
      %4587 = vmatprep.subr.mxu0 0.0
      %4588 = vmatpush1.msra.mxu0 %v3952
      %4589 = vmatprep.subr.mxu0 0.0
      %4590 = vmatpush1.msra.mxu0 %v3953
      %4591 = vmatprep.subr.mxu0 0.0
      %4592 = vmatpush1.msra.mxu0 %v3954
      %4593 = vmatprep.subr.mxu0 0.0
      %4594 = vmatpush1.msra.mxu0 %v3955
      %4595 = vmatprep.subr.mxu0 0.0
      %4596 = vmatpush1.msra.mxu0 %v3956
      %4597 = vmatprep.subr.mxu0 0.0
      %4598 = vmatpush1.msra.mxu0 %v3957
      %4599 = vmatprep.subr.mxu0 0.0
      %4600 = vmatpush1.msra.mxu0 %v3958
      %4601 = vmatprep.subr.mxu0 0.0
      %4602 = vmatpush1.msra.mxu0 %v3959
      %4603 = vmatprep.subr.mxu0 0.0
      %4604 = vmatpush1.msra.mxu0 %v3960
      %4605 = vmatprep.subr.mxu0 0.0
      %4606 = vmatpush1.msra.mxu0 %v3961
      %4607 = vmatprep.subr.mxu0 0.0
      %4608 = vmatpush1.msra.mxu0 %v3962
      %4609 = vmatprep.subr.mxu0 0.0
      %4610 = vmatpush1.msra.mxu0 %v3963
      %4611 = vmatprep.subr.mxu0 0.0
      %4612 = vmatpush1.msra.mxu0 %v3964
      %4613 = vmatprep.subr.mxu0 0.0
      %4614 = vmatpush1.msra.mxu0 %v3965
      %4615 = vmatprep.subr.mxu0 0.0
      %4616 = vmatpush1.msra.mxu0 %v3966
      %4617 = vmatprep.subr.mxu0 0.0
      %4618 = vmatpush1.msra.mxu0 %v3967
      %4619 = vmatprep.subr.mxu0 0.0
      %4620 = vmatpush1.msra.mxu0 %v3968
      %4621 = vmatprep.subr.mxu0 0.0
      %4622 = vmatpush1.msra.mxu0 %v3969
      %4623 = vmatprep.subr.mxu0 0.0
      %4624 = vmatpush1.msra.mxu0 %v3970
      %4625 = vmatprep.subr.mxu0 0.0
      %4626 = vmatpush1.msra.mxu0 %v3971
      %4627 = vmatprep.subr.mxu0 0.0
      %4628 = vmatpush1.msra.mxu0 %v3972
      %4629 = vmatprep.subr.mxu0 0.0
      %4630 = vmatpush1.msra.mxu0 %v3973
      %4631 = vmatprep.subr.mxu0 0.0
      %4632 = vmatpush1.msra.mxu0 %v3974
      %4633 = vmatprep.subr.mxu0 0.0
      %4634 = vmatpush1.msra.mxu0 %v3975
      %4635 = vmatprep.subr.mxu0 0.0
      %4636 = vmatpush1.msra.mxu0 %v3976
      %4637 = vmatprep.mubr.f32.mxu0 %v3668
      %4638 = vmatmul.mubr.f32.gmra.mrb[0].mxu0 %v3667
      %v4639 = vpop.f32.mrb[0].mxu0
      %v4640 = vadd.f32 %v4535, %v4639
      %v4641 = vpop.f32.mrb[0].mxu0
      %4642 = vmatprep.mubr.f32.mxu0 %v3684
      %4643 = vmatmul.mubr.f32.gmra.mrb[0].mxu0 %v3683
      %v4644 = vpop.f32.mrb[0].mxu0
      %v4645 = vadd.f32 %v4540, %v4644
      %v4646 = vpop.f32.mrb[0].mxu0
      %4647 = vmatprep.mubr.f32.mxu0 %v3700
      %4648 = vmatmul.mubr.f32.gmra.mrb[0].mxu0 %v3699
      %v4649 = vpop.f32.mrb[0].mxu0
      %v4650 = vadd.f32 %v4545, %v4649
      %v4651 = vpop.f32.mrb[0].mxu0
      %4652 = vmatprep.mubr.f32.mxu0 %v3716
      %4653 = vmatmul.mubr.f32.gmra.mrb[0].mxu0 %v3715
      %v4654 = vpop.f32.mrb[0].mxu0
      %v4655 = vadd.f32 %v4550, %v4654
      %v4656 = vpop.f32.mrb[0].mxu0
      %4657 = vmatprep.mubr.f32.mxu0 %v3732
      %4658 = vmatmul.mubr.f32.gmra.mrb[0].mxu0 %v3731
      %v4659 = vpop.f32.mrb[0].mxu0
      %v4660 = vadd.f32 %v4555, %v4659
      %v4661 = vpop.f32.mrb[0].mxu0
      %4662 = vmatprep.mubr.f32.mxu0 %v3748
      %4663 = vmatmul.mubr.f32.gmra.mrb[0].mxu0 %v3747
      %v4664 = vpop.f32.mrb[0].mxu0
      %v4665 = vadd.f32 %v4560, %v4664
      %v4666 = vpop.f32.mrb[0].mxu0
      %4667 = vmatprep.mubr.f32.mxu0 %v3764
      %4668 = vmatmul.mubr.f32.gmra.mrb[0].mxu0 %v3763
      %v4669 = vpop.f32.mrb[0].mxu0
      %v4670 = vadd.f32 %v4565, %v4669
      %v4671 = vpop.f32.mrb[0].mxu0
      %4672 = vmatprep.mubr.f32.mxu0 %v3780
      %4673 = vmatmul.mubr.f32.gmra.mrb[0].mxu0 %v3779
      %v4674 = vpop.f32.mrb[0].mxu0
      %v4675 = vadd.f32 %v4570, %v4674
      %v4676 = vpop.f32.mrb[0].mxu0
      %4677 = vdwg.mxu0
      %4678 = vmatprep.subr.mxu0 0.0
      %4679 = vmatpush1.msra.mxu0 %v3977
      %4680 = vmatprep.subr.mxu0 0.0
      %4681 = vmatpush1.msra.mxu0 %v3978
      %4682 = vmatprep.subr.mxu0 0.0
      %4683 = vmatpush1.msra.mxu0 %v3979
      %4684 = vmatprep.subr.mxu0 0.0
      %4685 = vmatpush1.msra.mxu0 %v3980
      %4686 = vmatprep.subr.mxu0 0.0
      %4687 = vmatpush1.msra.mxu0 %v3981
      %4688 = vmatprep.subr.mxu0 0.0
      %4689 = vmatpush1.msra.mxu0 %v3982
      %4690 = vmatprep.subr.mxu0 0.0
      %4691 = vmatpush1.msra.mxu0 %v3983
      %4692 = vmatprep.subr.mxu0 0.0
      %4693 = vmatpush1.msra.mxu0 %v3984
      %4694 = vmatprep.subr.mxu0 0.0
      %4695 = vmatpush1.msra.mxu0 %v3985
      %4696 = vmatprep.subr.mxu0 0.0
      %4697 = vmatpush1.msra.mxu0 %v3986
      %4698 = vmatprep.subr.mxu0 0.0
      %4699 = vmatpush1.msra.mxu0 %v3987
      %4700 = vmatprep.subr.mxu0 0.0
      %4701 = vmatpush1.msra.mxu0 %v3988
      %4702 = vmatprep.subr.mxu0 0.0
      %4703 = vmatpush1.msra.mxu0 %v3989
      %4704 = vmatprep.subr.mxu0 0.0
      %4705 = vmatpush1.msra.mxu0 %v3990
      %4706 = vmatprep.subr.mxu0 0.0
      %4707 = vmatpush1.msra.mxu0 %v3991
      %4708 = vmatprep.subr.mxu0 0.0
      %4709 = vmatpush1.msra.mxu0 %v3992
      %4710 = vmatprep.subr.mxu0 0.0
      %4711 = vmatpush1.msra.mxu0 %v3993
      %4712 = vmatprep.subr.mxu0 0.0
      %4713 = vmatpush1.msra.mxu0 %v3994
      %4714 = vmatprep.subr.mxu0 0.0
      %4715 = vmatpush1.msra.mxu0 %v3995
      %4716 = vmatprep.subr.mxu0 0.0
      %4717 = vmatpush1.msra.mxu0 %v3996
      %4718 = vmatprep.subr.mxu0 0.0
      %4719 = vmatpush1.msra.mxu0 %v3997
      %4720 = vmatprep.subr.mxu0 0.0
      %4721 = vmatpush1.msra.mxu0 %v3998
      %4722 = vmatprep.subr.mxu0 0.0
      %4723 = vmatpush1.msra.mxu0 %v3999
      %4724 = vmatprep.subr.mxu0 0.0
      %4725 = vmatpush1.msra.mxu0 %v4000
      %4726 = vmatprep.subr.mxu0 0.0
      %4727 = vmatpush1.msra.mxu0 %v4001
      %4728 = vmatprep.subr.mxu0 0.0
      %4729 = vmatpush1.msra.mxu0 %v4002
      %4730 = vmatprep.subr.mxu0 0.0
      %4731 = vmatpush1.msra.mxu0 %v4003
      %4732 = vmatprep.subr.mxu0 0.0
      %4733 = vmatpush1.msra.mxu0 %v4004
      %4734 = vmatprep.subr.mxu0 0.0
      %4735 = vmatpush1.msra.mxu0 %v4005
      %4736 = vmatprep.subr.mxu0 0.0
      %4737 = vmatpush1.msra.mxu0 %v4006
      %4738 = vmatprep.subr.mxu0 0.0
      %4739 = vmatpush1.msra.mxu0 %v4007
      %4740 = vmatprep.subr.mxu0 0.0
      %4741 = vmatpush1.msra.mxu0 %v4008
      %4742 = vmatprep.mubr.f32.mxu0 %v3670
      %4743 = vmatmul.mubr.f32.gmra.mrb[0].mxu0 %v3669
      %v4744 = vpop.f32.mrb[0].mxu0
      %v4745 = vadd.f32 %v4640, %v4744
      %v4746 = vpop.f32.mrb[0].mxu0
      %4747 = vmatprep.mubr.f32.mxu0 %v3686
      %4748 = vmatmul.mubr.f32.gmra.mrb[0].mxu0 %v3685
      %v4749 = vpop.f32.mrb[0].mxu0
      %v4750 = vadd.f32 %v4645, %v4749
      %v4751 = vpop.f32.mrb[0].mxu0
      %4752 = vmatprep.mubr.f32.mxu0 %v3702
      %4753 = vmatmul.mubr.f32.gmra.mrb[0].mxu0 %v3701
      %v4754 = vpop.f32.mrb[0].mxu0
      %v4755 = vadd.f32 %v4650, %v4754
      %v4756 = vpop.f32.mrb[0].mxu0
      %4757 = vmatprep.mubr.f32.mxu0 %v3718
      %4758 = vmatmul.mubr.f32.gmra.mrb[0].mxu0 %v3717
      %v4759 = vpop.f32.mrb[0].mxu0
      %v4760 = vadd.f32 %v4655, %v4759
      %v4761 = vpop.f32.mrb[0].mxu0
      %4762 = vmatprep.mubr.f32.mxu0 %v3734
      %4763 = vmatmul.mubr.f32.gmra.mrb[0].mxu0 %v3733
      %v4764 = vpop.f32.mrb[0].mxu0
      %v4765 = vadd.f32 %v4660, %v4764
      %v4766 = vpop.f32.mrb[0].mxu0
      %4767 = vmatprep.mubr.f32.mxu0 %v3750
      %4768 = vmatmul.mubr.f32.gmra.mrb[0].mxu0 %v3749
      %v4769 = vpop.f32.mrb[0].mxu0
      %v4770 = vadd.f32 %v4665, %v4769
      %v4771 = vpop.f32.mrb[0].mxu0
      %4772 = vmatprep.mubr.f32.mxu0 %v3766
      %4773 = vmatmul.mubr.f32.gmra.mrb[0].mxu0 %v3765
      %v4774 = vpop.f32.mrb[0].mxu0
      %v4775 = vadd.f32 %v4670, %v4774
      %v4776 = vpop.f32.mrb[0].mxu0
      %4777 = vmatprep.mubr.f32.mxu0 %v3782
      %4778 = vmatmul.mubr.f32.gmra.mrb[0].mxu0 %v3781
      %v4779 = vpop.f32.mrb[0].mxu0
      %v4780 = vadd.f32 %v4675, %v4779
      %v4781 = vpop.f32.mrb[0].mxu0
      %4782 = vdwg.mxu0
      %4783 = vmatprep.subr.mxu0 0.0
      %4784 = vmatpush1.msra.mxu0 %v4009
      %4785 = vmatprep.subr.mxu0 0.0
      %4786 = vmatpush1.msra.mxu0 %v4010
      %4787 = vmatprep.subr.mxu0 0.0
      %4788 = vmatpush1.msra.mxu0 %v4011
      %4789 = vmatprep.subr.mxu0 0.0
      %4790 = vmatpush1.msra.mxu0 %v4012
      %4791 = vmatprep.subr.mxu0 0.0
      %4792 = vmatpush1.msra.mxu0 %v4013
      %4793 = vmatprep.subr.mxu0 0.0
      %4794 = vmatpush1.msra.mxu0 %v4014
      %4795 = vmatprep.subr.mxu0 0.0
      %4796 = vmatpush1.msra.mxu0 %v4015
      %4797 = vmatprep.subr.mxu0 0.0
      %4798 = vmatpush1.msra.mxu0 %v4016
      %4799 = vmatprep.subr.mxu0 0.0
      %4800 = vmatpush1.msra.mxu0 %v4017
      %4801 = vmatprep.subr.mxu0 0.0
      %4802 = vmatpush1.msra.mxu0 %v4018
      %4803 = vmatprep.subr.mxu0 0.0
      %4804 = vmatpush1.msra.mxu0 %v4019
      %4805 = vmatprep.subr.mxu0 0.0
      %4806 = vmatpush1.msra.mxu0 %v4020
      %4807 = vmatprep.subr.mxu0 0.0
      %4808 = vmatpush1.msra.mxu0 %v4021
      %4809 = vmatprep.subr.mxu0 0.0
      %4810 = vmatpush1.msra.mxu0 %v4022
      %4811 = vmatprep.subr.mxu0 0.0
      %4812 = vmatpush1.msra.mxu0 %v4023
      %4813 = vmatprep.subr.mxu0 0.0
      %4814 = vmatpush1.msra.mxu0 %v4024
      %4815 = vmatprep.subr.mxu0 0.0
      %4816 = vmatpush1.msra.mxu0 %v4025
      %4817 = vmatprep.subr.mxu0 0.0
      %4818 = vmatpush1.msra.mxu0 %v4026
      %4819 = vmatprep.subr.mxu0 0.0
      %4820 = vmatpush1.msra.mxu0 %v4027
      %4821 = vmatprep.subr.mxu0 0.0
      %4822 = vmatpush1.msra.mxu0 %v4028
      %4823 = vmatprep.subr.mxu0 0.0
      %4824 = vmatpush1.msra.mxu0 %v4029
      %4825 = vmatprep.subr.mxu0 0.0
      %4826 = vmatpush1.msra.mxu0 %v4030
      %4827 = vmatprep.subr.mxu0 0.0
      %4828 = vmatpush1.msra.mxu0 %v4031
      %4829 = vmatprep.subr.mxu0 0.0
      %4830 = vmatpush1.msra.mxu0 %v4032
      %4831 = vmatprep.subr.mxu0 0.0
      %4832 = vmatpush1.msra.mxu0 %v4033
      %4833 = vmatprep.subr.mxu0 0.0
      %4834 = vmatpush1.msra.mxu0 %v4034
      %4835 = vmatprep.subr.mxu0 0.0
      %4836 = vmatpush1.msra.mxu0 %v4035
      %4837 = vmatprep.subr.mxu0 0.0
      %4838 = vmatpush1.msra.mxu0 %v4036
      %4839 = vmatprep.subr.mxu0 0.0
      %4840 = vmatpush1.msra.mxu0 %v4037
      %4841 = vmatprep.subr.mxu0 0.0
      %4842 = vmatpush1.msra.mxu0 %v4038
      %4843 = vmatprep.subr.mxu0 0.0
      %4844 = vmatpush1.msra.mxu0 %v4039
      %4845 = vmatprep.subr.mxu0 0.0
      %4846 = vmatpush1.msra.mxu0 %v4040
      %4847 = vmatprep.mubr.f32.mxu0 %v3672
      %4848 = vmatmul.mubr.f32.gmra.mrb[0].mxu0 %v3671
      %v4849 = vpop.f32.mrb[0].mxu0
      %v4850 = vadd.f32 %v4745, %v4849
      %v4851 = vpop.f32.mrb[0].mxu0
      %4852 = vmatprep.mubr.f32.mxu0 %v3688
      %4853 = vmatmul.mubr.f32.gmra.mrb[0].mxu0 %v3687
      %v4854 = vpop.f32.mrb[0].mxu0
      %v4855 = vadd.f32 %v4750, %v4854
      %v4856 = vpop.f32.mrb[0].mxu0
      %4857 = vmatprep.mubr.f32.mxu0 %v3704
      %4858 = vmatmul.mubr.f32.gmra.mrb[0].mxu0 %v3703
      %v4859 = vpop.f32.mrb[0].mxu0
      %v4860 = vadd.f32 %v4755, %v4859
      %v4861 = vpop.f32.mrb[0].mxu0
      %4862 = vmatprep.mubr.f32.mxu0 %v3720
      %4863 = vmatmul.mubr.f32.gmra.mrb[0].mxu0 %v3719
      %v4864 = vpop.f32.mrb[0].mxu0
      %v4865 = vadd.f32 %v4760, %v4864
      %v4866 = vpop.f32.mrb[0].mxu0
      %4867 = vmatprep.mubr.f32.mxu0 %v3736
      %4868 = vmatmul.mubr.f32.gmra.mrb[0].mxu0 %v3735
      %v4869 = vpop.f32.mrb[0].mxu0
      %v4870 = vadd.f32 %v4765, %v4869
      %v4871 = vpop.f32.mrb[0].mxu0
      %4872 = vmatprep.mubr.f32.mxu0 %v3752
      %4873 = vmatmul.mubr.f32.gmra.mrb[0].mxu0 %v3751
      %v4874 = vpop.f32.mrb[0].mxu0
      %v4875 = vadd.f32 %v4770, %v4874
      %v4876 = vpop.f32.mrb[0].mxu0
      %4877 = vmatprep.mubr.f32.mxu0 %v3768
      %4878 = vmatmul.mubr.f32.gmra.mrb[0].mxu0 %v3767
      %v4879 = vpop.f32.mrb[0].mxu0
      %v4880 = vadd.f32 %v4775, %v4879
      %v4881 = vpop.f32.mrb[0].mxu0
      %4882 = vmatprep.mubr.f32.mxu0 %v3784
      %4883 = vmatmul.mubr.f32.gmra.mrb[0].mxu0 %v3783
      %v4884 = vpop.f32.mrb[0].mxu0
      %v4885 = vadd.f32 %v4780, %v4884
      %v4886 = vpop.f32.mrb[0].mxu0
      %4887 = vdwg.mxu0
      %v4888 = vadd.f32 %v2573, %v4850
      %v4889 = vadd.f32 %v2574, %v4855
      %v4890 = vadd.f32 %v2575, %v4860
      %v4891 = vadd.f32 %v2576, %v4865
      %v4892 = vadd.f32 %v2577, %v4870
      %v4893 = vadd.f32 %v2578, %v4875
      %v4894 = vadd.f32 %v2579, %v4880
      %v4895 = vadd.f32 %v2580, %v4885
      %v4896 = vld [vmem:[%s12] sm:$0x1]
      %v4897 = vld [vmem:[%s13] sm:$0x1]
      %v4898 = vsel %vm487, %v4888, 0.0
      %4899 = vadd.xlane.f32.xlu0 %v4898
      %v4900 = vpop.xlane.xlu0 %4899
      %v4901 = vsel %vm487, %v4889, 0.0
      %4902 = vadd.xlane.f32.xlu0 %v4901
      %v4903 = vpop.xlane.xlu0 %4902
      %v4904 = vsel %vm487, %v4890, 0.0
      %4905 = vadd.xlane.f32.xlu0 %v4904
      %v4906 = vpop.xlane.xlu0 %4905
      %v4907 = vsel %vm487, %v4891, 0.0
      %4908 = vadd.xlane.f32.xlu0 %v4907
      %v4909 = vpop.xlane.xlu0 %4908
      %v4910 = vsel %vm487, %v4892, 0.0
      %4911 = vadd.xlane.f32.xlu0 %v4910
      %v4912 = vpop.xlane.xlu0 %4911
      %v4913 = vsel %vm487, %v4893, 0.0
      %4914 = vadd.xlane.f32.xlu0 %v4913
      %v4915 = vpop.xlane.xlu0 %4914
      %v4916 = vsel %vm487, %v4894, 0.0
      %4917 = vadd.xlane.f32.xlu0 %v4916
      %v4918 = vpop.xlane.xlu0 %4917
      %v4919 = vsel %vm487, %v4895, 0.0
      %4920 = vadd.xlane.f32.xlu0 %v4919
      %v4921 = vpop.xlane.xlu0 %4920
      %v4922 = vmul.f32 %v4900, %v2472
      %v4923 = vmul.f32 %v4903, %v2472
      %v4924 = vmul.f32 %v4906, %v2472
      %v4925 = vmul.f32 %v4909, %v2472
      %v4926 = vmul.f32 %v4912, %v2472
      %v4927 = vmul.f32 %v4915, %v2472
      %v4928 = vmul.f32 %v4918, %v2472
      %v4929 = vmul.f32 %v4921, %v2472
      %v4930 = vsub.f32 %v4888, %v4922
      %v4931 = vsub.f32 %v4889, %v4923
      %v4932 = vsub.f32 %v4890, %v4924
      %v4933 = vsub.f32 %v4891, %v4925
      %v4934 = vsub.f32 %v4892, %v4926
      %v4935 = vsub.f32 %v4893, %v4927
      %v4936 = vsub.f32 %v4894, %v4928
      %v4937 = vsub.f32 %v4895, %v4929
      %v4938 = vmul.f32 %v4930, %v4930
      %v4939 = vmul.f32 %v4931, %v4931
      %v4940 = vmul.f32 %v4932, %v4932
      %v4941 = vmul.f32 %v4933, %v4933
      %v4942 = vmul.f32 %v4934, %v4934
      %v4943 = vmul.f32 %v4935, %v4935
      %v4944 = vmul.f32 %v4936, %v4936
      %v4945 = vmul.f32 %v4937, %v4937
      %v4946 = vsel %vm487, %v4938, 0.0
      %4947 = vadd.xlane.f32.xlu0 %v4946
      %v4948 = vpop.xlane.xlu0 %4947
      %v4949 = vsel %vm487, %v4939, 0.0
      %4950 = vadd.xlane.f32.xlu0 %v4949
      %v4951 = vpop.xlane.xlu0 %4950
      %v4952 = vsel %vm487, %v4940, 0.0
      %4953 = vadd.xlane.f32.xlu0 %v4952
      %v4954 = vpop.xlane.xlu0 %4953
      %v4955 = vsel %vm487, %v4941, 0.0
      %4956 = vadd.xlane.f32.xlu0 %v4955
      %v4957 = vpop.xlane.xlu0 %4956
      %v4958 = vsel %vm487, %v4942, 0.0
      %4959 = vadd.xlane.f32.xlu0 %v4958
      %v4960 = vpop.xlane.xlu0 %4959
      %v4961 = vsel %vm487, %v4943, 0.0
      %4962 = vadd.xlane.f32.xlu0 %v4961
      %v4963 = vpop.xlane.xlu0 %4962
      %v4964 = vsel %vm487, %v4944, 0.0
      %4965 = vadd.xlane.f32.xlu0 %v4964
      %v4966 = vpop.xlane.xlu0 %4965
      %v4967 = vsel %vm487, %v4945, 0.0
      %4968 = vadd.xlane.f32.xlu0 %v4967
      %v4969 = vpop.xlane.xlu0 %4968
      %v4970 = vmul.f32 %v4948, %v2472
      %v4971 = vmul.f32 %v4951, %v2472
      %v4972 = vmul.f32 %v4954, %v2472
      %v4973 = vmul.f32 %v4957, %v2472
      %v4974 = vmul.f32 %v4960, %v2472
      %v4975 = vmul.f32 %v4963, %v2472
      %v4976 = vmul.f32 %v4966, %v2472
      %v4977 = vmul.f32 %v4969, %v2472
      %v4978 = vadd.f32 %v4970, 1e-05
      %v4979 = vadd.f32 %v4971, 1e-05
      %v4980 = vadd.f32 %v4972, 1e-05
      %v4981 = vadd.f32 %v4973, 1e-05
      %v4982 = vadd.f32 %v4974, 1e-05
      %v4983 = vadd.f32 %v4975, 1e-05
      %v4984 = vadd.f32 %v4976, 1e-05
      %v4985 = vadd.f32 %v4977, 1e-05
      %v4986 = vrsqrt.pop %v4978
      %v4987 = vrsqrt.pop %v4979
      %v4988 = vrsqrt.pop %v4980
      %v4989 = vrsqrt.pop %v4981
      %v4990 = vrsqrt.pop %v4982
      %v4991 = vrsqrt.pop %v4983
      %v4992 = vrsqrt.pop %v4984
      %v4993 = vrsqrt.pop %v4985
      %v4994 = vmul.f32 %v4930, %v4986
      %v4995 = vmul.f32 %v4931, %v4987
      %v4996 = vmul.f32 %v4932, %v4988
      %v4997 = vmul.f32 %v4933, %v4989
      %v4998 = vmul.f32 %v4934, %v4990
      %v4999 = vmul.f32 %v4935, %v4991
      %v5000 = vmul.f32 %v4936, %v4992
      %v5001 = vmul.f32 %v4937, %v4993
      %v5003 = vlaneseq
      %v5004 = vshrl.u32 %v5003, 7
      %v5005 = vsub.s32 0, %v5004
      %v5006 = vrot.slane %v4896, %v5005
      %v5008 = vmul.f32 %v4994, %v5006
      %v5009 = vmul.f32 %v4995, %v5006
      %v5010 = vmul.f32 %v4996, %v5006
      %v5011 = vmul.f32 %v4997, %v5006
      %v5012 = vmul.f32 %v4998, %v5006
      %v5013 = vmul.f32 %v4999, %v5006
      %v5014 = vmul.f32 %v5000, %v5006
      %v5015 = vmul.f32 %v5001, %v5006
      %v5017 = vlaneseq
      %v5018 = vshrl.u32 %v5017, 7
      %v5019 = vsub.s32 0, %v5018
      %v5020 = vrot.slane %v4897, %v5019
      %v5022 = vadd.f32 %v5008, %v5020
      %v5023 = vadd.f32 %v5009, %v5020
      %v5024 = vadd.f32 %v5010, %v5020
      %v5025 = vadd.f32 %v5011, %v5020
      %v5026 = vadd.f32 %v5012, %v5020
      %v5027 = vadd.f32 %v5013, %v5020
      %v5028 = vadd.f32 %v5014, %v5020
      %v5029 = vadd.f32 %v5015, %v5020
      %5030 = vst.msk [vmem:[%s467] sm:$0xff] %vm487, %v5022
      %5031 = vst.msk [vmem:[%s467 + $0x8] sm:$0xff] %vm487, %v5023
      %5032 = vst.msk [vmem:[%s467 + $0x10] sm:$0xff] %vm487, %v5024
      %5033 = vst.msk [vmem:[%s467 + $0x18] sm:$0xff] %vm487, %v5025
      %5034 = vst.msk [vmem:[%s467 + $0x20] sm:$0xff] %vm487, %v5026
      %5035 = vst.msk [vmem:[%s467 + $0x28] sm:$0xff] %vm487, %v5027
      %5036 = vst.msk [vmem:[%s467 + $0x30] sm:$0xff] %vm487, %v5028
      %5037 = vst.msk [vmem:[%s467 + $0x38] sm:$0xff] %vm487, %v5029
      %p5038 = scmp.lt.s32.totalorder %s25, 1
      %s5039 = scalar_select %p5038, %s25, 1
      %s5040 = smul.addr %s5039, 8
      %s5041 = smul.addr %s5040, 8
      %s5042 = scalar_lea.vmem %s14, %s5041
      // Predicated region
      $region77: #{tpu_custom_call.1} parent=75 // pred_check
        %p5043 = pneg %p342
      $region78: #{tpu_custom_call.1} parent=75 // pred_check_branch
        %5045 = sbr.rel (%p5043) target = $region80
      $region79: #{tpu_custom_call.1} parent=75 // pred_region
        _
      $region80: #{tpu_custom_call.1} parent=75 // pred_fallthru
        _
    $region76: #{tpu_custom_call.1} parent=5 // pred_fallthru
      _
    %p5046 = scmp.le.s32.totalorder 2, %s20
    // Predicated region
    $region81: #{tpu_custom_call.1} parent=5 // pred_check
      %p5047 = pneg %p5046
    $region82: #{tpu_custom_call.1} parent=5 // pred_check_branch
      %5049 = sbr.rel (%p5047) target = $region84
    $region83: #{tpu_custom_call.1} parent=5 // pred_region
      %s5050 = ssub.s32 %s20, 2
      // Predicated region
      $region85: #{tpu_custom_call.1} parent=83 // pred_check
        %p5051 = pneg %p348
      $region86: #{tpu_custom_call.1} parent=83 // pred_check_branch
        %5053 = sbr.rel (%p5051) target = $region88
      $region87: #{tpu_custom_call.1} parent=83 // pred_region
        %p5054 = scmp.lt.s32.totalorder %s26, 1
        %s5055 = scalar_select %p5054, %s26, 1
        %s5056 = smul.addr %s5055, 8
        %s5057 = smul.addr %s5056, 8
        %s5058 = scalar_lea.vmem %s14, %s5057
      $region88: #{tpu_custom_call.1} parent=83 // pred_fallthru
        _
    $region84: #{tpu_custom_call.1} parent=5 // pred_fallthru
      _
  $region6: #{tpu_custom_call.1} parent=0 // loop_footer
    %s24 = sadd.s32 1, %s20
  $region7: #{tpu_custom_call.1} parent=0 // loop_footer_branch
    %19 = sbr.rel target = $region3
  $region8: #{tpu_custom_call.1} parent=0 // loop_exit
    _

</llo_original>
